<compile_context>
chip_gen: v6e
topology: v6e:2x2x1
jax: 0.10.0
libtpu: 0.0.40
codegen_flags: <defaults>
</compile_context>

<pallas_src>
import functools

import jax
import jax.numpy as jnp
from jax.experimental import pallas as pl
from jax.experimental.pallas import tpu as pltpu


def _joint_attention_kernel(labels_ref, patches_ref,
                            w_qkv_c_ref, w_qkv_x_ref, wo_c_ref, wo_x_ref,
                            g_q_c_ref, g_k_c_ref, g_q_x_ref, g_k_x_ref,
                            out_c_ref, out_x_ref,
                            qkv_scr,
                            *, heads, head_dim, s_label, s_patch, kv_block,
                            qk_norm, eps):
    f32 = jnp.float32
    bf16 = jnp.bfloat16
    d = heads * head_dim
    s_total = s_label + s_patch
    n_kv = s_total // kv_block

    c = labels_ref[0]          # (s_label, D) native dtype
    x = patches_ref[0]         # (s_patch, D)

    # Fused, pre-transposed QKV projections (softmax scale already folded into
    # the Q columns / gains in the wrapper): one wide MXU matmul per stream.
    qkv_c = jnp.dot(c, w_qkv_c_ref[...], preferred_element_type=f32)   # (s_label, 3D)
    qkv_x = jnp.dot(x, w_qkv_x_ref[...], preferred_element_type=f32)   # (s_patch, 3D)

    if qk_norm:
        def rms(t, g_ref):
            ms = jnp.mean(t * t, axis=-1, keepdims=True)
            return t * jax.lax.rsqrt(ms + eps) * g_ref[...].astype(f32)
        # D-wide column-group slab stores (lane-dense at production D).
        qkv_scr[0:s_label, 0:d]       = rms(qkv_c[:, 0:d], g_q_c_ref).astype(bf16)
        qkv_scr[0:s_label, d:2 * d]   = rms(qkv_c[:, d:2 * d], g_k_c_ref).astype(bf16)
        qkv_scr[0:s_label, 2 * d:]    = qkv_c[:, 2 * d:].astype(bf16)
        qkv_scr[s_label:, 0:d]        = rms(qkv_x[:, 0:d], g_q_x_ref).astype(bf16)
        qkv_scr[s_label:, d:2 * d]    = rms(qkv_x[:, d:2 * d], g_k_x_ref).astype(bf16)
        qkv_scr[s_label:, 2 * d:]     = qkv_x[:, 2 * d:].astype(bf16)
    else:
        # Two full-width slab stores build the joint sequence (labels first).
        qkv_scr[0:s_label, :] = qkv_c.astype(bf16)
        qkv_scr[s_label:, :]  = qkv_x.astype(bf16)

    qkv = qkv_scr[...]         # (S_total, 3D) bf16

    out_c = jnp.zeros((s_label, d), f32)
    out_x = jnp.zeros((s_patch, d), f32)

    # TODO(synk): production sizes -> head & q-tile grid axes + fori_loop kv.
    for h in range(heads):
        q_h = qkv[:, h * head_dim:(h + 1) * head_dim]                       # (S, hd) bf16
        k_h = qkv[:, d + h * head_dim:d + (h + 1) * head_dim]               # (S, hd) bf16
        v_h = qkv[:, 2 * d + h * head_dim:2 * d + (h + 1) * head_dim]       # (S, hd) bf16

        # Online (flash-style) softmax over kv blocks.
        m_i = jnp.full((s_total, 1), -jnp.inf, f32)
        l_i = jnp.zeros((s_total, 1), f32)
        acc = jnp.zeros((s_total, head_dim), f32)
        for kb in range(n_kv):
            rows = slice(kb * kv_block, (kb + 1) * kv_block)
            k_b = k_h[rows]                                                 # (T, hd) bf16
            v_b = v_h[rows]                                                 # (T, hd) bf16
            s_b = jnp.einsum('qd,kd->qk', q_h, k_b,
                             preferred_element_type=f32)                    # (S, T) f32
            m_new = jnp.maximum(m_i, jnp.max(s_b, axis=-1, keepdims=True))
            alpha = jnp.exp(m_i - m_new)
            p = jnp.exp(s_b - m_new)
            l_i = alpha * l_i + jnp.sum(p, axis=-1, keepdims=True)
            acc = alpha * acc + jnp.dot(p.astype(bf16), v_b,
                                        preferred_element_type=f32)
            m_i = m_new

        attn_h = acc * pl.reciprocal(l_i, approx=True)                      # (S, hd) f32

        # Per-head accumulated output projections: head merge happens on the
        # MXU, no (S, D) merge scratch and no masked narrow stores.
        w_rows = slice(h * head_dim, (h + 1) * head_dim)
        out_c = out_c + jnp.dot(attn_h[0:s_label, :], wo_c_ref[w_rows, :],
                                preferred_element_type=f32)
        out_x = out_x + jnp.dot(attn_h[s_label:, :], wo_x_ref[w_rows, :],
                                preferred_element_type=f32)

    out_c_ref[0] = out_c.astype(out_c_ref.dtype)
    out_x_ref[0] = out_x.astype(out_x_ref.dtype)


def joint_attention(labels_embed, patches_embed, params, *, heads,
                    qk_norm=False, kv_block=None):
    """Pallas forward of Joint_Attention.

    params: dict with keys
        'label_q','label_k','label_v','label_out',
        'patch_q','patch_k','patch_v','patch_out'  -> (D, D) torch-Linear weights
        'rms_q_c','rms_k_c','rms_q_x','rms_k_x'    -> (D,)  RMSNorm gains
    """
    b, s_label, d = labels_embed.shape
    _, s_patch, _ = patches_embed.shape
    assert d % heads == 0
    head_dim = d // heads
    s_total = s_label + s_patch
    scale = head_dim ** (-0.5)

    if kv_block is None or kv_block >= s_total:
        kv_block = s_total
    assert s_total % kv_block == 0, "kv_block must divide s_label + s_patch"

    # One-time XLA-side weight prep: transpose (torch y = x @ W.T), fuse QKV,
    # and fold the softmax scale into Q (weights if no qk_norm, gains if
    # qk_norm, since RMSNorm is scale-invariant in its input).
    wq_c, wk_c, wv_c = params['label_q'].T, params['label_k'].T, params['label_v'].T
    wq_x, wk_x, wv_x = params['patch_q'].T, params['patch_k'].T, params['patch_v'].T
    if qk_norm:
        g_q_c = (params['rms_q_c'] * scale).reshape(1, d)
        g_q_x = (params['rms_q_x'] * scale).reshape(1, d)
    else:
        wq_c = wq_c * scale
        wq_x = wq_x * scale
        g_q_c = params['rms_q_c'].reshape(1, d)
        g_q_x = params['rms_q_x'].reshape(1, d)
    g_k_c = params['rms_k_c'].reshape(1, d)
    g_k_x = params['rms_k_x'].reshape(1, d)

    w_qkv_c = jnp.concatenate([wq_c, wk_c, wv_c], axis=1)   # (D, 3D)
    w_qkv_x = jnp.concatenate([wq_x, wk_x, wv_x], axis=1)   # (D, 3D)
    wo_c = params['label_out'].T                             # (D, D)
    wo_x = params['patch_out'].T                             # (D, D)

    kernel = functools.partial(
        _joint_attention_kernel,
        heads=heads, head_dim=head_dim, s_label=s_label, s_patch=s_patch,
        kv_block=kv_block, qk_norm=qk_norm,
        eps=float(jnp.finfo(jnp.float32).eps))  # torch RMSNorm default eps

    # Grid-invariant weights/gains: whole-array VMEM residency, single
    # buffered (no per-step re-DMA, no double-buffer allocation).
    vmem_full = pl.BlockSpec(memory_space=pltpu.MemorySpace.VMEM)

    return pl.pallas_call(
        kernel,
        out_shape=(jax.ShapeDtypeStruct((b, s_label, d), labels_embed.dtype),
                   jax.ShapeDtypeStruct((b, s_patch, d), patches_embed.dtype)),
        grid=(b,),
        in_specs=[pl.BlockSpec((1, s_label, d), lambda i: (i, 0, 0)),
                  pl.BlockSpec((1, s_patch, d), lambda i: (i, 0, 0))]
                 + [vmem_full] * 8,
        out_specs=(pl.BlockSpec((1, s_label, d), lambda i: (i, 0, 0)),
                   pl.BlockSpec((1, s_patch, d), lambda i: (i, 0, 0))),
        scratch_shapes=[pltpu.VMEM((s_total, 3 * d), jnp.bfloat16)],
        compiler_params=pltpu.CompilerParams(
            dimension_semantics=("parallel",),
            vmem_limit_bytes=48 * 1024 * 1024),
    )(labels_embed, patches_embed, w_qkv_c, w_qkv_x, wo_c, wo_x,
      g_q_c, g_k_c, g_q_x, g_k_x)


def joint_attention_ref(labels_embed, patches_embed, params, *, heads, qk_norm=False):
    """Plain-JAX f32 reference (mirrors the PyTorch forward)."""
    b, s_label, d = labels_embed.shape
    _, s_patch, _ = patches_embed.shape
    hd = d // heads
    eps = jnp.finfo(jnp.float32).eps

    def lin(x, w):
        return x @ w.T

    def rms(x, g):
        ms = jnp.mean(x * x, axis=-1, keepdims=True)
        return x * jax.lax.rsqrt(ms + eps) * g

    c, x = labels_embed, patches_embed
    q_c, k_c, v_c = lin(c, params['label_q']), lin(c, params['label_k']), lin(c, params['label_v'])
    q_x, k_x, v_x = lin(x, params['patch_q']), lin(x, params['patch_k']), lin(x, params['patch_v'])
    if qk_norm:
        q_c, k_c = rms(q_c, params['rms_q_c']), rms(k_c, params['rms_k_c'])
        q_x, k_x = rms(q_x, params['rms_q_x']), rms(k_x, params['rms_k_x'])
    query = jnp.concatenate([q_c, q_x], axis=1)
    key = jnp.concatenate([k_c, k_x], axis=1)
    value = jnp.concatenate([v_c, v_x], axis=1)
    S = s_label + s_patch
    query = query.reshape(b, S, heads, hd).transpose(0, 2, 1, 3)
    key = key.reshape(b, S, heads, hd).transpose(0, 2, 1, 3)
    value = value.reshape(b, S, heads, hd).transpose(0, 2, 1, 3)
    scores = jax.nn.softmax(jnp.einsum('bhqd,bhkd->bhqk', query, key) * hd ** (-0.5), axis=-1)
    out = jnp.einsum('bhqk,bhkd->bhqd', scores, value).transpose(0, 2, 1, 3).reshape(b, S, d)
    out_c, out_x = out[:, :s_label], out[:, s_label:]
    return lin(out_c, params['label_out']), lin(out_x, params['patch_out'])


if __name__ == "__main__":
    # small shapes consistent with the module
    B, S_LABEL, S_PATCH, D, HEADS = 2, 8, 16, 32, 4

    key = jax.random.PRNGKey(0)
    keys = jax.random.split(key, 11)
    bound = 1.0 / (D ** 0.5)

    params = {
        'label_q':  jax.random.uniform(keys[0], (D, D), jnp.float32, -bound, bound),
        'label_k':  jax.random.uniform(keys[1], (D, D), jnp.float32, -bound, bound),
        'label_v':  jax.random.uniform(keys[2], (D, D), jnp.float32, -bound, bound),
        'label_out': jax.random.uniform(keys[3], (D, D), jnp.float32, -bound, bound),
        'patch_q':  jax.random.uniform(keys[4], (D, D), jnp.float32, -bound, bound),
        'patch_k':  jax.random.uniform(keys[5], (D, D), jnp.float32, -bound, bound),
        'patch_v':  jax.random.uniform(keys[6], (D, D), jnp.float32, -bound, bound),
        'patch_out': jax.random.uniform(keys[7], (D, D), jnp.float32, -bound, bound),
        # RMSNorm gains init to ones (torch default)
        'rms_q_c': jnp.ones((D,), jnp.float32),
        'rms_k_c': jnp.ones((D,), jnp.float32),
        'rms_q_x': jnp.ones((D,), jnp.float32),
        'rms_k_x': jnp.ones((D,), jnp.float32),
    }

    labels_embed = jax.random.normal(keys[8], (B, S_LABEL, D), jnp.float32)
    patches_embed = jax.random.normal(keys[9], (B, S_PATCH, D), jnp.float32)

    ok = True
    for qk_norm in (False, True):
        # kv_block=8 -> 3 kv tiles: exercises the online-softmax path.
        out_c, out_x = joint_attention(labels_embed, patches_embed, params,
                                       heads=HEADS, qk_norm=qk_norm, kv_block=8)
        jax.block_until_ready((out_c, out_x))

        ref_c, ref_x = joint_attention_ref(labels_embed, patches_embed, params,
                                           heads=HEADS, qk_norm=qk_norm)
        assert out_c.shape == (B, S_LABEL, D) and out_x.shape == (B, S_PATCH, D)
        # Tolerance covers bf16 Q/K/V/P on the MXU + approximate reciprocal
        # vs. the pure f32 reference.
        ok &= bool(jnp.allclose(out_c, ref_c, atol=3e-2, rtol=3e-2))
        ok &= bool(jnp.allclose(out_x, ref_x, atol=3e-2, rtol=3e-2))

    assert ok
    print("KERNEL_OK")
</pallas_src>

<mosaic_0001>
module attributes {stable_mosaic.version = 11 : i64} {
  func.func @_joint_attention_kernel(%arg0: i32, %arg1: memref<1x8x32xf32, #tpu.memory_space<vmem>>, %arg2: memref<1x16x32xf32, #tpu.memory_space<vmem>>, %arg3: memref<32x96xf32, #tpu.memory_space<vmem>>, %arg4: memref<32x96xf32, #tpu.memory_space<vmem>>, %arg5: memref<32x32xf32, #tpu.memory_space<vmem>>, %arg6: memref<32x32xf32, #tpu.memory_space<vmem>>, %arg7: memref<1x32xf32, #tpu.memory_space<vmem>>, %arg8: memref<1x32xf32, #tpu.memory_space<vmem>>, %arg9: memref<1x32xf32, #tpu.memory_space<vmem>>, %arg10: memref<1x32xf32, #tpu.memory_space<vmem>>, %arg11: memref<1x8x32xf32, #tpu.memory_space<vmem>>, %arg12: memref<1x16x32xf32, #tpu.memory_space<vmem>>, %arg13: memref<24x96xbf16, #tpu.memory_space<vmem>>) attributes {dimension_semantics = [#tpu.dimension_semantics<parallel>], iteration_bounds = array<i64: 2>, scalar_prefetch = 0 : i64, scratch_operands = 1 : i64, tpu.core_type = #tpu.core_type<tc>, window_params = [{transform_indices = @transform_0, window_bounds = array<i64: 1, 8, 32>}, {transform_indices = @transform_1, window_bounds = array<i64: 1, 16, 32>}, {pipeline_mode = #tpu.pipeline_mode<synchronous>, transform_indices = @transform_2, window_bounds = array<i64: 32, 96>}, {pipeline_mode = #tpu.pipeline_mode<synchronous>, transform_indices = @transform_3, window_bounds = array<i64: 32, 96>}, {pipeline_mode = #tpu.pipeline_mode<synchronous>, transform_indices = @transform_4, window_bounds = array<i64: 32, 32>}, {pipeline_mode = #tpu.pipeline_mode<synchronous>, transform_indices = @transform_5, window_bounds = array<i64: 32, 32>}, {pipeline_mode = #tpu.pipeline_mode<synchronous>, transform_indices = @transform_6, window_bounds = array<i64: 1, 32>}, {pipeline_mode = #tpu.pipeline_mode<synchronous>, transform_indices = @transform_7, window_bounds = array<i64: 1, 32>}, {pipeline_mode = #tpu.pipeline_mode<synchronous>, transform_indices = @transform_8, window_bounds = array<i64: 1, 32>}, {pipeline_mode = #tpu.pipeline_mode<synchronous>, transform_indices = @transform_9, window_bounds = array<i64: 1, 32>}, {transform_indices = @transform_10, window_bounds = array<i64: 1, 8, 32>}, {transform_indices = @transform_11, window_bounds = array<i64: 1, 16, 32>}]} {
    %c0 = arith.constant 0 : index
    %c0_0 = arith.constant 0 : index
    %c0_1 = arith.constant 0 : index
    %0 = vector.load %arg1[%c0, %c0_0, %c0_1] : memref<1x8x32xf32, #tpu.memory_space<vmem>>, vector<1x8x32xf32>
    %1 = vector.shape_cast %0 : vector<1x8x32xf32> to vector<8x32xf32>
    %c0_2 = arith.constant 0 : index
    %c0_3 = arith.constant 0 : index
    %c0_4 = arith.constant 0 : index
    %2 = vector.load %arg2[%c0_2, %c0_3, %c0_4] : memref<1x16x32xf32, #tpu.memory_space<vmem>>, vector<1x16x32xf32>
    %3 = vector.shape_cast %2 : vector<1x16x32xf32> to vector<16x32xf32>
    %c0_5 = arith.constant 0 : index
    %c0_6 = arith.constant 0 : index
    %4 = vector.load %arg3[%c0_5, %c0_6] : memref<32x96xf32, #tpu.memory_space<vmem>>, vector<32x96xf32>
    %cst = arith.constant dense<0.000000e+00> : vector<8x96xf32>
    %5 = tpu.matmul %1, %4, %cst {dimension_numbers = #tpu.dot_dimension_numbers<[1], [0], [0], [1], [0, 0, 1, 1], [], []>} : vector<8x32xf32>, vector<32x96xf32>, vector<8x96xf32> -> vector<8x96xf32>
    %c0_7 = arith.constant 0 : index
    %c0_8 = arith.constant 0 : index
    %6 = vector.load %arg4[%c0_7, %c0_8] : memref<32x96xf32, #tpu.memory_space<vmem>>, vector<32x96xf32>
    %cst_9 = arith.constant dense<0.000000e+00> : vector<16x96xf32>
    %7 = tpu.matmul %3, %6, %cst_9 {dimension_numbers = #tpu.dot_dimension_numbers<[1], [0], [0], [1], [0, 0, 1, 1], [], []>} : vector<16x32xf32>, vector<32x96xf32>, vector<16x96xf32> -> vector<16x96xf32>
    %8 = arith.truncf %5 : vector<8x96xf32> to vector<8x96xbf16>
    %c0_10 = arith.constant 0 : index
    %c0_11 = arith.constant 0 : index
    %9 = vector.load %arg13[%c0_10, %c0_11] : memref<24x96xbf16, #tpu.memory_space<vmem>>, vector<8x96xbf16>
    tpu.vector_store %arg13[%c0_10, %c0_11], %8 {strides = array<i32>} : memref<24x96xbf16, #tpu.memory_space<vmem>>, vector<8x96xbf16>,
    %10 = arith.truncf %7 : vector<16x96xf32> to vector<16x96xbf16>
    %c8 = arith.constant 8 : index
    %c0_12 = arith.constant 0 : index
    %11 = vector.load %arg13[%c8, %c0_12] : memref<24x96xbf16, #tpu.memory_space<vmem>>, vector<16x96xbf16>
    tpu.vector_store %arg13[%c8, %c0_12], %10 {strides = array<i32>} : memref<24x96xbf16, #tpu.memory_space<vmem>>, vector<16x96xbf16>,
    %c0_13 = arith.constant 0 : index
    %c0_14 = arith.constant 0 : index
    %12 = vector.load %arg13[%c0_13, %c0_14] : memref<24x96xbf16, #tpu.memory_space<vmem>>, vector<24x96xbf16>
    %cst_15 = arith.constant 0.000000e+00 : f32
    %13 = vector.broadcast %cst_15 : f32 to vector<8x32xf32>
    %cst_16 = arith.constant 0.000000e+00 : f32
    %14 = vector.broadcast %cst_16 : f32 to vector<16x32xf32>
    %15 = vector.extract_strided_slice %12 {offsets = [0, 0], sizes = [24, 8], strides = [1, 1]} : vector<24x96xbf16> to vector<24x8xbf16>
    %16 = vector.extract_strided_slice %12 {offsets = [0, 32], sizes = [24, 8], strides = [1, 1]} : vector<24x96xbf16> to vector<24x8xbf16>
    %17 = vector.extract_strided_slice %12 {offsets = [0, 64], sizes = [24, 8], strides = [1, 1]} : vector<24x96xbf16> to vector<24x8xbf16>
    %cst_17 = arith.constant 0xFF800000 : f32
    %18 = vector.broadcast %cst_17 : f32 to vector<24x1xf32>
    %cst_18 = arith.constant 0.000000e+00 : f32
    %19 = vector.broadcast %cst_18 : f32 to vector<24x1xf32>
    %cst_19 = arith.constant 0.000000e+00 : f32
    %20 = vector.broadcast %cst_19 : f32 to vector<24x8xf32>
    %21 = vector.extract_strided_slice %16 {offsets = [0, 0], sizes = [8, 8], strides = [1, 1]} : vector<24x8xbf16> to vector<8x8xbf16>
    %22 = vector.extract_strided_slice %17 {offsets = [0, 0], sizes = [8, 8], strides = [1, 1]} : vector<24x8xbf16> to vector<8x8xbf16>
    "tpu.trace_start"() <{level = 10 : i32, message = "qd,kd->qk"}> : () -> ()
    %cst_20 = arith.constant dense<0.000000e+00> : vector<24x8xf32>
    %23 = tpu.matmul %15, %21, %cst_20 {dimension_numbers = #tpu.dot_dimension_numbers<[1], [1], [0], [0], [0, 0, 1, 0], [], []>} : vector<24x8xbf16>, vector<8x8xbf16>, vector<24x8xf32> -> vector<24x8xf32>
    "tpu.trace_stop"() : () -> ()
    %cst_21 = arith.constant dense<0xFF800000> : vector<24xf32>
    %24 = vector.multi_reduction <maximumf>, %23, %cst_21 [1] : vector<24x8xf32> to vector<24xf32>
    %25 = vector.shape_cast %24 : vector<24xf32> to vector<24x1xf32>
    %26 = arith.maximumf %18, %25 : vector<24x1xf32>
    %27 = arith.subf %18, %26 : vector<24x1xf32>
    %28 = math.exp %27 : vector<24x1xf32>
    %29 = vector.broadcast %26 : vector<24x1xf32> to vector<24x8xf32>
    %30 = arith.subf %23, %29 : vector<24x8xf32>
    %31 = math.exp %30 : vector<24x8xf32>
    %32 = arith.mulf %28, %19 : vector<24x1xf32>
    %cst_22 = arith.constant dense<0.000000e+00> : vector<24xf32>
    %33 = vector.multi_reduction <add>, %31, %cst_22 [1] : vector<24x8xf32> to vector<24xf32>
    %34 = vector.shape_cast %33 : vector<24xf32> to vector<24x1xf32>
    %35 = arith.addf %32, %34 : vector<24x1xf32>
    %36 = vector.broadcast %28 : vector<24x1xf32> to vector<24x8xf32>
    %37 = arith.mulf %36, %20 : vector<24x8xf32>
    %38 = arith.truncf %31 : vector<24x8xf32> to vector<24x8xbf16>
    %cst_23 = arith.constant dense<0.000000e+00> : vector<24x8xf32>
    %39 = tpu.matmul %38, %22, %cst_23 {dimension_numbers = #tpu.dot_dimension_numbers<[1], [0], [0], [1], [0, 0, 1, 1], [], []>} : vector<24x8xbf16>, vector<8x8xbf16>, vector<24x8xf32> -> vector<24x8xf32>
    %40 = arith.addf %37, %39 : vector<24x8xf32>
    %41 = vector.extract_strided_slice %16 {offsets = [8, 0], sizes = [8, 8], strides = [1, 1]} : vector<24x8xbf16> to vector<8x8xbf16>
    %42 = vector.extract_strided_slice %17 {offsets = [8, 0], sizes = [8, 8], strides = [1, 1]} : vector<24x8xbf16> to vector<8x8xbf16>
    "tpu.trace_start"() <{level = 10 : i32, message = "qd,kd->qk"}> : () -> ()
    %cst_24 = arith.constant dense<0.000000e+00> : vector<24x8xf32>
    %43 = tpu.matmul %15, %41, %cst_24 {dimension_numbers = #tpu.dot_dimension_numbers<[1], [1], [0], [0], [0, 0, 1, 0], [], []>} : vector<24x8xbf16>, vector<8x8xbf16>, vector<24x8xf32> -> vector<24x8xf32>
    "tpu.trace_stop"() : () -> ()
    %cst_25 = arith.constant dense<0xFF800000> : vector<24xf32>
    %44 = vector.multi_reduction <maximumf>, %43, %cst_25 [1] : vector<24x8xf32> to vector<24xf32>
    %45 = vector.shape_cast %44 : vector<24xf32> to vector<24x1xf32>
    %46 = arith.maximumf %26, %45 : vector<24x1xf32>
    %47 = arith.subf %26, %46 : vector<24x1xf32>
    %48 = math.exp %47 : vector<24x1xf32>
    %49 = vector.broadcast %46 : vector<24x1xf32> to vector<24x8xf32>
    %50 = arith.subf %43, %49 : vector<24x8xf32>
    %51 = math.exp %50 : vector<24x8xf32>
    %52 = arith.mulf %48, %35 : vector<24x1xf32>
    %cst_26 = arith.constant dense<0.000000e+00> : vector<24xf32>
    %53 = vector.multi_reduction <add>, %51, %cst_26 [1] : vector<24x8xf32> to vector<24xf32>
    %54 = vector.shape_cast %53 : vector<24xf32> to vector<24x1xf32>
    %55 = arith.addf %52, %54 : vector<24x1xf32>
    %56 = vector.broadcast %48 : vector<24x1xf32> to vector<24x8xf32>
    %57 = arith.mulf %56, %40 : vector<24x8xf32>
    %58 = arith.truncf %51 : vector<24x8xf32> to vector<24x8xbf16>
    %cst_27 = arith.constant dense<0.000000e+00> : vector<24x8xf32>
    %59 = tpu.matmul %58, %42, %cst_27 {dimension_numbers = #tpu.dot_dimension_numbers<[1], [0], [0], [1], [0, 0, 1, 1], [], []>} : vector<24x8xbf16>, vector<8x8xbf16>, vector<24x8xf32> -> vector<24x8xf32>
    %60 = arith.addf %57, %59 : vector<24x8xf32>
    %61 = vector.extract_strided_slice %16 {offsets = [16, 0], sizes = [8, 8], strides = [1, 1]} : vector<24x8xbf16> to vector<8x8xbf16>
    %62 = vector.extract_strided_slice %17 {offsets = [16, 0], sizes = [8, 8], strides = [1, 1]} : vector<24x8xbf16> to vector<8x8xbf16>
    "tpu.trace_start"() <{level = 10 : i32, message = "qd,kd->qk"}> : () -> ()
    %cst_28 = arith.constant dense<0.000000e+00> : vector<24x8xf32>
    %63 = tpu.matmul %15, %61, %cst_28 {dimension_numbers = #tpu.dot_dimension_numbers<[1], [1], [0], [0], [0, 0, 1, 0], [], []>} : vector<24x8xbf16>, vector<8x8xbf16>, vector<24x8xf32> -> vector<24x8xf32>
    "tpu.trace_stop"() : () -> ()
    %cst_29 = arith.constant dense<0xFF800000> : vector<24xf32>
    %64 = vector.multi_reduction <maximumf>, %63, %cst_29 [1] : vector<24x8xf32> to vector<24xf32>
    %65 = vector.shape_cast %64 : vector<24xf32> to vector<24x1xf32>
    %66 = arith.maximumf %46, %65 : vector<24x1xf32>
    %67 = arith.subf %46, %66 : vector<24x1xf32>
    %68 = math.exp %67 : vector<24x1xf32>
    %69 = vector.broadcast %66 : vector<24x1xf32> to vector<24x8xf32>
    %70 = arith.subf %63, %69 : vector<24x8xf32>
    %71 = math.exp %70 : vector<24x8xf32>
    %72 = arith.mulf %68, %55 : vector<24x1xf32>
    %cst_30 = arith.constant dense<0.000000e+00> : vector<24xf32>
    %73 = vector.multi_reduction <add>, %71, %cst_30 [1] : vector<24x8xf32> to vector<24xf32>
    %74 = vector.shape_cast %73 : vector<24xf32> to vector<24x1xf32>
    %75 = arith.addf %72, %74 : vector<24x1xf32>
    %76 = vector.broadcast %68 : vector<24x1xf32> to vector<24x8xf32>
    %77 = arith.mulf %76, %60 : vector<24x8xf32>
    %78 = arith.truncf %71 : vector<24x8xf32> to vector<24x8xbf16>
    %cst_31 = arith.constant dense<0.000000e+00> : vector<24x8xf32>
    %79 = tpu.matmul %78, %62, %cst_31 {dimension_numbers = #tpu.dot_dimension_numbers<[1], [0], [0], [1], [0, 0, 1, 1], [], []>} : vector<24x8xbf16>, vector<8x8xbf16>, vector<24x8xf32> -> vector<24x8xf32>
    %80 = arith.addf %77, %79 : vector<24x8xf32>
    %81 = tpu.reciprocal %75 {approx = true} : vector<24x1xf32> -> vector<24x1xf32>
    %82 = vector.broadcast %81 : vector<24x1xf32> to vector<24x8xf32>
    %83 = arith.mulf %80, %82 : vector<24x8xf32>
    %84 = vector.extract_strided_slice %83 {offsets = [0, 0], sizes = [8, 8], strides = [1, 1]} : vector<24x8xf32> to vector<8x8xf32>
    %c0_32 = arith.constant 0 : index
    %c0_33 = arith.constant 0 : index
    %85 = vector.load %arg5[%c0_32, %c0_33] : memref<32x32xf32, #tpu.memory_space<vmem>>, vector<8x32xf32>
    %cst_34 = arith.constant dense<0.000000e+00> : vector<8x32xf32>
    %86 = tpu.matmul %84, %85, %cst_34 {dimension_numbers = #tpu.dot_dimension_numbers<[1], [0], [0], [1], [0, 0, 1, 1], [], []>} : vector<8x8xf32>, vector<8x32xf32>, vector<8x32xf32> -> vector<8x32xf32>
    %87 = arith.addf %13, %86 : vector<8x32xf32>
    %88 = vector.extract_strided_slice %83 {offsets = [8, 0], sizes = [16, 8], strides = [1, 1]} : vector<24x8xf32> to vector<16x8xf32>
    %c0_35 = arith.constant 0 : index
    %c0_36 = arith.constant 0 : index
    %89 = vector.load %arg6[%c0_35, %c0_36] : memref<32x32xf32, #tpu.memory_space<vmem>>, vector<8x32xf32>
    %cst_37 = arith.constant dense<0.000000e+00> : vector<16x32xf32>
    %90 = tpu.matmul %88, %89, %cst_37 {dimension_numbers = #tpu.dot_dimension_numbers<[1], [0], [0], [1], [0, 0, 1, 1], [], []>} : vector<16x8xf32>, vector<8x32xf32>, vector<16x32xf32> -> vector<16x32xf32>
    %91 = arith.addf %14, %90 : vector<16x32xf32>
    %92 = vector.extract_strided_slice %12 {offsets = [0, 8], sizes = [24, 8], strides = [1, 1]} : vector<24x96xbf16> to vector<24x8xbf16>
    %93 = vector.extract_strided_slice %12 {offsets = [0, 40], sizes = [24, 8], strides = [1, 1]} : vector<24x96xbf16> to vector<24x8xbf16>
    %94 = vector.extract_strided_slice %12 {offsets = [0, 72], sizes = [24, 8], strides = [1, 1]} : vector<24x96xbf16> to vector<24x8xbf16>
    %cst_38 = arith.constant 0xFF800000 : f32
    %95 = vector.broadcast %cst_38 : f32 to vector<24x1xf32>
    %cst_39 = arith.constant 0.000000e+00 : f32
    %96 = vector.broadcast %cst_39 : f32 to vector<24x1xf32>
    %cst_40 = arith.constant 0.000000e+00 : f32
    %97 = vector.broadcast %cst_40 : f32 to vector<24x8xf32>
    %98 = vector.extract_strided_slice %93 {offsets = [0, 0], sizes = [8, 8], strides = [1, 1]} : vector<24x8xbf16> to vector<8x8xbf16>
    %99 = vector.extract_strided_slice %94 {offsets = [0, 0], sizes = [8, 8], strides = [1, 1]} : vector<24x8xbf16> to vector<8x8xbf16>
    "tpu.trace_start"() <{level = 10 : i32, message = "qd,kd->qk"}> : () -> ()
    %cst_41 = arith.constant dense<0.000000e+00> : vector<24x8xf32>
    %100 = tpu.matmul %92, %98, %cst_41 {dimension_numbers = #tpu.dot_dimension_numbers<[1], [1], [0], [0], [0, 0, 1, 0], [], []>} : vector<24x8xbf16>, vector<8x8xbf16>, vector<24x8xf32> -> vector<24x8xf32>
    "tpu.trace_stop"() : () -> ()
    %cst_42 = arith.constant dense<0xFF800000> : vector<24xf32>
    %101 = vector.multi_reduction <maximumf>, %100, %cst_42 [1] : vector<24x8xf32> to vector<24xf32>
    %102 = vector.shape_cast %101 : vector<24xf32> to vector<24x1xf32>
    %103 = arith.maximumf %95, %102 : vector<24x1xf32>
    %104 = arith.subf %95, %103 : vector<24x1xf32>
    %105 = math.exp %104 : vector<24x1xf32>
    %106 = vector.broadcast %103 : vector<24x1xf32> to vector<24x8xf32>
    %107 = arith.subf %100, %106 : vector<24x8xf32>
    %108 = math.exp %107 : vector<24x8xf32>
    %109 = arith.mulf %105, %96 : vector<24x1xf32>
    %cst_43 = arith.constant dense<0.000000e+00> : vector<24xf32>
    %110 = vector.multi_reduction <add>, %108, %cst_43 [1] : vector<24x8xf32> to vector<24xf32>
    %111 = vector.shape_cast %110 : vector<24xf32> to vector<24x1xf32>
    %112 = arith.addf %109, %111 : vector<24x1xf32>
    %113 = vector.broadcast %105 : vector<24x1xf32> to vector<24x8xf32>
    %114 = arith.mulf %113, %97 : vector<24x8xf32>
    %115 = arith.truncf %108 : vector<24x8xf32> to vector<24x8xbf16>
    %cst_44 = arith.constant dense<0.000000e+00> : vector<24x8xf32>
    %116 = tpu.matmul %115, %99, %cst_44 {dimension_numbers = #tpu.dot_dimension_numbers<[1], [0], [0], [1], [0, 0, 1, 1], [], []>} : vector<24x8xbf16>, vector<8x8xbf16>, vector<24x8xf32> -> vector<24x8xf32>
    %117 = arith.addf %114, %116 : vector<24x8xf32>
    %118 = vector.extract_strided_slice %93 {offsets = [8, 0], sizes = [8, 8], strides = [1, 1]} : vector<24x8xbf16> to vector<8x8xbf16>
    %119 = vector.extract_strided_slice %94 {offsets = [8, 0], sizes = [8, 8], strides = [1, 1]} : vector<24x8xbf16> to vector<8x8xbf16>
    "tpu.trace_start"() <{level = 10 : i32, message = "qd,kd->qk"}> : () -> ()
    %cst_45 = arith.constant dense<0.000000e+00> : vector<24x8xf32>
    %120 = tpu.matmul %92, %118, %cst_45 {dimension_numbers = #tpu.dot_dimension_numbers<[1], [1], [0], [0], [0, 0, 1, 0], [], []>} : vector<24x8xbf16>, vector<8x8xbf16>, vector<24x8xf32> -> vector<24x8xf32>
    "tpu.trace_stop"() : () -> ()
    %cst_46 = arith.constant dense<0xFF800000> : vector<24xf32>
    %121 = vector.multi_reduction <maximumf>, %120, %cst_46 [1] : vector<24x8xf32> to vector<24xf32>
    %122 = vector.shape_cast %121 : vector<24xf32> to vector<24x1xf32>
    %123 = arith.maximumf %103, %122 : vector<24x1xf32>
    %124 = arith.subf %103, %123 : vector<24x1xf32>
    %125 = math.exp %124 : vector<24x1xf32>
    %126 = vector.broadcast %123 : vector<24x1xf32> to vector<24x8xf32>
    %127 = arith.subf %120, %126 : vector<24x8xf32>
    %128 = math.exp %127 : vector<24x8xf32>
    %129 = arith.mulf %125, %112 : vector<24x1xf32>
    %cst_47 = arith.constant dense<0.000000e+00> : vector<24xf32>
    %130 = vector.multi_reduction <add>, %128, %cst_47 [1] : vector<24x8xf32> to vector<24xf32>
    %131 = vector.shape_cast %130 : vector<24xf32> to vector<24x1xf32>
    %132 = arith.addf %129, %131 : vector<24x1xf32>
    %133 = vector.broadcast %125 : vector<24x1xf32> to vector<24x8xf32>
    %134 = arith.mulf %133, %117 : vector<24x8xf32>
    %135 = arith.truncf %128 : vector<24x8xf32> to vector<24x8xbf16>
    %cst_48 = arith.constant dense<0.000000e+00> : vector<24x8xf32>
    %136 = tpu.matmul %135, %119, %cst_48 {dimension_numbers = #tpu.dot_dimension_numbers<[1], [0], [0], [1], [0, 0, 1, 1], [], []>} : vector<24x8xbf16>, vector<8x8xbf16>, vector<24x8xf32> -> vector<24x8xf32>
    %137 = arith.addf %134, %136 : vector<24x8xf32>
    %138 = vector.extract_strided_slice %93 {offsets = [16, 0], sizes = [8, 8], strides = [1, 1]} : vector<24x8xbf16> to vector<8x8xbf16>
    %139 = vector.extract_strided_slice %94 {offsets = [16, 0], sizes = [8, 8], strides = [1, 1]} : vector<24x8xbf16> to vector<8x8xbf16>
    "tpu.trace_start"() <{level = 10 : i32, message = "qd,kd->qk"}> : () -> ()
    %cst_49 = arith.constant dense<0.000000e+00> : vector<24x8xf32>
    %140 = tpu.matmul %92, %138, %cst_49 {dimension_numbers = #tpu.dot_dimension_numbers<[1], [1], [0], [0], [0, 0, 1, 0], [], []>} : vector<24x8xbf16>, vector<8x8xbf16>, vector<24x8xf32> -> vector<24x8xf32>
    "tpu.trace_stop"() : () -> ()
    %cst_50 = arith.constant dense<0xFF800000> : vector<24xf32>
    %141 = vector.multi_reduction <maximumf>, %140, %cst_50 [1] : vector<24x8xf32> to vector<24xf32>
    %142 = vector.shape_cast %141 : vector<24xf32> to vector<24x1xf32>
    %143 = arith.maximumf %123, %142 : vector<24x1xf32>
    %144 = arith.subf %123, %143 : vector<24x1xf32>
    %145 = math.exp %144 : vector<24x1xf32>
    %146 = vector.broadcast %143 : vector<24x1xf32> to vector<24x8xf32>
    %147 = arith.subf %140, %146 : vector<24x8xf32>
    %148 = math.exp %147 : vector<24x8xf32>
    %149 = arith.mulf %145, %132 : vector<24x1xf32>
    %cst_51 = arith.constant dense<0.000000e+00> : vector<24xf32>
    %150 = vector.multi_reduction <add>, %148, %cst_51 [1] : vector<24x8xf32> to vector<24xf32>
    %151 = vector.shape_cast %150 : vector<24xf32> to vector<24x1xf32>
    %152 = arith.addf %149, %151 : vector<24x1xf32>
    %153 = vector.broadcast %145 : vector<24x1xf32> to vector<24x8xf32>
    %154 = arith.mulf %153, %137 : vector<24x8xf32>
    %155 = arith.truncf %148 : vector<24x8xf32> to vector<24x8xbf16>
    %cst_52 = arith.constant dense<0.000000e+00> : vector<24x8xf32>
    %156 = tpu.matmul %155, %139, %cst_52 {dimension_numbers = #tpu.dot_dimension_numbers<[1], [0], [0], [1], [0, 0, 1, 1], [], []>} : vector<24x8xbf16>, vector<8x8xbf16>, vector<24x8xf32> -> vector<24x8xf32>
    %157 = arith.addf %154, %156 : vector<24x8xf32>
    %158 = tpu.reciprocal %152 {approx = true} : vector<24x1xf32> -> vector<24x1xf32>
    %159 = vector.broadcast %158 : vector<24x1xf32> to vector<24x8xf32>
    %160 = arith.mulf %157, %159 : vector<24x8xf32>
    %161 = vector.extract_strided_slice %160 {offsets = [0, 0], sizes = [8, 8], strides = [1, 1]} : vector<24x8xf32> to vector<8x8xf32>
    %c8_53 = arith.constant 8 : index
    %c0_54 = arith.constant 0 : index
    %162 = vector.load %arg5[%c8_53, %c0_54] : memref<32x32xf32, #tpu.memory_space<vmem>>, vector<8x32xf32>
    %cst_55 = arith.constant dense<0.000000e+00> : vector<8x32xf32>
    %163 = tpu.matmul %161, %162, %cst_55 {dimension_numbers = #tpu.dot_dimension_numbers<[1], [0], [0], [1], [0, 0, 1, 1], [], []>} : vector<8x8xf32>, vector<8x32xf32>, vector<8x32xf32> -> vector<8x32xf32>
    %164 = arith.addf %87, %163 : vector<8x32xf32>
    %165 = vector.extract_strided_slice %160 {offsets = [8, 0], sizes = [16, 8], strides = [1, 1]} : vector<24x8xf32> to vector<16x8xf32>
    %c8_56 = arith.constant 8 : index
    %c0_57 = arith.constant 0 : index
    %166 = vector.load %arg6[%c8_56, %c0_57] : memref<32x32xf32, #tpu.memory_space<vmem>>, vector<8x32xf32>
    %cst_58 = arith.constant dense<0.000000e+00> : vector<16x32xf32>
    %167 = tpu.matmul %165, %166, %cst_58 {dimension_numbers = #tpu.dot_dimension_numbers<[1], [0], [0], [1], [0, 0, 1, 1], [], []>} : vector<16x8xf32>, vector<8x32xf32>, vector<16x32xf32> -> vector<16x32xf32>
    %168 = arith.addf %91, %167 : vector<16x32xf32>
    %169 = vector.extract_strided_slice %12 {offsets = [0, 16], sizes = [24, 8], strides = [1, 1]} : vector<24x96xbf16> to vector<24x8xbf16>
    %170 = vector.extract_strided_slice %12 {offsets = [0, 48], sizes = [24, 8], strides = [1, 1]} : vector<24x96xbf16> to vector<24x8xbf16>
    %171 = vector.extract_strided_slice %12 {offsets = [0, 80], sizes = [24, 8], strides = [1, 1]} : vector<24x96xbf16> to vector<24x8xbf16>
    %cst_59 = arith.constant 0xFF800000 : f32
    %172 = vector.broadcast %cst_59 : f32 to vector<24x1xf32>
    %cst_60 = arith.constant 0.000000e+00 : f32
    %173 = vector.broadcast %cst_60 : f32 to vector<24x1xf32>
    %cst_61 = arith.constant 0.000000e+00 : f32
    %174 = vector.broadcast %cst_61 : f32 to vector<24x8xf32>
    %175 = vector.extract_strided_slice %170 {offsets = [0, 0], sizes = [8, 8], strides = [1, 1]} : vector<24x8xbf16> to vector<8x8xbf16>
    %176 = vector.extract_strided_slice %171 {offsets = [0, 0], sizes = [8, 8], strides = [1, 1]} : vector<24x8xbf16> to vector<8x8xbf16>
    "tpu.trace_start"() <{level = 10 : i32, message = "qd,kd->qk"}> : () -> ()
    %cst_62 = arith.constant dense<0.000000e+00> : vector<24x8xf32>
    %177 = tpu.matmul %169, %175, %cst_62 {dimension_numbers = #tpu.dot_dimension_numbers<[1], [1], [0], [0], [0, 0, 1, 0], [], []>} : vector<24x8xbf16>, vector<8x8xbf16>, vector<24x8xf32> -> vector<24x8xf32>
    "tpu.trace_stop"() : () -> ()
    %cst_63 = arith.constant dense<0xFF800000> : vector<24xf32>
    %178 = vector.multi_reduction <maximumf>, %177, %cst_63 [1] : vector<24x8xf32> to vector<24xf32>
    %179 = vector.shape_cast %178 : vector<24xf32> to vector<24x1xf32>
    %180 = arith.maximumf %172, %179 : vector<24x1xf32>
    %181 = arith.subf %172, %180 : vector<24x1xf32>
    %182 = math.exp %181 : vector<24x1xf32>
    %183 = vector.broadcast %180 : vector<24x1xf32> to vector<24x8xf32>
    %184 = arith.subf %177, %183 : vector<24x8xf32>
    %185 = math.exp %184 : vector<24x8xf32>
    %186 = arith.mulf %182, %173 : vector<24x1xf32>
    %cst_64 = arith.constant dense<0.000000e+00> : vector<24xf32>
    %187 = vector.multi_reduction <add>, %185, %cst_64 [1] : vector<24x8xf32> to vector<24xf32>
    %188 = vector.shape_cast %187 : vector<24xf32> to vector<24x1xf32>
    %189 = arith.addf %186, %188 : vector<24x1xf32>
    %190 = vector.broadcast %182 : vector<24x1xf32> to vector<24x8xf32>
    %191 = arith.mulf %190, %174 : vector<24x8xf32>
    %192 = arith.truncf %185 : vector<24x8xf32> to vector<24x8xbf16>
    %cst_65 = arith.constant dense<0.000000e+00> : vector<24x8xf32>
    %193 = tpu.matmul %192, %176, %cst_65 {dimension_numbers = #tpu.dot_dimension_numbers<[1], [0], [0], [1], [0, 0, 1, 1], [], []>} : vector<24x8xbf16>, vector<8x8xbf16>, vector<24x8xf32> -> vector<24x8xf32>
    %194 = arith.addf %191, %193 : vector<24x8xf32>
    %195 = vector.extract_strided_slice %170 {offsets = [8, 0], sizes = [8, 8], strides = [1, 1]} : vector<24x8xbf16> to vector<8x8xbf16>
    %196 = vector.extract_strided_slice %171 {offsets = [8, 0], sizes = [8, 8], strides = [1, 1]} : vector<24x8xbf16> to vector<8x8xbf16>
    "tpu.trace_start"() <{level = 10 : i32, message = "qd,kd->qk"}> : () -> ()
    %cst_66 = arith.constant dense<0.000000e+00> : vector<24x8xf32>
    %197 = tpu.matmul %169, %195, %cst_66 {dimension_numbers = #tpu.dot_dimension_numbers<[1], [1], [0], [0], [0, 0, 1, 0], [], []>} : vector<24x8xbf16>, vector<8x8xbf16>, vector<24x8xf32> -> vector<24x8xf32>
    "tpu.trace_stop"() : () -> ()
    %cst_67 = arith.constant dense<0xFF800000> : vector<24xf32>
    %198 = vector.multi_reduction <maximumf>, %197, %cst_67 [1] : vector<24x8xf32> to vector<24xf32>
    %199 = vector.shape_cast %198 : vector<24xf32> to vector<24x1xf32>
    %200 = arith.maximumf %180, %199 : vector<24x1xf32>
    %201 = arith.subf %180, %200 : vector<24x1xf32>
    %202 = math.exp %201 : vector<24x1xf32>
    %203 = vector.broadcast %200 : vector<24x1xf32> to vector<24x8xf32>
    %204 = arith.subf %197, %203 : vector<24x8xf32>
    %205 = math.exp %204 : vector<24x8xf32>
    %206 = arith.mulf %202, %189 : vector<24x1xf32>
    %cst_68 = arith.constant dense<0.000000e+00> : vector<24xf32>
    %207 = vector.multi_reduction <add>, %205, %cst_68 [1] : vector<24x8xf32> to vector<24xf32>
    %208 = vector.shape_cast %207 : vector<24xf32> to vector<24x1xf32>
    %209 = arith.addf %206, %208 : vector<24x1xf32>
    %210 = vector.broadcast %202 : vector<24x1xf32> to vector<24x8xf32>
    %211 = arith.mulf %210, %194 : vector<24x8xf32>
    %212 = arith.truncf %205 : vector<24x8xf32> to vector<24x8xbf16>
    %cst_69 = arith.constant dense<0.000000e+00> : vector<24x8xf32>
    %213 = tpu.matmul %212, %196, %cst_69 {dimension_numbers = #tpu.dot_dimension_numbers<[1], [0], [0], [1], [0, 0, 1, 1], [], []>} : vector<24x8xbf16>, vector<8x8xbf16>, vector<24x8xf32> -> vector<24x8xf32>
    %214 = arith.addf %211, %213 : vector<24x8xf32>
    %215 = vector.extract_strided_slice %170 {offsets = [16, 0], sizes = [8, 8], strides = [1, 1]} : vector<24x8xbf16> to vector<8x8xbf16>
    %216 = vector.extract_strided_slice %171 {offsets = [16, 0], sizes = [8, 8], strides = [1, 1]} : vector<24x8xbf16> to vector<8x8xbf16>
    "tpu.trace_start"() <{level = 10 : i32, message = "qd,kd->qk"}> : () -> ()
    %cst_70 = arith.constant dense<0.000000e+00> : vector<24x8xf32>
    %217 = tpu.matmul %169, %215, %cst_70 {dimension_numbers = #tpu.dot_dimension_numbers<[1], [1], [0], [0], [0, 0, 1, 0], [], []>} : vector<24x8xbf16>, vector<8x8xbf16>, vector<24x8xf32> -> vector<24x8xf32>
    "tpu.trace_stop"() : () -> ()
    %cst_71 = arith.constant dense<0xFF800000> : vector<24xf32>
    %218 = vector.multi_reduction <maximumf>, %217, %cst_71 [1] : vector<24x8xf32> to vector<24xf32>
    %219 = vector.shape_cast %218 : vector<24xf32> to vector<24x1xf32>
    %220 = arith.maximumf %200, %219 : vector<24x1xf32>
    %221 = arith.subf %200, %220 : vector<24x1xf32>
    %222 = math.exp %221 : vector<24x1xf32>
    %223 = vector.broadcast %220 : vector<24x1xf32> to vector<24x8xf32>
    %224 = arith.subf %217, %223 : vector<24x8xf32>
    %225 = math.exp %224 : vector<24x8xf32>
    %226 = arith.mulf %222, %209 : vector<24x1xf32>
    %cst_72 = arith.constant dense<0.000000e+00> : vector<24xf32>
    %227 = vector.multi_reduction <add>, %225, %cst_72 [1] : vector<24x8xf32> to vector<24xf32>
    %228 = vector.shape_cast %227 : vector<24xf32> to vector<24x1xf32>
    %229 = arith.addf %226, %228 : vector<24x1xf32>
    %230 = vector.broadcast %222 : vector<24x1xf32> to vector<24x8xf32>
    %231 = arith.mulf %230, %214 : vector<24x8xf32>
    %232 = arith.truncf %225 : vector<24x8xf32> to vector<24x8xbf16>
    %cst_73 = arith.constant dense<0.000000e+00> : vector<24x8xf32>
    %233 = tpu.matmul %232, %216, %cst_73 {dimension_numbers = #tpu.dot_dimension_numbers<[1], [0], [0], [1], [0, 0, 1, 1], [], []>} : vector<24x8xbf16>, vector<8x8xbf16>, vector<24x8xf32> -> vector<24x8xf32>
    %234 = arith.addf %231, %233 : vector<24x8xf32>
    %235 = tpu.reciprocal %229 {approx = true} : vector<24x1xf32> -> vector<24x1xf32>
    %236 = vector.broadcast %235 : vector<24x1xf32> to vector<24x8xf32>
    %237 = arith.mulf %234, %236 : vector<24x8xf32>
    %238 = vector.extract_strided_slice %237 {offsets = [0, 0], sizes = [8, 8], strides = [1, 1]} : vector<24x8xf32> to vector<8x8xf32>
    %c16 = arith.constant 16 : index
    %c0_74 = arith.constant 0 : index
    %239 = vector.load %arg5[%c16, %c0_74] : memref<32x32xf32, #tpu.memory_space<vmem>>, vector<8x32xf32>
    %cst_75 = arith.constant dense<0.000000e+00> : vector<8x32xf32>
    %240 = tpu.matmul %238, %239, %cst_75 {dimension_numbers = #tpu.dot_dimension_numbers<[1], [0], [0], [1], [0, 0, 1, 1], [], []>} : vector<8x8xf32>, vector<8x32xf32>, vector<8x32xf32> -> vector<8x32xf32>
    %241 = arith.addf %164, %240 : vector<8x32xf32>
    %242 = vector.extract_strided_slice %237 {offsets = [8, 0], sizes = [16, 8], strides = [1, 1]} : vector<24x8xf32> to vector<16x8xf32>
    %c16_76 = arith.constant 16 : index
    %c0_77 = arith.constant 0 : index
    %243 = vector.load %arg6[%c16_76, %c0_77] : memref<32x32xf32, #tpu.memory_space<vmem>>, vector<8x32xf32>
    %cst_78 = arith.constant dense<0.000000e+00> : vector<16x32xf32>
    %244 = tpu.matmul %242, %243, %cst_78 {dimension_numbers = #tpu.dot_dimension_numbers<[1], [0], [0], [1], [0, 0, 1, 1], [], []>} : vector<16x8xf32>, vector<8x32xf32>, vector<16x32xf32> -> vector<16x32xf32>
    %245 = arith.addf %168, %244 : vector<16x32xf32>
    %246 = vector.extract_strided_slice %12 {offsets = [0, 24], sizes = [24, 8], strides = [1, 1]} : vector<24x96xbf16> to vector<24x8xbf16>
    %247 = vector.extract_strided_slice %12 {offsets = [0, 56], sizes = [24, 8], strides = [1, 1]} : vector<24x96xbf16> to vector<24x8xbf16>
    %248 = vector.extract_strided_slice %12 {offsets = [0, 88], sizes = [24, 8], strides = [1, 1]} : vector<24x96xbf16> to vector<24x8xbf16>
    %cst_79 = arith.constant 0xFF800000 : f32
    %249 = vector.broadcast %cst_79 : f32 to vector<24x1xf32>
    %cst_80 = arith.constant 0.000000e+00 : f32
    %250 = vector.broadcast %cst_80 : f32 to vector<24x1xf32>
    %cst_81 = arith.constant 0.000000e+00 : f32
    %251 = vector.broadcast %cst_81 : f32 to vector<24x8xf32>
    %252 = vector.extract_strided_slice %247 {offsets = [0, 0], sizes = [8, 8], strides = [1, 1]} : vector<24x8xbf16> to vector<8x8xbf16>
    %253 = vector.extract_strided_slice %248 {offsets = [0, 0], sizes = [8, 8], strides = [1, 1]} : vector<24x8xbf16> to vector<8x8xbf16>
    "tpu.trace_start"() <{level = 10 : i32, message = "qd,kd->qk"}> : () -> ()
    %cst_82 = arith.constant dense<0.000000e+00> : vector<24x8xf32>
    %254 = tpu.matmul %246, %252, %cst_82 {dimension_numbers = #tpu.dot_dimension_numbers<[1], [1], [0], [0], [0, 0, 1, 0], [], []>} : vector<24x8xbf16>, vector<8x8xbf16>, vector<24x8xf32> -> vector<24x8xf32>
    "tpu.trace_stop"() : () -> ()
    %cst_83 = arith.constant dense<0xFF800000> : vector<24xf32>
    %255 = vector.multi_reduction <maximumf>, %254, %cst_83 [1] : vector<24x8xf32> to vector<24xf32>
    %256 = vector.shape_cast %255 : vector<24xf32> to vector<24x1xf32>
    %257 = arith.maximumf %249, %256 : vector<24x1xf32>
    %258 = arith.subf %249, %257 : vector<24x1xf32>
    %259 = math.exp %258 : vector<24x1xf32>
    %260 = vector.broadcast %257 : vector<24x1xf32> to vector<24x8xf32>
    %261 = arith.subf %254, %260 : vector<24x8xf32>
    %262 = math.exp %261 : vector<24x8xf32>
    %263 = arith.mulf %259, %250 : vector<24x1xf32>
    %cst_84 = arith.constant dense<0.000000e+00> : vector<24xf32>
    %264 = vector.multi_reduction <add>, %262, %cst_84 [1] : vector<24x8xf32> to vector<24xf32>
    %265 = vector.shape_cast %264 : vector<24xf32> to vector<24x1xf32>
    %266 = arith.addf %263, %265 : vector<24x1xf32>
    %267 = vector.broadcast %259 : vector<24x1xf32> to vector<24x8xf32>
    %268 = arith.mulf %267, %251 : vector<24x8xf32>
    %269 = arith.truncf %262 : vector<24x8xf32> to vector<24x8xbf16>
    %cst_85 = arith.constant dense<0.000000e+00> : vector<24x8xf32>
    %270 = tpu.matmul %269, %253, %cst_85 {dimension_numbers = #tpu.dot_dimension_numbers<[1], [0], [0], [1], [0, 0, 1, 1], [], []>} : vector<24x8xbf16>, vector<8x8xbf16>, vector<24x8xf32> -> vector<24x8xf32>
    %271 = arith.addf %268, %270 : vector<24x8xf32>
    %272 = vector.extract_strided_slice %247 {offsets = [8, 0], sizes = [8, 8], strides = [1, 1]} : vector<24x8xbf16> to vector<8x8xbf16>
    %273 = vector.extract_strided_slice %248 {offsets = [8, 0], sizes = [8, 8], strides = [1, 1]} : vector<24x8xbf16> to vector<8x8xbf16>
    "tpu.trace_start"() <{level = 10 : i32, message = "qd,kd->qk"}> : () -> ()
    %cst_86 = arith.constant dense<0.000000e+00> : vector<24x8xf32>
    %274 = tpu.matmul %246, %272, %cst_86 {dimension_numbers = #tpu.dot_dimension_numbers<[1], [1], [0], [0], [0, 0, 1, 0], [], []>} : vector<24x8xbf16>, vector<8x8xbf16>, vector<24x8xf32> -> vector<24x8xf32>
    "tpu.trace_stop"() : () -> ()
    %cst_87 = arith.constant dense<0xFF800000> : vector<24xf32>
    %275 = vector.multi_reduction <maximumf>, %274, %cst_87 [1] : vector<24x8xf32> to vector<24xf32>
    %276 = vector.shape_cast %275 : vector<24xf32> to vector<24x1xf32>
    %277 = arith.maximumf %257, %276 : vector<24x1xf32>
    %278 = arith.subf %257, %277 : vector<24x1xf32>
    %279 = math.exp %278 : vector<24x1xf32>
    %280 = vector.broadcast %277 : vector<24x1xf32> to vector<24x8xf32>
    %281 = arith.subf %274, %280 : vector<24x8xf32>
    %282 = math.exp %281 : vector<24x8xf32>
    %283 = arith.mulf %279, %266 : vector<24x1xf32>
    %cst_88 = arith.constant dense<0.000000e+00> : vector<24xf32>
    %284 = vector.multi_reduction <add>, %282, %cst_88 [1] : vector<24x8xf32> to vector<24xf32>
    %285 = vector.shape_cast %284 : vector<24xf32> to vector<24x1xf32>
    %286 = arith.addf %283, %285 : vector<24x1xf32>
    %287 = vector.broadcast %279 : vector<24x1xf32> to vector<24x8xf32>
    %288 = arith.mulf %287, %271 : vector<24x8xf32>
    %289 = arith.truncf %282 : vector<24x8xf32> to vector<24x8xbf16>
    %cst_89 = arith.constant dense<0.000000e+00> : vector<24x8xf32>
    %290 = tpu.matmul %289, %273, %cst_89 {dimension_numbers = #tpu.dot_dimension_numbers<[1], [0], [0], [1], [0, 0, 1, 1], [], []>} : vector<24x8xbf16>, vector<8x8xbf16>, vector<24x8xf32> -> vector<24x8xf32>
    %291 = arith.addf %288, %290 : vector<24x8xf32>
    %292 = vector.extract_strided_slice %247 {offsets = [16, 0], sizes = [8, 8], strides = [1, 1]} : vector<24x8xbf16> to vector<8x8xbf16>
    %293 = vector.extract_strided_slice %248 {offsets = [16, 0], sizes = [8, 8], strides = [1, 1]} : vector<24x8xbf16> to vector<8x8xbf16>
    "tpu.trace_start"() <{level = 10 : i32, message = "qd,kd->qk"}> : () -> ()
    %cst_90 = arith.constant dense<0.000000e+00> : vector<24x8xf32>
    %294 = tpu.matmul %246, %292, %cst_90 {dimension_numbers = #tpu.dot_dimension_numbers<[1], [1], [0], [0], [0, 0, 1, 0], [], []>} : vector<24x8xbf16>, vector<8x8xbf16>, vector<24x8xf32> -> vector<24x8xf32>
    "tpu.trace_stop"() : () -> ()
    %cst_91 = arith.constant dense<0xFF800000> : vector<24xf32>
    %295 = vector.multi_reduction <maximumf>, %294, %cst_91 [1] : vector<24x8xf32> to vector<24xf32>
    %296 = vector.shape_cast %295 : vector<24xf32> to vector<24x1xf32>
    %297 = arith.maximumf %277, %296 : vector<24x1xf32>
    %298 = arith.subf %277, %297 : vector<24x1xf32>
    %299 = math.exp %298 : vector<24x1xf32>
    %300 = vector.broadcast %297 : vector<24x1xf32> to vector<24x8xf32>
    %301 = arith.subf %294, %300 : vector<24x8xf32>
    %302 = math.exp %301 : vector<24x8xf32>
    %303 = arith.mulf %299, %286 : vector<24x1xf32>
    %cst_92 = arith.constant dense<0.000000e+00> : vector<24xf32>
    %304 = vector.multi_reduction <add>, %302, %cst_92 [1] : vector<24x8xf32> to vector<24xf32>
    %305 = vector.shape_cast %304 : vector<24xf32> to vector<24x1xf32>
    %306 = arith.addf %303, %305 : vector<24x1xf32>
    %307 = vector.broadcast %299 : vector<24x1xf32> to vector<24x8xf32>
    %308 = arith.mulf %307, %291 : vector<24x8xf32>
    %309 = arith.truncf %302 : vector<24x8xf32> to vector<24x8xbf16>
    %cst_93 = arith.constant dense<0.000000e+00> : vector<24x8xf32>
    %310 = tpu.matmul %309, %293, %cst_93 {dimension_numbers = #tpu.dot_dimension_numbers<[1], [0], [0], [1], [0, 0, 1, 1], [], []>} : vector<24x8xbf16>, vector<8x8xbf16>, vector<24x8xf32> -> vector<24x8xf32>
    %311 = arith.addf %308, %310 : vector<24x8xf32>
    %312 = tpu.reciprocal %306 {approx = true} : vector<24x1xf32> -> vector<24x1xf32>
    %313 = vector.broadcast %312 : vector<24x1xf32> to vector<24x8xf32>
    %314 = arith.mulf %311, %313 : vector<24x8xf32>
    %315 = vector.extract_strided_slice %314 {offsets = [0, 0], sizes = [8, 8], strides = [1, 1]} : vector<24x8xf32> to vector<8x8xf32>
    %c24 = arith.constant 24 : index
    %c0_94 = arith.constant 0 : index
    %316 = vector.load %arg5[%c24, %c0_94] : memref<32x32xf32, #tpu.memory_space<vmem>>, vector<8x32xf32>
    %cst_95 = arith.constant dense<0.000000e+00> : vector<8x32xf32>
    %317 = tpu.matmul %315, %316, %cst_95 {dimension_numbers = #tpu.dot_dimension_numbers<[1], [0], [0], [1], [0, 0, 1, 1], [], []>} : vector<8x8xf32>, vector<8x32xf32>, vector<8x32xf32> -> vector<8x32xf32>
    %318 = arith.addf %241, %317 : vector<8x32xf32>
    %319 = vector.extract_strided_slice %314 {offsets = [8, 0], sizes = [16, 8], strides = [1, 1]} : vector<24x8xf32> to vector<16x8xf32>
    %c24_96 = arith.constant 24 : index
    %c0_97 = arith.constant 0 : index
    %320 = vector.load %arg6[%c24_96, %c0_97] : memref<32x32xf32, #tpu.memory_space<vmem>>, vector<8x32xf32>
    %cst_98 = arith.constant dense<0.000000e+00> : vector<16x32xf32>
    %321 = tpu.matmul %319, %320, %cst_98 {dimension_numbers = #tpu.dot_dimension_numbers<[1], [0], [0], [1], [0, 0, 1, 1], [], []>} : vector<16x8xf32>, vector<8x32xf32>, vector<16x32xf32> -> vector<16x32xf32>
    %322 = arith.addf %245, %321 : vector<16x32xf32>
    %c0_99 = arith.constant 0 : index
    %c0_100 = arith.constant 0 : index
    %c0_101 = arith.constant 0 : index
    %323 = vector.load %arg11[%c0_99, %c0_100, %c0_101] : memref<1x8x32xf32, #tpu.memory_space<vmem>>, vector<1x8x32xf32>
    %324 = vector.shape_cast %323 : vector<1x8x32xf32> to vector<8x32xf32>
    %325 = vector.shape_cast %318 : vector<8x32xf32> to vector<1x8x32xf32>
    tpu.vector_store %arg11[%c0_99, %c0_100, %c0_101], %325 {strides = array<i32>} : memref<1x8x32xf32, #tpu.memory_space<vmem>>, vector<1x8x32xf32>,
    %c0_102 = arith.constant 0 : index
    %c0_103 = arith.constant 0 : index
    %c0_104 = arith.constant 0 : index
    %326 = vector.load %arg12[%c0_102, %c0_103, %c0_104] : memref<1x16x32xf32, #tpu.memory_space<vmem>>, vector<1x16x32xf32>
    %327 = vector.shape_cast %326 : vector<1x16x32xf32> to vector<16x32xf32>
    %328 = vector.shape_cast %322 : vector<16x32xf32> to vector<1x16x32xf32>
    tpu.vector_store %arg12[%c0_102, %c0_103, %c0_104], %328 {strides = array<i32>} : memref<1x16x32xf32, #tpu.memory_space<vmem>>, vector<1x16x32xf32>,
    return
  }
  func.func @transform_0(%arg0: i32) -> (i32, i32, i32) {
    %c0_i32 = arith.constant 0 : i32
    %c0_i32_0 = arith.constant 0 : i32
    %c0_i32_1 = arith.constant 0 : i32
    return %arg0, %c0_i32, %c0_i32_0 : i32, i32, i32
  }
  func.func @transform_1(%arg0: i32) -> (i32, i32, i32) {
    %c0_i32 = arith.constant 0 : i32
    %c0_i32_0 = arith.constant 0 : i32
    %c0_i32_1 = arith.constant 0 : i32
    return %arg0, %c0_i32, %c0_i32_0 : i32, i32, i32
  }
  func.func @transform_2(%arg0: i32) -> (i32, i32) {
    %c0_i32 = arith.constant 0 : i32
    %c0_i32_0 = arith.constant 0 : i32
    %c0_i32_1 = arith.constant 0 : i32
    return %c0_i32, %c0_i32_0 : i32, i32
  }
  func.func @transform_3(%arg0: i32) -> (i32, i32) {
    %c0_i32 = arith.constant 0 : i32
    %c0_i32_0 = arith.constant 0 : i32
    %c0_i32_1 = arith.constant 0 : i32
    return %c0_i32, %c0_i32_0 : i32, i32
  }
  func.func @transform_4(%arg0: i32) -> (i32, i32) {
    %c0_i32 = arith.constant 0 : i32
    %c0_i32_0 = arith.constant 0 : i32
    %c0_i32_1 = arith.constant 0 : i32
    return %c0_i32, %c0_i32_0 : i32, i32
  }
  func.func @transform_5(%arg0: i32) -> (i32, i32) {
    %c0_i32 = arith.constant 0 : i32
    %c0_i32_0 = arith.constant 0 : i32
    %c0_i32_1 = arith.constant 0 : i32
    return %c0_i32, %c0_i32_0 : i32, i32
  }
  func.func @transform_6(%arg0: i32) -> (i32, i32) {
    %c0_i32 = arith.constant 0 : i32
    %c0_i32_0 = arith.constant 0 : i32
    %c0_i32_1 = arith.constant 0 : i32
    return %c0_i32, %c0_i32_0 : i32, i32
  }
  func.func @transform_7(%arg0: i32) -> (i32, i32) {
    %c0_i32 = arith.constant 0 : i32
    %c0_i32_0 = arith.constant 0 : i32
    %c0_i32_1 = arith.constant 0 : i32
    return %c0_i32, %c0_i32_0 : i32, i32
  }
  func.func @transform_8(%arg0: i32) -> (i32, i32) {
    %c0_i32 = arith.constant 0 : i32
    %c0_i32_0 = arith.constant 0 : i32
    %c0_i32_1 = arith.constant 0 : i32
    return %c0_i32, %c0_i32_0 : i32, i32
  }
  func.func @transform_9(%arg0: i32) -> (i32, i32) {
    %c0_i32 = arith.constant 0 : i32
    %c0_i32_0 = arith.constant 0 : i32
    %c0_i32_1 = arith.constant 0 : i32
    return %c0_i32, %c0_i32_0 : i32, i32
  }
  func.func @transform_10(%arg0: i32) -> (i32, i32, i32) {
    %c0_i32 = arith.constant 0 : i32
    %c0_i32_0 = arith.constant 0 : i32
    %c0_i32_1 = arith.constant 0 : i32
    return %arg0, %c0_i32, %c0_i32_0 : i32, i32, i32
  }
  func.func @transform_11(%arg0: i32) -> (i32, i32, i32) {
    %c0_i32 = arith.constant 0 : i32
    %c0_i32_0 = arith.constant 0 : i32
    %c0_i32_1 = arith.constant 0 : i32
    return %arg0, %c0_i32, %c0_i32_0 : i32, i32, i32
  }
}

</mosaic_0001>

<llo_original>
// kernel: tpu_custom_call.1
$region0: #{tpu_custom_call.1}
  #allocation0 [shape = 'u32[]', space=smem, size = 0x4, offset = 0x4, fixed_abs, tag = 'smem constant byte address 0x4 - core index']
  #allocation1 [shape = 'u32[144,128]{1,0:T(1,128)}', space=vmem, size = 0x12000, scoped, tag = 'internal scratch']
  #allocation2 [shape = 'bf16[24,96]{1,0:T(8,128)(2,1)}', space=vmem, size = 0x1800, scoped, tag = 'scratch operand']
  %s0 = inlined_call_operand.hbm [shape: f32[2,8,32], index: 0, kind: input, shape index: {}]
  %s1 = inlined_call_operand.hbm [shape: f32[2,16,32], index: 1, kind: input, shape index: {}]
  %s2 = inlined_call_operand.hbm [shape: f32[32,96], index: 2, kind: input, shape index: {}]
  %s3 = inlined_call_operand.hbm [shape: f32[32,96], index: 3, kind: input, shape index: {}]
  %s4 = inlined_call_operand.hbm [shape: f32[32,32], index: 4, kind: input, shape index: {}]
  %s5 = inlined_call_operand.hbm [shape: f32[32,32], index: 5, kind: input, shape index: {}]
  %s6 = inlined_call_operand.vmem [shape: f32[1,32], index: 6, kind: input, shape index: {}]
  %s7 = inlined_call_operand.vmem [shape: f32[1,32], index: 7, kind: input, shape index: {}]
  %s8 = inlined_call_operand.vmem [shape: f32[1,32], index: 8, kind: input, shape index: {}]
  %s9 = inlined_call_operand.vmem [shape: f32[1,32], index: 9, kind: input, shape index: {}]
  %s10 = inlined_call_operand.hbm [shape: f32[2,8,32], index: 10, kind: output, shape index: {0}]
  %s11 = inlined_call_operand.hbm [shape: f32[2,16,32], index: 11, kind: output, shape index: {1}]
  %12 = xla_tuple %s10, %s11
  %s13 = sld [smem:[#allocation0]]
  $region105: #{tpu_custom_call.1} parent=0
    _
  %s15 = ssub.s32 1, %s13
  %s16 = scalar_select 0, %s15, %s13
  $region1: #{tpu_custom_call.1} parent=0
    #allocation3 [shape = 'u8[8192]{0}', space=vmem, size = 0x2000, scoped, tag = 'input window, operand 0']
    #allocation4 [shape = 's32[2]{0}', space=sflag, size = 0x8, scoped, tag = 'scoped memory for tpu_custom_call.1']
    #allocation5 [shape = 's32[2]{0}', space=sflag, size = 0x8, scoped, tag = 'scoped memory for tpu_custom_call.1']
    #allocation6 [shape = 'u8[16384]{0}', space=vmem, size = 0x4000, scoped, tag = 'input window, operand 1']
    #allocation7 [shape = 's32[2]{0}', space=sflag, size = 0x8, scoped, tag = 'scoped memory for tpu_custom_call.1']
    #allocation8 [shape = 'u8[16384]{0}', space=vmem, size = 0x4000, scoped, tag = 'input window, operand 2, single buffered']
    #allocation9 [shape = 'u8[16384]{0}', space=vmem, size = 0x4000, scoped, tag = 'input window, operand 3, single buffered']
    #allocation10 [shape = 's32[1]{0}', space=sflag, size = 0x4, scoped, tag = 'scoped memory for tpu_custom_call.1']
    #allocation11 [shape = 'u8[16384]{0}', space=vmem, size = 0x4000, scoped, tag = 'input window, operand 4, single buffered']
    #allocation12 [shape = 'u8[16384]{0}', space=vmem, size = 0x4000, scoped, tag = 'input window, operand 5, single buffered']
    #allocation13 [shape = 's32[1]{0}', space=sflag, size = 0x4, scoped, tag = 'scoped memory for tpu_custom_call.1']
    #allocation14 [shape = 'u8[8192]{0}', space=vmem, size = 0x2000, scoped, tag = 'output window, operand 0']
    #allocation15 [shape = 'u8[16384]{0}', space=vmem, size = 0x4000, scoped, tag = 'output window, operand 1']
    #allocation16 [shape = 's32[2]{0}', space=sflag, size = 0x8, scoped, tag = 'scoped memory for tpu_custom_call.1']
    %17 = vsyncpa [#allocation4], 0
    %s18 = scalar_lea.sflag [#allocation4], 1
    %19 = vsyncpa %s18, 0
    %20 = vsyncpa [#allocation7], 0
    %s21 = scalar_lea.sflag [#allocation7], 1
    %22 = vsyncpa %s21, 0
    %23 = vsyncpa [#allocation10], 0
    %24 = vsyncpa [#allocation13], 0
    %25 = vsyncpa [#allocation5], 0
    %s26 = scalar_lea.sflag [#allocation5], 1
    %27 = vsyncpa %s26, 0
    %28 = vsyncpa [#allocation16], 0
    %s29 = scalar_lea.sflag [#allocation16], 1
    %30 = vsyncpa %s29, 0
    loop: start=0, step=1, limit=4
    $region2: #{tpu_custom_call.1} parent=1 // loop_pre_header
      _
    $region3: #{tpu_custom_call.1} parent=1 // loop_header
      %s32 = sphi 0, %s36
      %p33 = scmp.ge.s32.totalorder %s32, 4
      %s42 = sphi 0, %s44
      %s45 = sphi 0, %s42
      %s46 = sphi 0, %s45
      %s62 = sphi 0, %s46
      %s68 = sphi 0, %s70
      %s71 = sphi 0, %s68
      %s72 = sphi 0, %s71
      %s88 = sphi 0, %s72
      %s92 = sphi 0, %s92
      %s94 = sphi 0, %s92
      %s95 = sphi 0, %s94
      %s109 = sphi 0, %s95
      %s113 = sphi 0, %s113
      %s115 = sphi 0, %s113
      %s116 = sphi 0, %s115
      %s130 = sphi 0, %s116
      %s134 = sphi 0, %s134
      %s136 = sphi 0, %s134
      %s137 = sphi 0, %s136
      %s151 = sphi 0, %s137
      %s155 = sphi 0, %s155
      %s157 = sphi 0, %s155
      %s158 = sphi 0, %s157
      %s172 = sphi 0, %s158
      %s176 = sphi 0, %s176
      %s178 = sphi 0, %s176
      %s179 = sphi 0, %s178
      %s193 = sphi 0, %s179
      %s197 = sphi 0, %s197
      %s199 = sphi 0, %s197
      %s200 = sphi 0, %s199
      %s214 = sphi 0, %s200
      %s218 = sphi 0, %s218
      %s220 = sphi 0, %s218
      %s221 = sphi 0, %s220
      %s235 = sphi 0, %s221
      %s239 = sphi 0, %s239
      %s241 = sphi 0, %s239
      %s242 = sphi 0, %s241
      %s256 = sphi 0, %s242
      %s262 = sphi 0, %s264
      %s265 = sphi 0, %s262
      %s266 = sphi 0, %s265
      %s282 = sphi 0, %s266
      %s288 = sphi 0, %s290
      %s291 = sphi 0, %s288
      %s292 = sphi 0, %s291
      %s308 = sphi 0, %s292
    $region4: #{tpu_custom_call.1} parent=1 // loop_header_branch
      %35 = sbr.rel (%p33) target = $region8
    $region5: #{tpu_custom_call.1} parent=1 // loop_body
      %s37 = ssub.s32 %s32, 1
      %s38 = ssub.s32 %s32, 2
      %s39 = sadd.s32 %s32, 1
      %s40 = ssub.s32 %s32, %s39
      %p41 = scmp.eq.s32.totalorder %s40, 0
      %s43 = sadd.s32 %s42, 1
      %s44 = scalar_select %p41, %s42, %s43
      %p47 = pneg %p41
      %p48 = scmp.eq.s32.totalorder %s32, 1
      %p49 = por %p47, %p48
      %p50 = scmp.ne.s32.totalorder %s42, %s45
      %p51 = scmp.eq.s32.totalorder %s32, 0
      %p52 = por %p50, %p51
      %p53 = scmp.ne.s32.totalorder %s42, %s45
      %p54 = scmp.eq.s32.totalorder %s37, 1
      %p55 = por %p53, %p54
      %p56 = scmp.ne.s32.totalorder %s45, %s46
      %p57 = scmp.eq.s32.totalorder %s37, 0
      %p58 = por %p56, %p57
      %p59 = scmp.ne.s32.totalorder %s45, %s46
      %p60 = scmp.eq.s32.totalorder %s38, 1
      %p61 = por %p59, %p60
      %p63 = scmp.ne.s32.totalorder %s46, %s62
      %p64 = scmp.eq.s32.totalorder %s38, 0
      %p65 = por %p63, %p64
      %s66 = ssub.s32 %s32, %s39
      %p67 = scmp.eq.s32.totalorder %s66, 0
      %s69 = sadd.s32 %s68, 1
      %s70 = scalar_select %p67, %s68, %s69
      %p73 = pneg %p67
      %p74 = scmp.eq.s32.totalorder %s32, 1
      %p75 = por %p73, %p74
      %p76 = scmp.ne.s32.totalorder %s68, %s71
      %p77 = scmp.eq.s32.totalorder %s32, 0
      %p78 = por %p76, %p77
      %p79 = scmp.ne.s32.totalorder %s68, %s71
      %p80 = scmp.eq.s32.totalorder %s37, 1
      %p81 = por %p79, %p80
      %p82 = scmp.ne.s32.totalorder %s71, %s72
      %p83 = scmp.eq.s32.totalorder %s37, 0
      %p84 = por %p82, %p83
      %p85 = scmp.ne.s32.totalorder %s71, %s72
      %p86 = scmp.eq.s32.totalorder %s38, 1
      %p87 = por %p85, %p86
      %p89 = scmp.ne.s32.totalorder %s72, %s88
      %p90 = scmp.eq.s32.totalorder %s38, 0
      %p91 = por %p89, %p90
      %s93 = sadd.s32 %s92, 1
      %p96 = scmp.eq.s32.totalorder %s32, 1
      %p97 = scmp.ne.s32.totalorder %s92, %s94
      %p98 = scmp.eq.s32.totalorder %s32, 0
      %p99 = por %p97, %p98
      %p100 = scmp.ne.s32.totalorder %s92, %s94
      %p101 = scmp.eq.s32.totalorder %s37, 1
      %p102 = por %p100, %p101
      %p103 = scmp.ne.s32.totalorder %s94, %s95
      %p104 = scmp.eq.s32.totalorder %s37, 0
      %p105 = por %p103, %p104
      %p106 = scmp.ne.s32.totalorder %s94, %s95
      %p107 = scmp.eq.s32.totalorder %s38, 1
      %p108 = por %p106, %p107
      %p110 = scmp.ne.s32.totalorder %s95, %s109
      %p111 = scmp.eq.s32.totalorder %s38, 0
      %p112 = por %p110, %p111
      %s114 = sadd.s32 %s113, 1
      %p117 = scmp.eq.s32.totalorder %s32, 1
      %p118 = scmp.ne.s32.totalorder %s113, %s115
      %p119 = scmp.eq.s32.totalorder %s32, 0
      %p120 = por %p118, %p119
      %p121 = scmp.ne.s32.totalorder %s113, %s115
      %p122 = scmp.eq.s32.totalorder %s37, 1
      %p123 = por %p121, %p122
      %p124 = scmp.ne.s32.totalorder %s115, %s116
      %p125 = scmp.eq.s32.totalorder %s37, 0
      %p126 = por %p124, %p125
      %p127 = scmp.ne.s32.totalorder %s115, %s116
      %p128 = scmp.eq.s32.totalorder %s38, 1
      %p129 = por %p127, %p128
      %p131 = scmp.ne.s32.totalorder %s116, %s130
      %p132 = scmp.eq.s32.totalorder %s38, 0
      %p133 = por %p131, %p132
      %s135 = sadd.s32 %s134, 1
      %p138 = scmp.eq.s32.totalorder %s32, 1
      %p139 = scmp.ne.s32.totalorder %s134, %s136
      %p140 = scmp.eq.s32.totalorder %s32, 0
      %p141 = por %p139, %p140
      %p142 = scmp.ne.s32.totalorder %s134, %s136
      %p143 = scmp.eq.s32.totalorder %s37, 1
      %p144 = por %p142, %p143
      %p145 = scmp.ne.s32.totalorder %s136, %s137
      %p146 = scmp.eq.s32.totalorder %s37, 0
      %p147 = por %p145, %p146
      %p148 = scmp.ne.s32.totalorder %s136, %s137
      %p149 = scmp.eq.s32.totalorder %s38, 1
      %p150 = por %p148, %p149
      %p152 = scmp.ne.s32.totalorder %s137, %s151
      %p153 = scmp.eq.s32.totalorder %s38, 0
      %p154 = por %p152, %p153
      %s156 = sadd.s32 %s155, 1
      %p159 = scmp.eq.s32.totalorder %s32, 1
      %p160 = scmp.ne.s32.totalorder %s155, %s157
      %p161 = scmp.eq.s32.totalorder %s32, 0
      %p162 = por %p160, %p161
      %p163 = scmp.ne.s32.totalorder %s155, %s157
      %p164 = scmp.eq.s32.totalorder %s37, 1
      %p165 = por %p163, %p164
      %p166 = scmp.ne.s32.totalorder %s157, %s158
      %p167 = scmp.eq.s32.totalorder %s37, 0
      %p168 = por %p166, %p167
      %p169 = scmp.ne.s32.totalorder %s157, %s158
      %p170 = scmp.eq.s32.totalorder %s38, 1
      %p171 = por %p169, %p170
      %p173 = scmp.ne.s32.totalorder %s158, %s172
      %p174 = scmp.eq.s32.totalorder %s38, 0
      %p175 = por %p173, %p174
      %s177 = sadd.s32 %s176, 1
      %p180 = scmp.eq.s32.totalorder %s32, 1
      %p181 = scmp.ne.s32.totalorder %s176, %s178
      %p182 = scmp.eq.s32.totalorder %s32, 0
      %p183 = por %p181, %p182
      %p184 = scmp.ne.s32.totalorder %s176, %s178
      %p185 = scmp.eq.s32.totalorder %s37, 1
      %p186 = por %p184, %p185
      %p187 = scmp.ne.s32.totalorder %s178, %s179
      %p188 = scmp.eq.s32.totalorder %s37, 0
      %p189 = por %p187, %p188
      %p190 = scmp.ne.s32.totalorder %s178, %s179
      %p191 = scmp.eq.s32.totalorder %s38, 1
      %p192 = por %p190, %p191
      %p194 = scmp.ne.s32.totalorder %s179, %s193
      %p195 = scmp.eq.s32.totalorder %s38, 0
      %p196 = por %p194, %p195
      %s198 = sadd.s32 %s197, 1
      %p201 = scmp.eq.s32.totalorder %s32, 1
      %p202 = scmp.ne.s32.totalorder %s197, %s199
      %p203 = scmp.eq.s32.totalorder %s32, 0
      %p204 = por %p202, %p203
      %p205 = scmp.ne.s32.totalorder %s197, %s199
      %p206 = scmp.eq.s32.totalorder %s37, 1
      %p207 = por %p205, %p206
      %p208 = scmp.ne.s32.totalorder %s199, %s200
      %p209 = scmp.eq.s32.totalorder %s37, 0
      %p210 = por %p208, %p209
      %p211 = scmp.ne.s32.totalorder %s199, %s200
      %p212 = scmp.eq.s32.totalorder %s38, 1
      %p213 = por %p211, %p212
      %p215 = scmp.ne.s32.totalorder %s200, %s214
      %p216 = scmp.eq.s32.totalorder %s38, 0
      %p217 = por %p215, %p216
      %s219 = sadd.s32 %s218, 1
      %p222 = scmp.eq.s32.totalorder %s32, 1
      %p223 = scmp.ne.s32.totalorder %s218, %s220
      %p224 = scmp.eq.s32.totalorder %s32, 0
      %p225 = por %p223, %p224
      %p226 = scmp.ne.s32.totalorder %s218, %s220
      %p227 = scmp.eq.s32.totalorder %s37, 1
      %p228 = por %p226, %p227
      %p229 = scmp.ne.s32.totalorder %s220, %s221
      %p230 = scmp.eq.s32.totalorder %s37, 0
      %p231 = por %p229, %p230
      %p232 = scmp.ne.s32.totalorder %s220, %s221
      %p233 = scmp.eq.s32.totalorder %s38, 1
      %p234 = por %p232, %p233
      %p236 = scmp.ne.s32.totalorder %s221, %s235
      %p237 = scmp.eq.s32.totalorder %s38, 0
      %p238 = por %p236, %p237
      %s240 = sadd.s32 %s239, 1
      %p243 = scmp.eq.s32.totalorder %s32, 1
      %p244 = scmp.ne.s32.totalorder %s239, %s241
      %p245 = scmp.eq.s32.totalorder %s32, 0
      %p246 = por %p244, %p245
      %p247 = scmp.ne.s32.totalorder %s239, %s241
      %p248 = scmp.eq.s32.totalorder %s37, 1
      %p249 = por %p247, %p248
      %p250 = scmp.ne.s32.totalorder %s241, %s242
      %p251 = scmp.eq.s32.totalorder %s37, 0
      %p252 = por %p250, %p251
      %p253 = scmp.ne.s32.totalorder %s241, %s242
      %p254 = scmp.eq.s32.totalorder %s38, 1
      %p255 = por %p253, %p254
      %p257 = scmp.ne.s32.totalorder %s242, %s256
      %p258 = scmp.eq.s32.totalorder %s38, 0
      %p259 = por %p257, %p258
      %s260 = ssub.s32 %s32, %s39
      %p261 = scmp.eq.s32.totalorder %s260, 0
      %s263 = sadd.s32 %s262, 1
      %s264 = scalar_select %p261, %s262, %s263
      %p267 = pneg %p261
      %p268 = scmp.eq.s32.totalorder %s32, 1
      %p269 = por %p267, %p268
      %p270 = scmp.ne.s32.totalorder %s262, %s265
      %p271 = scmp.eq.s32.totalorder %s32, 0
      %p272 = por %p270, %p271
      %p273 = scmp.ne.s32.totalorder %s262, %s265
      %p274 = scmp.eq.s32.totalorder %s37, 1
      %p275 = por %p273, %p274
      %p276 = scmp.ne.s32.totalorder %s265, %s266
      %p277 = scmp.eq.s32.totalorder %s37, 0
      %p278 = por %p276, %p277
      %p279 = scmp.ne.s32.totalorder %s265, %s266
      %p280 = scmp.eq.s32.totalorder %s38, 1
      %p281 = por %p279, %p280
      %p283 = scmp.ne.s32.totalorder %s266, %s282
      %p284 = scmp.eq.s32.totalorder %s38, 0
      %p285 = por %p283, %p284
      %s286 = ssub.s32 %s32, %s39
      %p287 = scmp.eq.s32.totalorder %s286, 0
      %s289 = sadd.s32 %s288, 1
      %s290 = scalar_select %p287, %s288, %s289
      %p293 = pneg %p287
      %p294 = scmp.eq.s32.totalorder %s32, 1
      %p295 = por %p293, %p294
      %p296 = scmp.ne.s32.totalorder %s288, %s291
      %p297 = scmp.eq.s32.totalorder %s32, 0
      %p298 = por %p296, %p297
      %p299 = scmp.ne.s32.totalorder %s288, %s291
      %p300 = scmp.eq.s32.totalorder %s37, 1
      %p301 = por %p299, %p300
      %p302 = scmp.ne.s32.totalorder %s291, %s292
      %p303 = scmp.eq.s32.totalorder %s37, 0
      %p304 = por %p302, %p303
      %p305 = scmp.ne.s32.totalorder %s291, %s292
      %p306 = scmp.eq.s32.totalorder %s38, 1
      %p307 = por %p305, %p306
      %p309 = scmp.ne.s32.totalorder %s292, %s308
      %p310 = scmp.eq.s32.totalorder %s38, 0
      %p311 = por %p309, %p310
      %p312 = scmp.le.s32.totalorder 1, %s32
      %p313 = scmp.lt.s32.totalorder %s32, 3
      %p314 = pnand %p312, %p313
      %p315 = pneg %p314
      // Predicated region
      $region9: #{tpu_custom_call.1} parent=5 // pred_check
        _
      $region10: #{tpu_custom_call.1} parent=5 // pred_check_branch
        %317 = sbr.rel (%p314) target = $region12
      $region11: #{tpu_custom_call.1} parent=5 // pred_region
        %s318 = ssub.s32 %s32, 1
        // Predicated region
        $region13: #{tpu_custom_call.1} parent=11 // pred_check
          %p319 = pneg %p105
        $region14: #{tpu_custom_call.1} parent=11 // pred_check_branch
          %321 = sbr.rel (%p319) target = $region16
        $region15: #{tpu_custom_call.1} parent=11 // pred_region
          %s323 = ssub.s32 512, 512
          %324 = vsyncadd [#allocation7], %s323
          %s325 = sshll.u32 [#allocation8], 4
          %s326 = int_to_ptr.vmem [resolvable:$true] %s325
          %331 = dma.hbm_to_vmem [thread:$0]  %s2, 512, %s326, [#allocation7], 128, 128, 8
        $region16: #{tpu_custom_call.1} parent=11 // pred_fallthru
          _
        // Predicated region
        $region17: #{tpu_custom_call.1} parent=11 // pred_check
          %p332 = pneg %p126
        $region18: #{tpu_custom_call.1} parent=11 // pred_check_branch
          %334 = sbr.rel (%p332) target = $region20
        $region19: #{tpu_custom_call.1} parent=11 // pred_region
          %s336 = ssub.s32 512, 512
          %337 = vsyncadd [#allocation10], %s336
          %s338 = sshll.u32 [#allocation9], 4
          %s339 = int_to_ptr.vmem [resolvable:$true] %s338
          %344 = dma.hbm_to_vmem [thread:$0]  %s3, 512, %s339, [#allocation10], 128, 128, 8
        $region20: #{tpu_custom_call.1} parent=11 // pred_fallthru
          _
        // Predicated region
        $region21: #{tpu_custom_call.1} parent=11 // pred_check
          %p345 = pneg %p147
        $region22: #{tpu_custom_call.1} parent=11 // pred_check_branch
          %347 = sbr.rel (%p345) target = $region24
        $region23: #{tpu_custom_call.1} parent=11 // pred_region
          %s349 = ssub.s32 512, 512
          %350 = vsyncadd [#allocation10], %s349
          %s351 = sshll.u32 [#allocation11], 4
          %s352 = int_to_ptr.vmem [resolvable:$true] %s351
          %357 = dma.hbm_to_vmem [thread:$0]  %s4, 512, %s352, [#allocation10], 128, 128, 8
        $region24: #{tpu_custom_call.1} parent=11 // pred_fallthru
          _
        // Predicated region
        $region25: #{tpu_custom_call.1} parent=11 // pred_check
          %p358 = pneg %p168
        $region26: #{tpu_custom_call.1} parent=11 // pred_check_branch
          %360 = sbr.rel (%p358) target = $region28
        $region27: #{tpu_custom_call.1} parent=11 // pred_region
          %s362 = ssub.s32 512, 512
          %363 = vsyncadd [#allocation13], %s362
          %s364 = sshll.u32 [#allocation12], 4
          %s365 = int_to_ptr.vmem [resolvable:$true] %s364
          %370 = dma.hbm_to_vmem [thread:$0]  %s5, 512, %s365, [#allocation13], 128, 128, 8
        $region28: #{tpu_custom_call.1} parent=11 // pred_fallthru
          _
        // Predicated region
        $region29: #{tpu_custom_call.1} parent=11 // pred_check
          %p371 = pneg %p189
        $region30: #{tpu_custom_call.1} parent=11 // pred_check_branch
          %373 = sbr.rel (%p371) target = $region32
        $region31: #{tpu_custom_call.1} parent=11 // pred_region
          _
        $region32: #{tpu_custom_call.1} parent=11 // pred_fallthru
          _
        // Predicated region
        $region33: #{tpu_custom_call.1} parent=11 // pred_check
          %p374 = pneg %p210
        $region34: #{tpu_custom_call.1} parent=11 // pred_check_branch
          %376 = sbr.rel (%p374) target = $region36
        $region35: #{tpu_custom_call.1} parent=11 // pred_region
          _
        $region36: #{tpu_custom_call.1} parent=11 // pred_fallthru
          _
        // Predicated region
        $region37: #{tpu_custom_call.1} parent=11 // pred_check
          %p377 = pneg %p231
        $region38: #{tpu_custom_call.1} parent=11 // pred_check_branch
          %379 = sbr.rel (%p377) target = $region40
        $region39: #{tpu_custom_call.1} parent=11 // pred_region
          _
        $region40: #{tpu_custom_call.1} parent=11 // pred_fallthru
          _
        // Predicated region
        $region41: #{tpu_custom_call.1} parent=11 // pred_check
          %p380 = pneg %p252
        $region42: #{tpu_custom_call.1} parent=11 // pred_check_branch
          %382 = sbr.rel (%p380) target = $region44
        $region43: #{tpu_custom_call.1} parent=11 // pred_region
          _
        $region44: #{tpu_custom_call.1} parent=11 // pred_fallthru
          _
      $region12: #{tpu_custom_call.1} parent=5 // pred_fallthru
        _
      %p383 = scmp.lt.s32.totalorder %s32, 2
      // Predicated region
      $region45: #{tpu_custom_call.1} parent=5 // pred_check
        %p384 = pneg %p383
      $region46: #{tpu_custom_call.1} parent=5 // pred_check_branch
        %386 = sbr.rel (%p384) target = $region48
      $region47: #{tpu_custom_call.1} parent=5 // pred_region
        // Predicated region
        $region49: #{tpu_custom_call.1} parent=47 // pred_check
          %p387 = pneg %p52
        $region50: #{tpu_custom_call.1} parent=47 // pred_check_branch
          %389 = sbr.rel (%p387) target = $region52
        $region51: #{tpu_custom_call.1} parent=47 // pred_region
          %s390 = sand.u32 %s42, 1
          %s391 = scalar_lea.sflag [#allocation4], %s390
          %s392 = sand.u32 %s42, 1
          %s393 = smul.addr %s392, 8
          %s394 = scalar_lea.vmem [#allocation3], %s393
          %s396 = ssub.s32 128, 128
          %397 = vsyncadd %s391, %s396
          %s398 = smul.addr %s32, 128
          %s399 = scalar_lea.hbm %s0, %s398
          %s401 = sshll.u32 %s394, 4
          %s402 = int_to_ptr.vmem [resolvable:$true] %s401
          %404 = dma.hbm_to_vmem [thread:$0]  %s399, 128, %s402, %s391
        $region52: #{tpu_custom_call.1} parent=47 // pred_fallthru
          _
        // Predicated region
        $region53: #{tpu_custom_call.1} parent=47 // pred_check
          %p405 = pneg %p78
        $region54: #{tpu_custom_call.1} parent=47 // pred_check_branch
          %407 = sbr.rel (%p405) target = $region56
        $region55: #{tpu_custom_call.1} parent=47 // pred_region
          %s408 = sand.u32 %s32, 1
          %s409 = scalar_lea.sflag [#allocation7], %s408
          %s410 = sand.u32 %s68, 1
          %s411 = smul.addr %s410, 16
          %s412 = scalar_lea.vmem [#allocation6], %s411
          %s414 = ssub.s32 256, 256
          %415 = vsyncadd %s409, %s414
          %s416 = smul.addr %s32, 2
          %s417 = smul.addr %s416, 128
          %s418 = scalar_lea.hbm %s1, %s417
          %s419 = sshll.u32 %s412, 4
          %s420 = int_to_ptr.vmem [resolvable:$true] %s419
          %425 = dma.hbm_to_vmem [thread:$0]  %s418, 256, %s420, %s409, 128, 128, 8
        $region56: #{tpu_custom_call.1} parent=47 // pred_fallthru
          _
      $region48: #{tpu_custom_call.1} parent=5 // pred_fallthru
        _
      %p426 = scmp.le.s32.totalorder 1, %s32
      %p427 = scmp.lt.s32.totalorder %s32, 3
      %p428 = pnand %p426, %p427
      %p429 = pneg %p428
      // Predicated region
      $region57: #{tpu_custom_call.1} parent=5 // pred_check
        _
      $region58: #{tpu_custom_call.1} parent=5 // pred_check_branch
        %431 = sbr.rel (%p428) target = $region60
      $region59: #{tpu_custom_call.1} parent=5 // pred_region
        %s432 = ssub.s32 %s32, 1
        %s433 = sand.u32 %s45, 1
        %s434 = scalar_lea.sflag [#allocation4], %s433
        %s435 = sand.u32 %s45, 1
        %s436 = smul.addr %s435, 8
        %s437 = scalar_lea.vmem [#allocation3], %s436
        // Predicated region
        $region61: #{tpu_custom_call.1} parent=59 // pred_check
          %p438 = pneg %p58
        $region62: #{tpu_custom_call.1} parent=59 // pred_check_branch
          %440 = sbr.rel (%p438) target = $region64
        $region63: #{tpu_custom_call.1} parent=59 // pred_region
          %441 = dma.done %s434, 128
        $region64: #{tpu_custom_call.1} parent=59 // pred_fallthru
          _
        %s442 = sand.u32 %s37, 1
        %s443 = scalar_lea.sflag [#allocation7], %s442
        %s444 = sand.u32 %s71, 1
        %s445 = smul.addr %s444, 16
        %s446 = scalar_lea.vmem [#allocation6], %s445
        // Predicated region
        $region65: #{tpu_custom_call.1} parent=59 // pred_check
          %p447 = pneg %p84
        $region66: #{tpu_custom_call.1} parent=59 // pred_check_branch
          %449 = sbr.rel (%p447) target = $region68
        $region67: #{tpu_custom_call.1} parent=59 // pred_region
          %450 = dma.done %s443, 256
        $region68: #{tpu_custom_call.1} parent=59 // pred_fallthru
          _
        // Predicated region
        $region69: #{tpu_custom_call.1} parent=59 // pred_check
          %p451 = pneg %p105
        $region70: #{tpu_custom_call.1} parent=59 // pred_check_branch
          %453 = sbr.rel (%p451) target = $region72
        $region71: #{tpu_custom_call.1} parent=59 // pred_region
          %454 = dma.done [#allocation7], 512
        $region72: #{tpu_custom_call.1} parent=59 // pred_fallthru
          _
        // Predicated region
        $region73: #{tpu_custom_call.1} parent=59 // pred_check
          %p455 = pneg %p126
        $region74: #{tpu_custom_call.1} parent=59 // pred_check_branch
          %457 = sbr.rel (%p455) target = $region76
        $region75: #{tpu_custom_call.1} parent=59 // pred_region
          %458 = dma.done [#allocation10], 512
        $region76: #{tpu_custom_call.1} parent=59 // pred_fallthru
          _
        // Predicated region
        $region77: #{tpu_custom_call.1} parent=59 // pred_check
          %p459 = pneg %p147
        $region78: #{tpu_custom_call.1} parent=59 // pred_check_branch
          %461 = sbr.rel (%p459) target = $region80
        $region79: #{tpu_custom_call.1} parent=59 // pred_region
          %462 = dma.done [#allocation10], 512
        $region80: #{tpu_custom_call.1} parent=59 // pred_fallthru
          _
        // Predicated region
        $region81: #{tpu_custom_call.1} parent=59 // pred_check
          %p463 = pneg %p168
        $region82: #{tpu_custom_call.1} parent=59 // pred_check_branch
          %465 = sbr.rel (%p463) target = $region84
        $region83: #{tpu_custom_call.1} parent=59 // pred_region
          %466 = dma.done [#allocation13], 512
        $region84: #{tpu_custom_call.1} parent=59 // pred_fallthru
          _
        %s467 = sand.u32 %s45, 1
        %s468 = scalar_lea.sflag [#allocation4], %s467
        %s469 = sand.u32 %s45, 1
        %s470 = smul.addr %s469, 8
        %s471 = scalar_lea.vmem [#allocation3], %s470
        %p472 = pneg %p58
        %p473 = pneg %p55
        %s474 = sand.u32 %s37, 1
        %s475 = scalar_lea.sflag [#allocation7], %s474
        %s476 = sand.u32 %s71, 1
        %s477 = smul.addr %s476, 16
        %s478 = scalar_lea.vmem [#allocation6], %s477
        %p479 = pneg %p84
        %p480 = pneg %p81
        %p481 = pneg %p105
        %p482 = pneg %p102
        %p483 = pneg %p126
        %p484 = pneg %p123
        %p485 = pneg %p147
        %p486 = pneg %p144
        %p487 = pneg %p168
        %p488 = pneg %p165
        %p489 = pneg %p189
        %p490 = pneg %p186
        %p491 = pneg %p210
        %p492 = pneg %p207
        %p493 = pneg %p231
        %p494 = pneg %p228
        %p495 = pneg %p252
        %p496 = pneg %p249
        %p497 = pneg %p278
        %p498 = pneg %p275
        %s499 = sand.u32 %s265, 1
        %s500 = scalar_lea.sflag [#allocation5], %s499
        %s501 = sand.u32 %s265, 1
        %s502 = smul.addr %s501, 8
        %s503 = scalar_lea.vmem [#allocation14], %s502
        %p504 = pneg %p304
        %p505 = pneg %p301
        %s506 = sand.u32 %s291, 1
        %s507 = scalar_lea.sflag [#allocation16], %s506
        %s508 = sand.u32 %s291, 1
        %s509 = smul.addr %s508, 16
        %s510 = scalar_lea.vmem [#allocation15], %s509
        %v512 = vld [vmem:[%s437] sm:$0xff]
        %v513 = vld [vmem:[%s446] sm:$0xff]
        %v514 = vld [vmem:[%s446 + $0x8] sm:$0xff]
        %v515 = vld [vmem:[#allocation8] sm:$0xff]
        %v516 = vld [vmem:[#allocation8 + $0x8] sm:$0xff]
        %v517 = vld [vmem:[#allocation8 + $0x10] sm:$0xff]
        %v518 = vld [vmem:[#allocation8 + $0x18] sm:$0xff]
        %vm519 = vcmask 261120
        %v521 = vsel %vm519, %v512, 0
        %523 = vmatprep.subr.mxu0 0.0
        %524 = vmatpush1.msra.mxu0 0.0
        %525 = vmatprep.subr.mxu0 0.0
        %526 = vmatpush1.msra.mxu0 0.0
        %527 = vmatprep.subr.mxu0 0.0
        %528 = vmatpush1.msra.mxu0 0.0
        %529 = vmatprep.subr.mxu0 0.0
        %530 = vmatpush1.msra.mxu0 0.0
        %531 = vmatprep.subr.mxu0 0.0
        %532 = vmatpush1.msra.mxu0 0.0
        %533 = vmatprep.subr.mxu0 0.0
        %534 = vmatpush1.msra.mxu0 0.0
        %535 = vmatprep.subr.mxu0 0.0
        %536 = vmatpush1.msra.mxu0 0.0
        %537 = vmatprep.subr.mxu0 0.0
        %538 = vmatpush1.msra.mxu0 0.0
        %539 = vmatprep.subr.mxu0 0.0
        %540 = vmatpush1.msra.mxu0 0.0
        %541 = vmatprep.subr.mxu0 0.0
        %542 = vmatpush1.msra.mxu0 0.0
        %543 = vmatprep.subr.mxu0 0.0
        %544 = vmatpush1.msra.mxu0 0.0
        %545 = vmatprep.subr.mxu0 0.0
        %546 = vmatpush1.msra.mxu0 0.0
        %547 = vmatprep.subr.mxu0 0.0
        %548 = vmatpush1.msra.mxu0 %v518
        %549 = vmatprep.subr.mxu0 0.0
        %550 = vmatpush1.msra.mxu0 %v517
        %551 = vmatprep.subr.mxu0 0.0
        %552 = vmatpush1.msra.mxu0 %v516
        %553 = vmatprep.subr.mxu0 0.0
        %554 = vmatpush1.msra.mxu0 %v515
        %555 = vmatprep.subr.mxu0 0.0
        %556 = vmatpush2.msra.mxu0 0.0
        %557 = vmatprep.subr.mxu0 0.0
        %558 = vmatpush2.msra.mxu0 0.0
        %559 = vmatprep.subr.mxu0 0.0
        %560 = vmatpush2.msra.mxu0 0.0
        %561 = vmatprep.subr.mxu0 0.0
        %562 = vmatpush2.msra.mxu0 0.0
        %563 = vmatprep.subr.mxu0 0.0
        %564 = vmatpush2.msra.mxu0 0.0
        %565 = vmatprep.subr.mxu0 0.0
        %566 = vmatpush2.msra.mxu0 0.0
        %567 = vmatprep.subr.mxu0 0.0
        %568 = vmatpush2.msra.mxu0 0.0
        %569 = vmatprep.subr.mxu0 0.0
        %570 = vmatpush2.msra.mxu0 0.0
        %571 = vmatprep.subr.mxu0 0.0
        %572 = vmatpush2.msra.mxu0 0.0
        %573 = vmatprep.subr.mxu0 0.0
        %574 = vmatpush2.msra.mxu0 0.0
        %575 = vmatprep.subr.mxu0 0.0
        %576 = vmatpush2.msra.mxu0 0.0
        %577 = vmatprep.subr.mxu0 0.0
        %578 = vmatpush2.msra.mxu0 0.0
        %579 = vmatprep.subr.mxu0 0.0
        %580 = vmatpush2.msra.mxu0 0.0
        %581 = vmatprep.subr.mxu0 0.0
        %582 = vmatpush2.msra.mxu0 0.0
        %583 = vmatprep.subr.mxu0 0.0
        %584 = vmatpush2.msra.mxu0 0.0
        %585 = vmatprep.subr.mxu0 0.0
        %586 = vmatpush2.msra.mxu0 0.0
        %587 = vmatprep.mubr.f32.mxu0 0.0
        %588 = vmatmul.mubr.f32.gmra.mxu0 %v521
        %v589 = vpop.f32.mrf.mxu0
        %v590 = vadd.f32 0.0, %v589
        %v591 = vpop.f32.mrf.mxu0
        %592 = vdwg.mxu0
        %v593 = vld [vmem:[#allocation9] sm:$0xff]
        %v594 = vld [vmem:[#allocation9 + $0x8] sm:$0xff]
        %v595 = vld [vmem:[#allocation9 + $0x10] sm:$0xff]
        %v596 = vld [vmem:[#allocation9 + $0x18] sm:$0xff]
        %v598 = vsel %vm519, %v513, 0
        %v601 = vsel %vm519, %v514, 0
        %603 = vmatprep.subr.mxu0 0.0
        %604 = vmatpush1.msra.mxu0 0.0
        %605 = vmatprep.subr.mxu0 0.0
        %606 = vmatpush1.msra.mxu0 0.0
        %607 = vmatprep.subr.mxu0 0.0
        %608 = vmatpush1.msra.mxu0 0.0
        %609 = vmatprep.subr.mxu0 0.0
        %610 = vmatpush1.msra.mxu0 0.0
        %611 = vmatprep.subr.mxu0 0.0
        %612 = vmatpush1.msra.mxu0 0.0
        %613 = vmatprep.subr.mxu0 0.0
        %614 = vmatpush1.msra.mxu0 0.0
        %615 = vmatprep.subr.mxu0 0.0
        %616 = vmatpush1.msra.mxu0 0.0
        %617 = vmatprep.subr.mxu0 0.0
        %618 = vmatpush1.msra.mxu0 0.0
        %619 = vmatprep.subr.mxu0 0.0
        %620 = vmatpush1.msra.mxu0 0.0
        %621 = vmatprep.subr.mxu0 0.0
        %622 = vmatpush1.msra.mxu0 0.0
        %623 = vmatprep.subr.mxu0 0.0
        %624 = vmatpush1.msra.mxu0 0.0
        %625 = vmatprep.subr.mxu0 0.0
        %626 = vmatpush1.msra.mxu0 0.0
        %627 = vmatprep.subr.mxu0 0.0
        %628 = vmatpush1.msra.mxu0 %v596
        %629 = vmatprep.subr.mxu0 0.0
        %630 = vmatpush1.msra.mxu0 %v595
        %631 = vmatprep.subr.mxu0 0.0
        %632 = vmatpush1.msra.mxu0 %v594
        %633 = vmatprep.subr.mxu0 0.0
        %634 = vmatpush1.msra.mxu0 %v593
        %635 = vmatprep.subr.mxu0 0.0
        %636 = vmatpush2.msra.mxu0 0.0
        %637 = vmatprep.subr.mxu0 0.0
        %638 = vmatpush2.msra.mxu0 0.0
        %639 = vmatprep.subr.mxu0 0.0
        %640 = vmatpush2.msra.mxu0 0.0
        %641 = vmatprep.subr.mxu0 0.0
        %642 = vmatpush2.msra.mxu0 0.0
        %643 = vmatprep.subr.mxu0 0.0
        %644 = vmatpush2.msra.mxu0 0.0
        %645 = vmatprep.subr.mxu0 0.0
        %646 = vmatpush2.msra.mxu0 0.0
        %647 = vmatprep.subr.mxu0 0.0
        %648 = vmatpush2.msra.mxu0 0.0
        %649 = vmatprep.subr.mxu0 0.0
        %650 = vmatpush2.msra.mxu0 0.0
        %651 = vmatprep.subr.mxu0 0.0
        %652 = vmatpush2.msra.mxu0 0.0
        %653 = vmatprep.subr.mxu0 0.0
        %654 = vmatpush2.msra.mxu0 0.0
        %655 = vmatprep.subr.mxu0 0.0
        %656 = vmatpush2.msra.mxu0 0.0
        %657 = vmatprep.subr.mxu0 0.0
        %658 = vmatpush2.msra.mxu0 0.0
        %659 = vmatprep.subr.mxu0 0.0
        %660 = vmatpush2.msra.mxu0 0.0
        %661 = vmatprep.subr.mxu0 0.0
        %662 = vmatpush2.msra.mxu0 0.0
        %663 = vmatprep.subr.mxu0 0.0
        %664 = vmatpush2.msra.mxu0 0.0
        %665 = vmatprep.subr.mxu0 0.0
        %666 = vmatpush2.msra.mxu0 0.0
        %667 = vmatprep.mubr.f32.mxu0 0.0
        %668 = vmatmul.mubr.f32.gmra.mxu0 %v598
        %v669 = vpop.f32.mrf.mxu0
        %v670 = vadd.f32 0.0, %v669
        %v671 = vpop.f32.mrf.mxu0
        %672 = vmatprep.mubr.f32.mxu0 0.0
        %673 = vmatmul.mubr.f32.gmra.mxu0 %v601
        %v674 = vpop.f32.mrf.mxu0
        %v675 = vadd.f32 0.0, %v674
        %v676 = vpop.f32.mrf.mxu0
        %677 = vdwg.mxu0
        %v678 = vpack.c.bf16 %v590, %v590
        %vm679 = vcmask 781312
        %680 = vst.msk [vmem:[#allocation2] sm:$0xf] %vm679, %v678
        %v681 = vpack.c.bf16 %v675, %v670
        %v683 = vunpack.c.l.b16 %v681
        %v684 = vunpack.c.h.b16 %v681
        %v685 = vpack.c.b16 %v683, %v683
        %v686 = vpack.c.b16 %v684, %v684
        %689 = vst.msk [vmem:[#allocation2 + $0x4] sm:$0xf] %vm679, %v685
        %690 = vst.msk [vmem:[#allocation2 + $0x8] sm:$0xf] %vm679, %v686
        %v691 = vld [vmem:[#allocation2] sm:$0xf]
        %v692 = vld [vmem:[#allocation2 + $0x4] sm:$0xf]
        %v693 = vld [vmem:[#allocation2 + $0x8] sm:$0xf]
        %v697 = vunpack.c.l.b16 %v691
        %v698 = vunpack.c.l.b16 %v692
        %v699 = vunpack.c.l.b16 %v693
        %v700 = vpack.c.b16 %v698, %v697
        %v701 = vpack.c.b16 %v699, %v699
        %v702 = vpack.c.b16 %v697, %v697
        %703 = vrot.lane.b32.xlu0 %v702, 96
        %v704 = vpop.permute.xlu0 %703
        %vm705 = vcmask 64512
        %v707 = vsel %vm705, %v700, 0
        %v710 = vsel %vm705, %v701, 0
        %v713 = vsel %vm705, %v704, 0
        %715 = vmatprep.subr.bf16.mxu0 0
        %716 = vmatpush1.bf16.xpose.msra.mxu0 0
        %717 = vmatprep.subr.bf16.mxu0 0
        %718 = vmatpush1.bf16.xpose.msra.mxu0 0
        %719 = vmatprep.subr.bf16.mxu0 0
        %720 = vmatpush1.bf16.xpose.msra.mxu0 0
        %721 = vmatprep.subr.bf16.mxu0 0
        %722 = vmatpush1.bf16.xpose.msra.mxu0 0
        %723 = vmatprep.subr.bf16.mxu0 0
        %724 = vmatpush1.bf16.xpose.msra.mxu0 0
        %725 = vmatprep.subr.bf16.mxu0 0
        %726 = vmatpush1.bf16.xpose.msra.mxu0 0
        %727 = vmatprep.subr.bf16.mxu0 0
        %728 = vmatpush1.bf16.xpose.msra.mxu0 0
        %729 = vmatprep.subr.bf16.mxu0 0
        %730 = vmatpush1.bf16.xpose.msra.mxu0 %v713
        %731 = vmatprep.subr.bf16.mxu0 0
        %732 = vmatpush2.bf16.xpose.msra.mxu0 0
        %733 = vmatprep.subr.bf16.mxu0 0
        %734 = vmatpush2.bf16.xpose.msra.mxu0 0
        %735 = vmatprep.subr.bf16.mxu0 0
        %736 = vmatpush2.bf16.xpose.msra.mxu0 0
        %737 = vmatprep.subr.bf16.mxu0 0
        %738 = vmatpush2.bf16.xpose.msra.mxu0 0
        %739 = vmatprep.subr.bf16.mxu0 0
        %740 = vmatpush2.bf16.xpose.msra.mxu0 0
        %741 = vmatprep.subr.bf16.mxu0 0
        %742 = vmatpush2.bf16.xpose.msra.mxu0 0
        %743 = vmatprep.subr.bf16.mxu0 0
        %744 = vmatpush2.bf16.xpose.msra.mxu0 0
        %745 = vmatprep.subr.bf16.mxu0 0
        %746 = vmatpush2.bf16.xpose.msra.mxu0 0
        %747 = vmatprep.mubr.bf16.mxu0 0
        %748 = vmatmul.mubr.bf16.gmra.mxu0 %v707
        %v749 = vpop.f32.mrf.mxu0
        %v750 = vadd.f32 0.0, %v749
        %v751 = vpop.f32.mrf.mxu0
        %v752 = vpop.f32.mrf.mxu0
        %v753 = vadd.f32 0.0, %v752
        %v754 = vpop.f32.mrf.mxu0
        %755 = vmatprep.mubr.bf16.mxu0 0
        %756 = vmatmul.mubr.bf16.gmra.mxu0 %v710
        %v757 = vpop.f32.mrf.mxu0
        %v758 = vadd.f32 0.0, %v757
        %v759 = vpop.f32.mrf.mxu0
        %v760 = vpop.f32.mrf.mxu0
        %v761 = vpop.f32.mrf.mxu0
        %762 = vdwg.mxu0
        %v763 = vsel %vm705, %v750, -inf
        %764 = vmax.xlane.f32.xlu0 %v763
        %v765 = vpop.xlane.xlu0 %764
        %v766 = vsel %vm705, %v753, -inf
        %767 = vmax.xlane.f32.xlu0 %v766
        %v768 = vpop.xlane.xlu0 %767
        %v769 = vsel %vm705, %v758, -inf
        %770 = vmax.xlane.f32.xlu0 %v769
        %v771 = vpop.xlane.xlu0 %770
        %v772 = vsub.f32 -inf, %v765
        %v773 = vsub.f32 -inf, %v768
        %v774 = vsub.f32 -inf, %v771
        %v775 = vmul.f32 %v772, 1.442695
        %v776 = vpow.pop %v775
        %v777 = vmul.f32 %v773, 1.442695
        %v778 = vpow.pop %v777
        %v779 = vmul.f32 %v774, 1.442695
        %v780 = vpow.pop %v779
        %v781 = vsub.f32 %v750, %v765
        %v782 = vsub.f32 %v753, %v768
        %v783 = vsub.f32 %v758, %v771
        %v784 = vmul.f32 %v781, 1.442695
        %v785 = vpow.pop %v784
        %v786 = vmul.f32 %v782, 1.442695
        %v787 = vpow.pop %v786
        %v788 = vmul.f32 %v783, 1.442695
        %v789 = vpow.pop %v788
        %v790 = vmul.f32 %v776, 0.0
        %v791 = vmul.f32 %v778, 0.0
        %v792 = vmul.f32 %v780, 0.0
        %v793 = vsel %vm705, %v785, 0.0
        %794 = vadd.xlane.f32.xlu0 %v793
        %v795 = vpop.xlane.xlu0 %794
        %v796 = vsel %vm705, %v787, 0.0
        %797 = vadd.xlane.f32.xlu0 %v796
        %v798 = vpop.xlane.xlu0 %797
        %v799 = vsel %vm705, %v789, 0.0
        %800 = vadd.xlane.f32.xlu0 %v799
        %v801 = vpop.xlane.xlu0 %800
        %v802 = vadd.f32 %v790, %v795
        %v803 = vadd.f32 %v791, %v798
        %v804 = vadd.f32 %v792, %v801
        %v805 = vpack.c.bf16 %v787, %v785
        %v806 = vpack.c.bf16 %v789, %v789
        %807 = vrot.lane.b32.xlu0 %v702, 64
        %v808 = vpop.permute.xlu0 %807
        %v810 = vsel %vm705, %v805, 0
        %v813 = vsel %vm705, %v806, 0
        %vm815 = vcmask 1043456
        %v817 = vsel %vm815, %v808, 0
        %819 = vmatprep.subr.bf16.mxu0 0
        %820 = vmatpush1.bf16.msra.mxu0 0
        %821 = vmatprep.subr.bf16.mxu0 0
        %822 = vmatpush1.bf16.msra.mxu0 0
        %823 = vmatprep.subr.bf16.mxu0 0
        %824 = vmatpush1.bf16.msra.mxu0 0
        %825 = vmatprep.subr.bf16.mxu0 0
        %826 = vmatpush1.bf16.msra.mxu0 0
        %827 = vmatprep.subr.bf16.mxu0 0
        %828 = vmatpush1.bf16.msra.mxu0 0
        %829 = vmatprep.subr.bf16.mxu0 0
        %830 = vmatpush1.bf16.msra.mxu0 0
        %831 = vmatprep.subr.bf16.mxu0 0
        %832 = vmatpush1.bf16.msra.mxu0 0
        %833 = vmatprep.subr.bf16.mxu0 0
        %834 = vmatpush1.bf16.msra.mxu0 %v817
        %835 = vmatprep.subr.bf16.mxu0 0
        %836 = vmatpush2.bf16.msra.mxu0 0
        %837 = vmatprep.subr.bf16.mxu0 0
        %838 = vmatpush2.bf16.msra.mxu0 0
        %839 = vmatprep.subr.bf16.mxu0 0
        %840 = vmatpush2.bf16.msra.mxu0 0
        %841 = vmatprep.subr.bf16.mxu0 0
        %842 = vmatpush2.bf16.msra.mxu0 0
        %843 = vmatprep.subr.bf16.mxu0 0
        %844 = vmatpush2.bf16.msra.mxu0 0
        %845 = vmatprep.subr.bf16.mxu0 0
        %846 = vmatpush2.bf16.msra.mxu0 0
        %847 = vmatprep.subr.bf16.mxu0 0
        %848 = vmatpush2.bf16.msra.mxu0 0
        %849 = vmatprep.subr.bf16.mxu0 0
        %850 = vmatpush2.bf16.msra.mxu0 0
        %851 = vmatprep.mubr.bf16.mxu0 0
        %852 = vmatmul.mubr.bf16.gmra.mxu0 %v810
        %v853 = vpop.f32.mrf.mxu0
        %v854 = vadd.f32 0.0, %v853
        %v855 = vpop.f32.mrf.mxu0
        %v856 = vpop.f32.mrf.mxu0
        %v857 = vadd.f32 0.0, %v856
        %v858 = vpop.f32.mrf.mxu0
        %859 = vmatprep.mubr.bf16.mxu0 0
        %860 = vmatmul.mubr.bf16.gmra.mxu0 %v813
        %v861 = vpop.f32.mrf.mxu0
        %v862 = vadd.f32 0.0, %v861
        %v863 = vpop.f32.mrf.mxu0
        %v864 = vpop.f32.mrf.mxu0
        %v865 = vpop.f32.mrf.mxu0
        %866 = vdwg.mxu0
        %v867 = vadd.f32 %v790, %v854
        %v868 = vadd.f32 %v791, %v857
        %v869 = vadd.f32 %v792, %v862
        %v870 = vpack.c.b16 %v698, %v698
        %871 = vrot.lane.b32.xlu0 %v870, 96
        %v872 = vpop.permute.xlu0 %871
        %v874 = vsel %vm705, %v872, 0
        %876 = vmatprep.subr.bf16.mxu0 0
        %877 = vmatpush1.bf16.xpose.msra.mxu0 0
        %878 = vmatprep.subr.bf16.mxu0 0
        %879 = vmatpush1.bf16.xpose.msra.mxu0 0
        %880 = vmatprep.subr.bf16.mxu0 0
        %881 = vmatpush1.bf16.xpose.msra.mxu0 0
        %882 = vmatprep.subr.bf16.mxu0 0
        %883 = vmatpush1.bf16.xpose.msra.mxu0 0
        %884 = vmatprep.subr.bf16.mxu0 0
        %885 = vmatpush1.bf16.xpose.msra.mxu0 0
        %886 = vmatprep.subr.bf16.mxu0 0
        %887 = vmatpush1.bf16.xpose.msra.mxu0 0
        %888 = vmatprep.subr.bf16.mxu0 0
        %889 = vmatpush1.bf16.xpose.msra.mxu0 0
        %890 = vmatprep.subr.bf16.mxu0 0
        %891 = vmatpush1.bf16.xpose.msra.mxu0 %v874
        %892 = vmatprep.subr.bf16.mxu0 0
        %893 = vmatpush2.bf16.xpose.msra.mxu0 0
        %894 = vmatprep.subr.bf16.mxu0 0
        %895 = vmatpush2.bf16.xpose.msra.mxu0 0
        %896 = vmatprep.subr.bf16.mxu0 0
        %897 = vmatpush2.bf16.xpose.msra.mxu0 0
        %898 = vmatprep.subr.bf16.mxu0 0
        %899 = vmatpush2.bf16.xpose.msra.mxu0 0
        %900 = vmatprep.subr.bf16.mxu0 0
        %901 = vmatpush2.bf16.xpose.msra.mxu0 0
        %902 = vmatprep.subr.bf16.mxu0 0
        %903 = vmatpush2.bf16.xpose.msra.mxu0 0
        %904 = vmatprep.subr.bf16.mxu0 0
        %905 = vmatpush2.bf16.xpose.msra.mxu0 0
        %906 = vmatprep.subr.bf16.mxu0 0
        %907 = vmatpush2.bf16.xpose.msra.mxu0 0
        %908 = vmatprep.mubr.bf16.mxu0 0
        %909 = vmatmul.mubr.bf16.gmra.mxu0 %v707
        %v910 = vpop.f32.mrf.mxu0
        %v911 = vadd.f32 0.0, %v910
        %v912 = vpop.f32.mrf.mxu0
        %v913 = vpop.f32.mrf.mxu0
        %v914 = vadd.f32 0.0, %v913
        %v915 = vpop.f32.mrf.mxu0
        %916 = vmatprep.mubr.bf16.mxu0 0
        %917 = vmatmul.mubr.bf16.gmra.mxu0 %v710
        %v918 = vpop.f32.mrf.mxu0
        %v919 = vadd.f32 0.0, %v918
        %v920 = vpop.f32.mrf.mxu0
        %v921 = vpop.f32.mrf.mxu0
        %v922 = vpop.f32.mrf.mxu0
        %923 = vdwg.mxu0
        %v924 = vsel %vm705, %v911, -inf
        %925 = vmax.xlane.f32.xlu0 %v924
        %v926 = vpop.xlane.xlu0 %925
        %v927 = vsel %vm705, %v914, -inf
        %928 = vmax.xlane.f32.xlu0 %v927
        %v929 = vpop.xlane.xlu0 %928
        %v930 = vsel %vm705, %v919, -inf
        %931 = vmax.xlane.f32.xlu0 %v930
        %v932 = vpop.xlane.xlu0 %931
        %v933 = vmax.f32 %v765, %v926
        %v934 = vmax.f32 %v768, %v929
        %v935 = vmax.f32 %v771, %v932
        %v936 = vsub.f32 %v765, %v933
        %v937 = vsub.f32 %v768, %v934
        %v938 = vsub.f32 %v771, %v935
        %v939 = vmul.f32 %v936, 1.442695
        %v940 = vpow.pop %v939
        %v941 = vmul.f32 %v937, 1.442695
        %v942 = vpow.pop %v941
        %v943 = vmul.f32 %v938, 1.442695
        %v944 = vpow.pop %v943
        %v945 = vsub.f32 %v911, %v933
        %v946 = vsub.f32 %v914, %v934
        %v947 = vsub.f32 %v919, %v935
        %v948 = vmul.f32 %v945, 1.442695
        %v949 = vpow.pop %v948
        %v950 = vmul.f32 %v946, 1.442695
        %v951 = vpow.pop %v950
        %v952 = vmul.f32 %v947, 1.442695
        %v953 = vpow.pop %v952
        %v954 = vmul.f32 %v940, %v802
        %v955 = vmul.f32 %v942, %v803
        %v956 = vmul.f32 %v944, %v804
        %v957 = vsel %vm705, %v949, 0.0
        %958 = vadd.xlane.f32.xlu0 %v957
        %v959 = vpop.xlane.xlu0 %958
        %v960 = vsel %vm705, %v951, 0.0
        %961 = vadd.xlane.f32.xlu0 %v960
        %v962 = vpop.xlane.xlu0 %961
        %v963 = vsel %vm705, %v953, 0.0
        %964 = vadd.xlane.f32.xlu0 %v963
        %v965 = vpop.xlane.xlu0 %964
        %v966 = vadd.f32 %v954, %v959
        %v967 = vadd.f32 %v955, %v962
        %v968 = vadd.f32 %v956, %v965
        %v969 = vmul.f32 %v940, %v867
        %v970 = vmul.f32 %v942, %v868
        %v971 = vmul.f32 %v944, %v869
        %v972 = vpack.c.bf16 %v951, %v949
        %v973 = vpack.c.bf16 %v953, %v953
        %974 = vrot.lane.b32.xlu0 %v870, 64
        %v975 = vpop.permute.xlu0 %974
        %v977 = vsel %vm705, %v972, 0
        %v980 = vsel %vm705, %v973, 0
        %v983 = vsel %vm815, %v975, 0
        %985 = vmatprep.subr.bf16.mxu0 0
        %986 = vmatpush1.bf16.msra.mxu0 0
        %987 = vmatprep.subr.bf16.mxu0 0
        %988 = vmatpush1.bf16.msra.mxu0 0
        %989 = vmatprep.subr.bf16.mxu0 0
        %990 = vmatpush1.bf16.msra.mxu0 0
        %991 = vmatprep.subr.bf16.mxu0 0
        %992 = vmatpush1.bf16.msra.mxu0 0
        %993 = vmatprep.subr.bf16.mxu0 0
        %994 = vmatpush1.bf16.msra.mxu0 0
        %995 = vmatprep.subr.bf16.mxu0 0
        %996 = vmatpush1.bf16.msra.mxu0 0
        %997 = vmatprep.subr.bf16.mxu0 0
        %998 = vmatpush1.bf16.msra.mxu0 0
        %999 = vmatprep.subr.bf16.mxu0 0
        %1000 = vmatpush1.bf16.msra.mxu0 %v983
        %1001 = vmatprep.subr.bf16.mxu0 0
        %1002 = vmatpush2.bf16.msra.mxu0 0
        %1003 = vmatprep.subr.bf16.mxu0 0
        %1004 = vmatpush2.bf16.msra.mxu0 0
        %1005 = vmatprep.subr.bf16.mxu0 0
        %1006 = vmatpush2.bf16.msra.mxu0 0
        %1007 = vmatprep.subr.bf16.mxu0 0
        %1008 = vmatpush2.bf16.msra.mxu0 0
        %1009 = vmatprep.subr.bf16.mxu0 0
        %1010 = vmatpush2.bf16.msra.mxu0 0
        %1011 = vmatprep.subr.bf16.mxu0 0
        %1012 = vmatpush2.bf16.msra.mxu0 0
        %1013 = vmatprep.subr.bf16.mxu0 0
        %1014 = vmatpush2.bf16.msra.mxu0 0
        %1015 = vmatprep.subr.bf16.mxu0 0
        %1016 = vmatpush2.bf16.msra.mxu0 0
        %1017 = vmatprep.mubr.bf16.mxu0 0
        %1018 = vmatmul.mubr.bf16.gmra.mxu0 %v977
        %v1019 = vpop.f32.mrf.mxu0
        %v1020 = vadd.f32 0.0, %v1019
        %v1021 = vpop.f32.mrf.mxu0
        %v1022 = vpop.f32.mrf.mxu0
        %v1023 = vadd.f32 0.0, %v1022
        %v1024 = vpop.f32.mrf.mxu0
        %1025 = vmatprep.mubr.bf16.mxu0 0
        %1026 = vmatmul.mubr.bf16.gmra.mxu0 %v980
        %v1027 = vpop.f32.mrf.mxu0
        %v1028 = vadd.f32 0.0, %v1027
        %v1029 = vpop.f32.mrf.mxu0
        %v1030 = vpop.f32.mrf.mxu0
        %v1031 = vpop.f32.mrf.mxu0
        %1032 = vdwg.mxu0
        %v1033 = vadd.f32 %v969, %v1020
        %v1034 = vadd.f32 %v970, %v1023
        %v1035 = vadd.f32 %v971, %v1028
        %1036 = vrot.lane.b32.xlu0 %v701, 96
        %v1037 = vpop.permute.xlu0 %1036
        %v1039 = vsel %vm705, %v1037, 0
        %1041 = vmatprep.subr.bf16.mxu0 0
        %1042 = vmatpush1.bf16.xpose.msra.mxu0 0
        %1043 = vmatprep.subr.bf16.mxu0 0
        %1044 = vmatpush1.bf16.xpose.msra.mxu0 0
        %1045 = vmatprep.subr.bf16.mxu0 0
        %1046 = vmatpush1.bf16.xpose.msra.mxu0 0
        %1047 = vmatprep.subr.bf16.mxu0 0
        %1048 = vmatpush1.bf16.xpose.msra.mxu0 0
        %1049 = vmatprep.subr.bf16.mxu0 0
        %1050 = vmatpush1.bf16.xpose.msra.mxu0 0
        %1051 = vmatprep.subr.bf16.mxu0 0
        %1052 = vmatpush1.bf16.xpose.msra.mxu0 0
        %1053 = vmatprep.subr.bf16.mxu0 0
        %1054 = vmatpush1.bf16.xpose.msra.mxu0 0
        %1055 = vmatprep.subr.bf16.mxu0 0
        %1056 = vmatpush1.bf16.xpose.msra.mxu0 %v1039
        %1057 = vmatprep.subr.bf16.mxu0 0
        %1058 = vmatpush2.bf16.xpose.msra.mxu0 0
        %1059 = vmatprep.subr.bf16.mxu0 0
        %1060 = vmatpush2.bf16.xpose.msra.mxu0 0
        %1061 = vmatprep.subr.bf16.mxu0 0
        %1062 = vmatpush2.bf16.xpose.msra.mxu0 0
        %1063 = vmatprep.subr.bf16.mxu0 0
        %1064 = vmatpush2.bf16.xpose.msra.mxu0 0
        %1065 = vmatprep.subr.bf16.mxu0 0
        %1066 = vmatpush2.bf16.xpose.msra.mxu0 0
        %1067 = vmatprep.subr.bf16.mxu0 0
        %1068 = vmatpush2.bf16.xpose.msra.mxu0 0
        %1069 = vmatprep.subr.bf16.mxu0 0
        %1070 = vmatpush2.bf16.xpose.msra.mxu0 0
        %1071 = vmatprep.subr.bf16.mxu0 0
        %1072 = vmatpush2.bf16.xpose.msra.mxu0 0
        %1073 = vmatprep.mubr.bf16.mxu0 0
        %1074 = vmatmul.mubr.bf16.gmra.mxu0 %v707
        %v1075 = vpop.f32.mrf.mxu0
        %v1076 = vadd.f32 0.0, %v1075
        %v1077 = vpop.f32.mrf.mxu0
        %v1078 = vpop.f32.mrf.mxu0
        %v1079 = vadd.f32 0.0, %v1078
        %v1080 = vpop.f32.mrf.mxu0
        %1081 = vmatprep.mubr.bf16.mxu0 0
        %1082 = vmatmul.mubr.bf16.gmra.mxu0 %v710
        %v1083 = vpop.f32.mrf.mxu0
        %v1084 = vadd.f32 0.0, %v1083
        %v1085 = vpop.f32.mrf.mxu0
        %v1086 = vpop.f32.mrf.mxu0
        %v1087 = vpop.f32.mrf.mxu0
        %1088 = vdwg.mxu0
        %v1089 = vsel %vm705, %v1076, -inf
        %1090 = vmax.xlane.f32.xlu0 %v1089
        %v1091 = vpop.xlane.xlu0 %1090
        %v1092 = vsel %vm705, %v1079, -inf
        %1093 = vmax.xlane.f32.xlu0 %v1092
        %v1094 = vpop.xlane.xlu0 %1093
        %v1095 = vsel %vm705, %v1084, -inf
        %1096 = vmax.xlane.f32.xlu0 %v1095
        %v1097 = vpop.xlane.xlu0 %1096
        %v1098 = vmax.f32 %v933, %v1091
        %v1099 = vmax.f32 %v934, %v1094
        %v1100 = vmax.f32 %v935, %v1097
        %v1101 = vsub.f32 %v933, %v1098
        %v1102 = vsub.f32 %v934, %v1099
        %v1103 = vsub.f32 %v935, %v1100
        %v1104 = vmul.f32 %v1101, 1.442695
        %v1105 = vpow.pop %v1104
        %v1106 = vmul.f32 %v1102, 1.442695
        %v1107 = vpow.pop %v1106
        %v1108 = vmul.f32 %v1103, 1.442695
        %v1109 = vpow.pop %v1108
        %v1110 = vsub.f32 %v1076, %v1098
        %v1111 = vsub.f32 %v1079, %v1099
        %v1112 = vsub.f32 %v1084, %v1100
        %v1113 = vmul.f32 %v1110, 1.442695
        %v1114 = vpow.pop %v1113
        %v1115 = vmul.f32 %v1111, 1.442695
        %v1116 = vpow.pop %v1115
        %v1117 = vmul.f32 %v1112, 1.442695
        %v1118 = vpow.pop %v1117
        %v1119 = vmul.f32 %v1105, %v966
        %v1120 = vmul.f32 %v1107, %v967
        %v1121 = vmul.f32 %v1109, %v968
        %v1122 = vsel %vm705, %v1114, 0.0
        %1123 = vadd.xlane.f32.xlu0 %v1122
        %v1124 = vpop.xlane.xlu0 %1123
        %v1125 = vsel %vm705, %v1116, 0.0
        %1126 = vadd.xlane.f32.xlu0 %v1125
        %v1127 = vpop.xlane.xlu0 %1126
        %v1128 = vsel %vm705, %v1118, 0.0
        %1129 = vadd.xlane.f32.xlu0 %v1128
        %v1130 = vpop.xlane.xlu0 %1129
        %v1131 = vadd.f32 %v1119, %v1124
        %v1132 = vadd.f32 %v1120, %v1127
        %v1133 = vadd.f32 %v1121, %v1130
        %v1134 = vmul.f32 %v1105, %v1033
        %v1135 = vmul.f32 %v1107, %v1034
        %v1136 = vmul.f32 %v1109, %v1035
        %v1137 = vpack.c.bf16 %v1116, %v1114
        %v1138 = vpack.c.bf16 %v1118, %v1118
        %1139 = vrot.lane.b32.xlu0 %v701, 64
        %v1140 = vpop.permute.xlu0 %1139
        %v1142 = vsel %vm705, %v1137, 0
        %v1145 = vsel %vm705, %v1138, 0
        %v1148 = vsel %vm815, %v1140, 0
        %1150 = vmatprep.subr.bf16.mxu0 0
        %1151 = vmatpush1.bf16.msra.mxu0 0
        %1152 = vmatprep.subr.bf16.mxu0 0
        %1153 = vmatpush1.bf16.msra.mxu0 0
        %1154 = vmatprep.subr.bf16.mxu0 0
        %1155 = vmatpush1.bf16.msra.mxu0 0
        %1156 = vmatprep.subr.bf16.mxu0 0
        %1157 = vmatpush1.bf16.msra.mxu0 0
        %1158 = vmatprep.subr.bf16.mxu0 0
        %1159 = vmatpush1.bf16.msra.mxu0 0
        %1160 = vmatprep.subr.bf16.mxu0 0
        %1161 = vmatpush1.bf16.msra.mxu0 0
        %1162 = vmatprep.subr.bf16.mxu0 0
        %1163 = vmatpush1.bf16.msra.mxu0 0
        %1164 = vmatprep.subr.bf16.mxu0 0
        %1165 = vmatpush1.bf16.msra.mxu0 %v1148
        %1166 = vmatprep.subr.bf16.mxu0 0
        %1167 = vmatpush2.bf16.msra.mxu0 0
        %1168 = vmatprep.subr.bf16.mxu0 0
        %1169 = vmatpush2.bf16.msra.mxu0 0
        %1170 = vmatprep.subr.bf16.mxu0 0
        %1171 = vmatpush2.bf16.msra.mxu0 0
        %1172 = vmatprep.subr.bf16.mxu0 0
        %1173 = vmatpush2.bf16.msra.mxu0 0
        %1174 = vmatprep.subr.bf16.mxu0 0
        %1175 = vmatpush2.bf16.msra.mxu0 0
        %1176 = vmatprep.subr.bf16.mxu0 0
        %1177 = vmatpush2.bf16.msra.mxu0 0
        %1178 = vmatprep.subr.bf16.mxu0 0
        %1179 = vmatpush2.bf16.msra.mxu0 0
        %1180 = vmatprep.subr.bf16.mxu0 0
        %1181 = vmatpush2.bf16.msra.mxu0 0
        %1182 = vmatprep.mubr.bf16.mxu0 0
        %1183 = vmatmul.mubr.bf16.gmra.mxu0 %v1142
        %v1184 = vpop.f32.mrf.mxu0
        %v1185 = vadd.f32 0.0, %v1184
        %v1186 = vpop.f32.mrf.mxu0
        %v1187 = vpop.f32.mrf.mxu0
        %v1188 = vadd.f32 0.0, %v1187
        %v1189 = vpop.f32.mrf.mxu0
        %1190 = vmatprep.mubr.bf16.mxu0 0
        %1191 = vmatmul.mubr.bf16.gmra.mxu0 %v1145
        %v1192 = vpop.f32.mrf.mxu0
        %v1193 = vadd.f32 0.0, %v1192
        %v1194 = vpop.f32.mrf.mxu0
        %v1195 = vpop.f32.mrf.mxu0
        %v1196 = vpop.f32.mrf.mxu0
        %1197 = vdwg.mxu0
        %v1198 = vadd.f32 %v1134, %v1185
        %v1199 = vadd.f32 %v1135, %v1188
        %v1200 = vadd.f32 %v1136, %v1193
        %v1201 = vrcp.pop %v1131
        %v1202 = vrcp.pop %v1132
        %v1203 = vrcp.pop %v1133
        %v1204 = vmul.f32 %v1198, %v1201
        %v1205 = vmul.f32 %v1199, %v1202
        %v1206 = vmul.f32 %v1200, %v1203
        %v1207 = vld [vmem:[#allocation11] sm:$0xff]
        %v1208 = vld [vmem:[#allocation12] sm:$0xff]
        %1209 = vrot.lane.b32.xlu0 %v700, 120
        %v1210 = vpop.permute.xlu0 %1209
        %1211 = vrot.lane.b32.xlu0 %v701, 120
        %v1212 = vpop.permute.xlu0 %1211
        %1213 = vrot.lane.b32.xlu0 %v702, 88
        %v1214 = vpop.permute.xlu0 %1213
        %v1216 = vsel %vm705, %v1210, 0
        %v1219 = vsel %vm705, %v1212, 0
        %v1222 = vsel %vm705, %v1214, 0
        %1224 = vmatprep.subr.bf16.mxu0 0
        %1225 = vmatpush1.bf16.xpose.msra.mxu0 0
        %1226 = vmatprep.subr.bf16.mxu0 0
        %1227 = vmatpush1.bf16.xpose.msra.mxu0 0
        %1228 = vmatprep.subr.bf16.mxu0 0
        %1229 = vmatpush1.bf16.xpose.msra.mxu0 0
        %1230 = vmatprep.subr.bf16.mxu0 0
        %1231 = vmatpush1.bf16.xpose.msra.mxu0 0
        %1232 = vmatprep.subr.bf16.mxu0 0
        %1233 = vmatpush1.bf16.xpose.msra.mxu0 0
        %1234 = vmatprep.subr.bf16.mxu0 0
        %1235 = vmatpush1.bf16.xpose.msra.mxu0 0
        %1236 = vmatprep.subr.bf16.mxu0 0
        %1237 = vmatpush1.bf16.xpose.msra.mxu0 0
        %1238 = vmatprep.subr.bf16.mxu0 0
        %1239 = vmatpush1.bf16.xpose.msra.mxu0 %v1222
        %1240 = vmatprep.subr.bf16.mxu0 0
        %1241 = vmatpush2.bf16.xpose.msra.mxu0 0
        %1242 = vmatprep.subr.bf16.mxu0 0
        %1243 = vmatpush2.bf16.xpose.msra.mxu0 0
        %1244 = vmatprep.subr.bf16.mxu0 0
        %1245 = vmatpush2.bf16.xpose.msra.mxu0 0
        %1246 = vmatprep.subr.bf16.mxu0 0
        %1247 = vmatpush2.bf16.xpose.msra.mxu0 0
        %1248 = vmatprep.subr.bf16.mxu0 0
        %1249 = vmatpush2.bf16.xpose.msra.mxu0 0
        %1250 = vmatprep.subr.bf16.mxu0 0
        %1251 = vmatpush2.bf16.xpose.msra.mxu0 0
        %1252 = vmatprep.subr.bf16.mxu0 0
        %1253 = vmatpush2.bf16.xpose.msra.mxu0 0
        %1254 = vmatprep.subr.bf16.mxu0 0
        %1255 = vmatpush2.bf16.xpose.msra.mxu0 0
        %1256 = vmatprep.mubr.bf16.mxu0 0
        %1257 = vmatmul.mubr.bf16.gmra.mxu0 %v1216
        %v1258 = vpop.f32.mrf.mxu0
        %v1259 = vadd.f32 0.0, %v1258
        %v1260 = vpop.f32.mrf.mxu0
        %v1261 = vpop.f32.mrf.mxu0
        %v1262 = vadd.f32 0.0, %v1261
        %v1263 = vpop.f32.mrf.mxu0
        %1264 = vmatprep.mubr.bf16.mxu0 0
        %1265 = vmatmul.mubr.bf16.gmra.mxu0 %v1219
        %v1266 = vpop.f32.mrf.mxu0
        %v1267 = vadd.f32 0.0, %v1266
        %v1268 = vpop.f32.mrf.mxu0
        %v1269 = vpop.f32.mrf.mxu0
        %v1270 = vpop.f32.mrf.mxu0
        %1271 = vdwg.mxu0
        %v1272 = vsel %vm705, %v1259, -inf
        %1273 = vmax.xlane.f32.xlu0 %v1272
        %v1274 = vpop.xlane.xlu0 %1273
        %v1275 = vsel %vm705, %v1262, -inf
        %1276 = vmax.xlane.f32.xlu0 %v1275
        %v1277 = vpop.xlane.xlu0 %1276
        %v1278 = vsel %vm705, %v1267, -inf
        %1279 = vmax.xlane.f32.xlu0 %v1278
        %v1280 = vpop.xlane.xlu0 %1279
        %v1281 = vsub.f32 -inf, %v1274
        %v1282 = vsub.f32 -inf, %v1277
        %v1283 = vsub.f32 -inf, %v1280
        %v1284 = vmul.f32 %v1281, 1.442695
        %v1285 = vpow.pop %v1284
        %v1286 = vmul.f32 %v1282, 1.442695
        %v1287 = vpow.pop %v1286
        %v1288 = vmul.f32 %v1283, 1.442695
        %v1289 = vpow.pop %v1288
        %v1290 = vsub.f32 %v1259, %v1274
        %v1291 = vsub.f32 %v1262, %v1277
        %v1292 = vsub.f32 %v1267, %v1280
        %v1293 = vmul.f32 %v1290, 1.442695
        %v1294 = vpow.pop %v1293
        %v1295 = vmul.f32 %v1291, 1.442695
        %v1296 = vpow.pop %v1295
        %v1297 = vmul.f32 %v1292, 1.442695
        %v1298 = vpow.pop %v1297
        %v1299 = vmul.f32 %v1285, 0.0
        %v1300 = vmul.f32 %v1287, 0.0
        %v1301 = vmul.f32 %v1289, 0.0
        %v1302 = vsel %vm705, %v1294, 0.0
        %1303 = vadd.xlane.f32.xlu0 %v1302
        %v1304 = vpop.xlane.xlu0 %1303
        %v1305 = vsel %vm705, %v1296, 0.0
        %1306 = vadd.xlane.f32.xlu0 %v1305
        %v1307 = vpop.xlane.xlu0 %1306
        %v1308 = vsel %vm705, %v1298, 0.0
        %1309 = vadd.xlane.f32.xlu0 %v1308
        %v1310 = vpop.xlane.xlu0 %1309
        %v1311 = vadd.f32 %v1299, %v1304
        %v1312 = vadd.f32 %v1300, %v1307
        %v1313 = vadd.f32 %v1301, %v1310
        %v1314 = vpack.c.bf16 %v1296, %v1294
        %v1315 = vpack.c.bf16 %v1298, %v1298
        %1316 = vrot.lane.b32.xlu0 %v702, 56
        %v1317 = vpop.permute.xlu0 %1316
        %v1319 = vsel %vm705, %v1314, 0
        %v1322 = vsel %vm705, %v1315, 0
        %v1325 = vsel %vm815, %v1317, 0
        %1327 = vmatprep.subr.bf16.mxu0 0
        %1328 = vmatpush1.bf16.msra.mxu0 0
        %1329 = vmatprep.subr.bf16.mxu0 0
        %1330 = vmatpush1.bf16.msra.mxu0 0
        %1331 = vmatprep.subr.bf16.mxu0 0
        %1332 = vmatpush1.bf16.msra.mxu0 0
        %1333 = vmatprep.subr.bf16.mxu0 0
        %1334 = vmatpush1.bf16.msra.mxu0 0
        %1335 = vmatprep.subr.bf16.mxu0 0
        %1336 = vmatpush1.bf16.msra.mxu0 0
        %1337 = vmatprep.subr.bf16.mxu0 0
        %1338 = vmatpush1.bf16.msra.mxu0 0
        %1339 = vmatprep.subr.bf16.mxu0 0
        %1340 = vmatpush1.bf16.msra.mxu0 0
        %1341 = vmatprep.subr.bf16.mxu0 0
        %1342 = vmatpush1.bf16.msra.mxu0 %v1325
        %1343 = vmatprep.subr.bf16.mxu0 0
        %1344 = vmatpush2.bf16.msra.mxu0 0
        %1345 = vmatprep.subr.bf16.mxu0 0
        %1346 = vmatpush2.bf16.msra.mxu0 0
        %1347 = vmatprep.subr.bf16.mxu0 0
        %1348 = vmatpush2.bf16.msra.mxu0 0
        %1349 = vmatprep.subr.bf16.mxu0 0
        %1350 = vmatpush2.bf16.msra.mxu0 0
        %1351 = vmatprep.subr.bf16.mxu0 0
        %1352 = vmatpush2.bf16.msra.mxu0 0
        %1353 = vmatprep.subr.bf16.mxu0 0
        %1354 = vmatpush2.bf16.msra.mxu0 0
        %1355 = vmatprep.subr.bf16.mxu0 0
        %1356 = vmatpush2.bf16.msra.mxu0 0
        %1357 = vmatprep.subr.bf16.mxu0 0
        %1358 = vmatpush2.bf16.msra.mxu0 0
        %1359 = vmatprep.mubr.bf16.mxu0 0
        %1360 = vmatmul.mubr.bf16.gmra.mxu0 %v1319
        %v1361 = vpop.f32.mrf.mxu0
        %v1362 = vadd.f32 0.0, %v1361
        %v1363 = vpop.f32.mrf.mxu0
        %v1364 = vpop.f32.mrf.mxu0
        %v1365 = vadd.f32 0.0, %v1364
        %v1366 = vpop.f32.mrf.mxu0
        %1367 = vmatprep.mubr.bf16.mxu0 0
        %1368 = vmatmul.mubr.bf16.gmra.mxu0 %v1322
        %v1369 = vpop.f32.mrf.mxu0
        %v1370 = vadd.f32 0.0, %v1369
        %v1371 = vpop.f32.mrf.mxu0
        %v1372 = vpop.f32.mrf.mxu0
        %v1373 = vpop.f32.mrf.mxu0
        %1374 = vdwg.mxu0
        %v1375 = vadd.f32 %v1299, %v1362
        %v1376 = vadd.f32 %v1300, %v1365
        %v1377 = vadd.f32 %v1301, %v1370
        %1378 = vrot.lane.b32.xlu0 %v870, 88
        %v1379 = vpop.permute.xlu0 %1378
        %v1381 = vsel %vm705, %v1379, 0
        %1383 = vmatprep.subr.bf16.mxu0 0
        %1384 = vmatpush1.bf16.xpose.msra.mxu0 0
        %1385 = vmatprep.subr.bf16.mxu0 0
        %1386 = vmatpush1.bf16.xpose.msra.mxu0 0
        %1387 = vmatprep.subr.bf16.mxu0 0
        %1388 = vmatpush1.bf16.xpose.msra.mxu0 0
        %1389 = vmatprep.subr.bf16.mxu0 0
        %1390 = vmatpush1.bf16.xpose.msra.mxu0 0
        %1391 = vmatprep.subr.bf16.mxu0 0
        %1392 = vmatpush1.bf16.xpose.msra.mxu0 0
        %1393 = vmatprep.subr.bf16.mxu0 0
        %1394 = vmatpush1.bf16.xpose.msra.mxu0 0
        %1395 = vmatprep.subr.bf16.mxu0 0
        %1396 = vmatpush1.bf16.xpose.msra.mxu0 0
        %1397 = vmatprep.subr.bf16.mxu0 0
        %1398 = vmatpush1.bf16.xpose.msra.mxu0 %v1381
        %1399 = vmatprep.subr.bf16.mxu0 0
        %1400 = vmatpush2.bf16.xpose.msra.mxu0 0
        %1401 = vmatprep.subr.bf16.mxu0 0
        %1402 = vmatpush2.bf16.xpose.msra.mxu0 0
        %1403 = vmatprep.subr.bf16.mxu0 0
        %1404 = vmatpush2.bf16.xpose.msra.mxu0 0
        %1405 = vmatprep.subr.bf16.mxu0 0
        %1406 = vmatpush2.bf16.xpose.msra.mxu0 0
        %1407 = vmatprep.subr.bf16.mxu0 0
        %1408 = vmatpush2.bf16.xpose.msra.mxu0 0
        %1409 = vmatprep.subr.bf16.mxu0 0
        %1410 = vmatpush2.bf16.xpose.msra.mxu0 0
        %1411 = vmatprep.subr.bf16.mxu0 0
        %1412 = vmatpush2.bf16.xpose.msra.mxu0 0
        %1413 = vmatprep.subr.bf16.mxu0 0
        %1414 = vmatpush2.bf16.xpose.msra.mxu0 0
        %1415 = vmatprep.mubr.bf16.mxu0 0
        %1416 = vmatmul.mubr.bf16.gmra.mxu0 %v1216
        %v1417 = vpop.f32.mrf.mxu0
        %v1418 = vadd.f32 0.0, %v1417
        %v1419 = vpop.f32.mrf.mxu0
        %v1420 = vpop.f32.mrf.mxu0
        %v1421 = vadd.f32 0.0, %v1420
        %v1422 = vpop.f32.mrf.mxu0
        %1423 = vmatprep.mubr.bf16.mxu0 0
        %1424 = vmatmul.mubr.bf16.gmra.mxu0 %v1219
        %v1425 = vpop.f32.mrf.mxu0
        %v1426 = vadd.f32 0.0, %v1425
        %v1427 = vpop.f32.mrf.mxu0
        %v1428 = vpop.f32.mrf.mxu0
        %v1429 = vpop.f32.mrf.mxu0
        %1430 = vdwg.mxu0
        %v1431 = vsel %vm705, %v1418, -inf
        %1432 = vmax.xlane.f32.xlu0 %v1431
        %v1433 = vpop.xlane.xlu0 %1432
        %v1434 = vsel %vm705, %v1421, -inf
        %1435 = vmax.xlane.f32.xlu0 %v1434
        %v1436 = vpop.xlane.xlu0 %1435
        %v1437 = vsel %vm705, %v1426, -inf
        %1438 = vmax.xlane.f32.xlu0 %v1437
        %v1439 = vpop.xlane.xlu0 %1438
        %v1440 = vmax.f32 %v1274, %v1433
        %v1441 = vmax.f32 %v1277, %v1436
        %v1442 = vmax.f32 %v1280, %v1439
        %v1443 = vsub.f32 %v1274, %v1440
        %v1444 = vsub.f32 %v1277, %v1441
        %v1445 = vsub.f32 %v1280, %v1442
        %v1446 = vmul.f32 %v1443, 1.442695
        %v1447 = vpow.pop %v1446
        %v1448 = vmul.f32 %v1444, 1.442695
        %v1449 = vpow.pop %v1448
        %v1450 = vmul.f32 %v1445, 1.442695
        %v1451 = vpow.pop %v1450
        %v1452 = vsub.f32 %v1418, %v1440
        %v1453 = vsub.f32 %v1421, %v1441
        %v1454 = vsub.f32 %v1426, %v1442
        %v1455 = vmul.f32 %v1452, 1.442695
        %v1456 = vpow.pop %v1455
        %v1457 = vmul.f32 %v1453, 1.442695
        %v1458 = vpow.pop %v1457
        %v1459 = vmul.f32 %v1454, 1.442695
        %v1460 = vpow.pop %v1459
        %v1461 = vmul.f32 %v1447, %v1311
        %v1462 = vmul.f32 %v1449, %v1312
        %v1463 = vmul.f32 %v1451, %v1313
        %v1464 = vsel %vm705, %v1456, 0.0
        %1465 = vadd.xlane.f32.xlu0 %v1464
        %v1466 = vpop.xlane.xlu0 %1465
        %v1467 = vsel %vm705, %v1458, 0.0
        %1468 = vadd.xlane.f32.xlu0 %v1467
        %v1469 = vpop.xlane.xlu0 %1468
        %v1470 = vsel %vm705, %v1460, 0.0
        %1471 = vadd.xlane.f32.xlu0 %v1470
        %v1472 = vpop.xlane.xlu0 %1471
        %v1473 = vadd.f32 %v1461, %v1466
        %v1474 = vadd.f32 %v1462, %v1469
        %v1475 = vadd.f32 %v1463, %v1472
        %v1476 = vmul.f32 %v1447, %v1375
        %v1477 = vmul.f32 %v1449, %v1376
        %v1478 = vmul.f32 %v1451, %v1377
        %v1479 = vpack.c.bf16 %v1458, %v1456
        %v1480 = vpack.c.bf16 %v1460, %v1460
        %1481 = vrot.lane.b32.xlu0 %v870, 56
        %v1482 = vpop.permute.xlu0 %1481
        %v1484 = vsel %vm705, %v1479, 0
        %v1487 = vsel %vm705, %v1480, 0
        %v1490 = vsel %vm815, %v1482, 0
        %1492 = vmatprep.subr.bf16.mxu0 0
        %1493 = vmatpush1.bf16.msra.mxu0 0
        %1494 = vmatprep.subr.bf16.mxu0 0
        %1495 = vmatpush1.bf16.msra.mxu0 0
        %1496 = vmatprep.subr.bf16.mxu0 0
        %1497 = vmatpush1.bf16.msra.mxu0 0
        %1498 = vmatprep.subr.bf16.mxu0 0
        %1499 = vmatpush1.bf16.msra.mxu0 0
        %1500 = vmatprep.subr.bf16.mxu0 0
        %1501 = vmatpush1.bf16.msra.mxu0 0
        %1502 = vmatprep.subr.bf16.mxu0 0
        %1503 = vmatpush1.bf16.msra.mxu0 0
        %1504 = vmatprep.subr.bf16.mxu0 0
        %1505 = vmatpush1.bf16.msra.mxu0 0
        %1506 = vmatprep.subr.bf16.mxu0 0
        %1507 = vmatpush1.bf16.msra.mxu0 %v1490
        %1508 = vmatprep.subr.bf16.mxu0 0
        %1509 = vmatpush2.bf16.msra.mxu0 0
        %1510 = vmatprep.subr.bf16.mxu0 0
        %1511 = vmatpush2.bf16.msra.mxu0 0
        %1512 = vmatprep.subr.bf16.mxu0 0
        %1513 = vmatpush2.bf16.msra.mxu0 0
        %1514 = vmatprep.subr.bf16.mxu0 0
        %1515 = vmatpush2.bf16.msra.mxu0 0
        %1516 = vmatprep.subr.bf16.mxu0 0
        %1517 = vmatpush2.bf16.msra.mxu0 0
        %1518 = vmatprep.subr.bf16.mxu0 0
        %1519 = vmatpush2.bf16.msra.mxu0 0
        %1520 = vmatprep.subr.bf16.mxu0 0
        %1521 = vmatpush2.bf16.msra.mxu0 0
        %1522 = vmatprep.subr.bf16.mxu0 0
        %1523 = vmatpush2.bf16.msra.mxu0 0
        %1524 = vmatprep.mubr.bf16.mxu0 0
        %1525 = vmatmul.mubr.bf16.gmra.mxu0 %v1484
        %v1526 = vpop.f32.mrf.mxu0
        %v1527 = vadd.f32 0.0, %v1526
        %v1528 = vpop.f32.mrf.mxu0
        %v1529 = vpop.f32.mrf.mxu0
        %v1530 = vadd.f32 0.0, %v1529
        %v1531 = vpop.f32.mrf.mxu0
        %1532 = vmatprep.mubr.bf16.mxu0 0
        %1533 = vmatmul.mubr.bf16.gmra.mxu0 %v1487
        %v1534 = vpop.f32.mrf.mxu0
        %v1535 = vadd.f32 0.0, %v1534
        %v1536 = vpop.f32.mrf.mxu0
        %v1537 = vpop.f32.mrf.mxu0
        %v1538 = vpop.f32.mrf.mxu0
        %1539 = vdwg.mxu0
        %v1540 = vadd.f32 %v1476, %v1527
        %v1541 = vadd.f32 %v1477, %v1530
        %v1542 = vadd.f32 %v1478, %v1535
        %1543 = vrot.lane.b32.xlu0 %v701, 88
        %v1544 = vpop.permute.xlu0 %1543
        %v1546 = vsel %vm705, %v1544, 0
        %1548 = vmatprep.subr.bf16.mxu0 0
        %1549 = vmatpush1.bf16.xpose.msra.mxu0 0
        %1550 = vmatprep.subr.bf16.mxu0 0
        %1551 = vmatpush1.bf16.xpose.msra.mxu0 0
        %1552 = vmatprep.subr.bf16.mxu0 0
        %1553 = vmatpush1.bf16.xpose.msra.mxu0 0
        %1554 = vmatprep.subr.bf16.mxu0 0
        %1555 = vmatpush1.bf16.xpose.msra.mxu0 0
        %1556 = vmatprep.subr.bf16.mxu0 0
        %1557 = vmatpush1.bf16.xpose.msra.mxu0 0
        %1558 = vmatprep.subr.bf16.mxu0 0
        %1559 = vmatpush1.bf16.xpose.msra.mxu0 0
        %1560 = vmatprep.subr.bf16.mxu0 0
        %1561 = vmatpush1.bf16.xpose.msra.mxu0 0
        %1562 = vmatprep.subr.bf16.mxu0 0
        %1563 = vmatpush1.bf16.xpose.msra.mxu0 %v1546
        %1564 = vmatprep.subr.bf16.mxu0 0
        %1565 = vmatpush2.bf16.xpose.msra.mxu0 0
        %1566 = vmatprep.subr.bf16.mxu0 0
        %1567 = vmatpush2.bf16.xpose.msra.mxu0 0
        %1568 = vmatprep.subr.bf16.mxu0 0
        %1569 = vmatpush2.bf16.xpose.msra.mxu0 0
        %1570 = vmatprep.subr.bf16.mxu0 0
        %1571 = vmatpush2.bf16.xpose.msra.mxu0 0
        %1572 = vmatprep.subr.bf16.mxu0 0
        %1573 = vmatpush2.bf16.xpose.msra.mxu0 0
        %1574 = vmatprep.subr.bf16.mxu0 0
        %1575 = vmatpush2.bf16.xpose.msra.mxu0 0
        %1576 = vmatprep.subr.bf16.mxu0 0
        %1577 = vmatpush2.bf16.xpose.msra.mxu0 0
        %1578 = vmatprep.subr.bf16.mxu0 0
        %1579 = vmatpush2.bf16.xpose.msra.mxu0 0
        %1580 = vmatprep.mubr.bf16.mxu0 0
        %1581 = vmatmul.mubr.bf16.gmra.mxu0 %v1216
        %v1582 = vpop.f32.mrf.mxu0
        %v1583 = vadd.f32 0.0, %v1582
        %v1584 = vpop.f32.mrf.mxu0
        %v1585 = vpop.f32.mrf.mxu0
        %v1586 = vadd.f32 0.0, %v1585
        %v1587 = vpop.f32.mrf.mxu0
        %1588 = vmatprep.mubr.bf16.mxu0 0
        %1589 = vmatmul.mubr.bf16.gmra.mxu0 %v1219
        %v1590 = vpop.f32.mrf.mxu0
        %v1591 = vadd.f32 0.0, %v1590
        %v1592 = vpop.f32.mrf.mxu0
        %v1593 = vpop.f32.mrf.mxu0
        %v1594 = vpop.f32.mrf.mxu0
        %1595 = vdwg.mxu0
        %v1596 = vsel %vm705, %v1583, -inf
        %1597 = vmax.xlane.f32.xlu0 %v1596
        %v1598 = vpop.xlane.xlu0 %1597
        %v1599 = vsel %vm705, %v1586, -inf
        %1600 = vmax.xlane.f32.xlu0 %v1599
        %v1601 = vpop.xlane.xlu0 %1600
        %v1602 = vsel %vm705, %v1591, -inf
        %1603 = vmax.xlane.f32.xlu0 %v1602
        %v1604 = vpop.xlane.xlu0 %1603
        %v1605 = vmax.f32 %v1440, %v1598
        %v1606 = vmax.f32 %v1441, %v1601
        %v1607 = vmax.f32 %v1442, %v1604
        %v1608 = vsub.f32 %v1440, %v1605
        %v1609 = vsub.f32 %v1441, %v1606
        %v1610 = vsub.f32 %v1442, %v1607
        %v1611 = vmul.f32 %v1608, 1.442695
        %v1612 = vpow.pop %v1611
        %v1613 = vmul.f32 %v1609, 1.442695
        %v1614 = vpow.pop %v1613
        %v1615 = vmul.f32 %v1610, 1.442695
        %v1616 = vpow.pop %v1615
        %v1617 = vsub.f32 %v1583, %v1605
        %v1618 = vsub.f32 %v1586, %v1606
        %v1619 = vsub.f32 %v1591, %v1607
        %v1620 = vmul.f32 %v1617, 1.442695
        %v1621 = vpow.pop %v1620
        %v1622 = vmul.f32 %v1618, 1.442695
        %v1623 = vpow.pop %v1622
        %v1624 = vmul.f32 %v1619, 1.442695
        %v1625 = vpow.pop %v1624
        %v1626 = vmul.f32 %v1612, %v1473
        %v1627 = vmul.f32 %v1614, %v1474
        %v1628 = vmul.f32 %v1616, %v1475
        %v1629 = vsel %vm705, %v1621, 0.0
        %1630 = vadd.xlane.f32.xlu0 %v1629
        %v1631 = vpop.xlane.xlu0 %1630
        %v1632 = vsel %vm705, %v1623, 0.0
        %1633 = vadd.xlane.f32.xlu0 %v1632
        %v1634 = vpop.xlane.xlu0 %1633
        %v1635 = vsel %vm705, %v1625, 0.0
        %1636 = vadd.xlane.f32.xlu0 %v1635
        %v1637 = vpop.xlane.xlu0 %1636
        %v1638 = vadd.f32 %v1626, %v1631
        %v1639 = vadd.f32 %v1627, %v1634
        %v1640 = vadd.f32 %v1628, %v1637
        %v1641 = vmul.f32 %v1612, %v1540
        %v1642 = vmul.f32 %v1614, %v1541
        %v1643 = vmul.f32 %v1616, %v1542
        %v1644 = vpack.c.bf16 %v1623, %v1621
        %v1645 = vpack.c.bf16 %v1625, %v1625
        %1646 = vrot.lane.b32.xlu0 %v701, 56
        %v1647 = vpop.permute.xlu0 %1646
        %v1649 = vsel %vm705, %v1644, 0
        %v1652 = vsel %vm705, %v1645, 0
        %v1655 = vsel %vm815, %v1647, 0
        %1657 = vmatprep.subr.bf16.mxu0 0
        %1658 = vmatpush1.bf16.msra.mxu0 0
        %1659 = vmatprep.subr.bf16.mxu0 0
        %1660 = vmatpush1.bf16.msra.mxu0 0
        %1661 = vmatprep.subr.bf16.mxu0 0
        %1662 = vmatpush1.bf16.msra.mxu0 0
        %1663 = vmatprep.subr.bf16.mxu0 0
        %1664 = vmatpush1.bf16.msra.mxu0 0
        %1665 = vmatprep.subr.bf16.mxu0 0
        %1666 = vmatpush1.bf16.msra.mxu0 0
        %1667 = vmatprep.subr.bf16.mxu0 0
        %1668 = vmatpush1.bf16.msra.mxu0 0
        %1669 = vmatprep.subr.bf16.mxu0 0
        %1670 = vmatpush1.bf16.msra.mxu0 0
        %1671 = vmatprep.subr.bf16.mxu0 0
        %1672 = vmatpush1.bf16.msra.mxu0 %v1655
        %1673 = vmatprep.subr.bf16.mxu0 0
        %1674 = vmatpush2.bf16.msra.mxu0 0
        %1675 = vmatprep.subr.bf16.mxu0 0
        %1676 = vmatpush2.bf16.msra.mxu0 0
        %1677 = vmatprep.subr.bf16.mxu0 0
        %1678 = vmatpush2.bf16.msra.mxu0 0
        %1679 = vmatprep.subr.bf16.mxu0 0
        %1680 = vmatpush2.bf16.msra.mxu0 0
        %1681 = vmatprep.subr.bf16.mxu0 0
        %1682 = vmatpush2.bf16.msra.mxu0 0
        %1683 = vmatprep.subr.bf16.mxu0 0
        %1684 = vmatpush2.bf16.msra.mxu0 0
        %1685 = vmatprep.subr.bf16.mxu0 0
        %1686 = vmatpush2.bf16.msra.mxu0 0
        %1687 = vmatprep.subr.bf16.mxu0 0
        %1688 = vmatpush2.bf16.msra.mxu0 0
        %1689 = vmatprep.mubr.bf16.mxu0 0
        %1690 = vmatmul.mubr.bf16.gmra.mxu0 %v1649
        %v1691 = vpop.f32.mrf.mxu0
        %v1692 = vadd.f32 0.0, %v1691
        %v1693 = vpop.f32.mrf.mxu0
        %v1694 = vpop.f32.mrf.mxu0
        %v1695 = vadd.f32 0.0, %v1694
        %v1696 = vpop.f32.mrf.mxu0
        %1697 = vmatprep.mubr.bf16.mxu0 0
        %1698 = vmatmul.mubr.bf16.gmra.mxu0 %v1652
        %v1699 = vpop.f32.mrf.mxu0
        %v1700 = vadd.f32 0.0, %v1699
        %v1701 = vpop.f32.mrf.mxu0
        %v1702 = vpop.f32.mrf.mxu0
        %v1703 = vpop.f32.mrf.mxu0
        %1704 = vdwg.mxu0
        %v1705 = vadd.f32 %v1641, %v1692
        %v1706 = vadd.f32 %v1642, %v1695
        %v1707 = vadd.f32 %v1643, %v1700
        %v1708 = vrcp.pop %v1638
        %v1709 = vrcp.pop %v1639
        %v1710 = vrcp.pop %v1640
        %v1711 = vmul.f32 %v1705, %v1708
        %v1712 = vmul.f32 %v1706, %v1709
        %v1713 = vmul.f32 %v1707, %v1710
        %v1714 = vld [vmem:[#allocation11 + $0x8] sm:$0xff]
        %v1716 = vsel %vm705, %v1711, 0
        %1718 = vmatprep.subr.mxu0 0.0
        %1719 = vmatpush1.msra.mxu0 0.0
        %1720 = vmatprep.subr.mxu0 0.0
        %1721 = vmatpush1.msra.mxu0 0.0
        %1722 = vmatprep.subr.mxu0 0.0
        %1723 = vmatpush1.msra.mxu0 0.0
        %1724 = vmatprep.subr.mxu0 0.0
        %1725 = vmatpush1.msra.mxu0 0.0
        %1726 = vmatprep.subr.mxu0 0.0
        %1727 = vmatpush1.msra.mxu0 0.0
        %1728 = vmatprep.subr.mxu0 0.0
        %1729 = vmatpush1.msra.mxu0 0.0
        %1730 = vmatprep.subr.mxu0 0.0
        %1731 = vmatpush1.msra.mxu0 0.0
        %1732 = vmatprep.subr.mxu0 0.0
        %1733 = vmatpush1.msra.mxu0 0.0
        %1734 = vmatprep.subr.mxu0 0.0
        %1735 = vmatpush1.msra.mxu0 0.0
        %1736 = vmatprep.subr.mxu0 0.0
        %1737 = vmatpush1.msra.mxu0 0.0
        %1738 = vmatprep.subr.mxu0 0.0
        %1739 = vmatpush1.msra.mxu0 0.0
        %1740 = vmatprep.subr.mxu0 0.0
        %1741 = vmatpush1.msra.mxu0 0.0
        %1742 = vmatprep.subr.mxu0 0.0
        %1743 = vmatpush1.msra.mxu0 0.0
        %1744 = vmatprep.subr.mxu0 0.0
        %1745 = vmatpush1.msra.mxu0 0.0
        %1746 = vmatprep.subr.mxu0 0.0
        %1747 = vmatpush1.msra.mxu0 0.0
        %1748 = vmatprep.subr.mxu0 0.0
        %1749 = vmatpush1.msra.mxu0 %v1714
        %1750 = vmatprep.subr.mxu0 0.0
        %1751 = vmatpush2.msra.mxu0 0.0
        %1752 = vmatprep.subr.mxu0 0.0
        %1753 = vmatpush2.msra.mxu0 0.0
        %1754 = vmatprep.subr.mxu0 0.0
        %1755 = vmatpush2.msra.mxu0 0.0
        %1756 = vmatprep.subr.mxu0 0.0
        %1757 = vmatpush2.msra.mxu0 0.0
        %1758 = vmatprep.subr.mxu0 0.0
        %1759 = vmatpush2.msra.mxu0 0.0
        %1760 = vmatprep.subr.mxu0 0.0
        %1761 = vmatpush2.msra.mxu0 0.0
        %1762 = vmatprep.subr.mxu0 0.0
        %1763 = vmatpush2.msra.mxu0 0.0
        %1764 = vmatprep.subr.mxu0 0.0
        %1765 = vmatpush2.msra.mxu0 0.0
        %1766 = vmatprep.subr.mxu0 0.0
        %1767 = vmatpush2.msra.mxu0 0.0
        %1768 = vmatprep.subr.mxu0 0.0
        %1769 = vmatpush2.msra.mxu0 0.0
        %1770 = vmatprep.subr.mxu0 0.0
        %1771 = vmatpush2.msra.mxu0 0.0
        %1772 = vmatprep.subr.mxu0 0.0
        %1773 = vmatpush2.msra.mxu0 0.0
        %1774 = vmatprep.subr.mxu0 0.0
        %1775 = vmatpush2.msra.mxu0 0.0
        %1776 = vmatprep.subr.mxu0 0.0
        %1777 = vmatpush2.msra.mxu0 0.0
        %1778 = vmatprep.subr.mxu0 0.0
        %1779 = vmatpush2.msra.mxu0 0.0
        %1780 = vmatprep.subr.mxu0 0.0
        %1781 = vmatpush2.msra.mxu0 0.0
        %1782 = vmatprep.mubr.f32.mxu0 0.0
        %1783 = vmatmul.mubr.f32.gmra.mxu0 %v1716
        %v1784 = vpop.f32.mrf.mxu0
        %v1785 = vadd.f32 0.0, %v1784
        %v1786 = vpop.f32.mrf.mxu0
        %1787 = vdwg.mxu0
        %v1789 = vsel %vm705, %v1204, 0
        %1791 = vmatprep.subr.mxu0 0.0
        %1792 = vmatpush1.msra.mxu0 0.0
        %1793 = vmatprep.subr.mxu0 0.0
        %1794 = vmatpush1.msra.mxu0 0.0
        %1795 = vmatprep.subr.mxu0 0.0
        %1796 = vmatpush1.msra.mxu0 0.0
        %1797 = vmatprep.subr.mxu0 0.0
        %1798 = vmatpush1.msra.mxu0 0.0
        %1799 = vmatprep.subr.mxu0 0.0
        %1800 = vmatpush1.msra.mxu0 0.0
        %1801 = vmatprep.subr.mxu0 0.0
        %1802 = vmatpush1.msra.mxu0 0.0
        %1803 = vmatprep.subr.mxu0 0.0
        %1804 = vmatpush1.msra.mxu0 0.0
        %1805 = vmatprep.subr.mxu0 0.0
        %1806 = vmatpush1.msra.mxu0 0.0
        %1807 = vmatprep.subr.mxu0 0.0
        %1808 = vmatpush1.msra.mxu0 0.0
        %1809 = vmatprep.subr.mxu0 0.0
        %1810 = vmatpush1.msra.mxu0 0.0
        %1811 = vmatprep.subr.mxu0 0.0
        %1812 = vmatpush1.msra.mxu0 0.0
        %1813 = vmatprep.subr.mxu0 0.0
        %1814 = vmatpush1.msra.mxu0 0.0
        %1815 = vmatprep.subr.mxu0 0.0
        %1816 = vmatpush1.msra.mxu0 0.0
        %1817 = vmatprep.subr.mxu0 0.0
        %1818 = vmatpush1.msra.mxu0 0.0
        %1819 = vmatprep.subr.mxu0 0.0
        %1820 = vmatpush1.msra.mxu0 0.0
        %1821 = vmatprep.subr.mxu0 0.0
        %1822 = vmatpush1.msra.mxu0 %v1207
        %1823 = vmatprep.subr.mxu0 0.0
        %1824 = vmatpush2.msra.mxu0 0.0
        %1825 = vmatprep.subr.mxu0 0.0
        %1826 = vmatpush2.msra.mxu0 0.0
        %1827 = vmatprep.subr.mxu0 0.0
        %1828 = vmatpush2.msra.mxu0 0.0
        %1829 = vmatprep.subr.mxu0 0.0
        %1830 = vmatpush2.msra.mxu0 0.0
        %1831 = vmatprep.subr.mxu0 0.0
        %1832 = vmatpush2.msra.mxu0 0.0
        %1833 = vmatprep.subr.mxu0 0.0
        %1834 = vmatpush2.msra.mxu0 0.0
        %1835 = vmatprep.subr.mxu0 0.0
        %1836 = vmatpush2.msra.mxu0 0.0
        %1837 = vmatprep.subr.mxu0 0.0
        %1838 = vmatpush2.msra.mxu0 0.0
        %1839 = vmatprep.subr.mxu0 0.0
        %1840 = vmatpush2.msra.mxu0 0.0
        %1841 = vmatprep.subr.mxu0 0.0
        %1842 = vmatpush2.msra.mxu0 0.0
        %1843 = vmatprep.subr.mxu0 0.0
        %1844 = vmatpush2.msra.mxu0 0.0
        %1845 = vmatprep.subr.mxu0 0.0
        %1846 = vmatpush2.msra.mxu0 0.0
        %1847 = vmatprep.subr.mxu0 0.0
        %1848 = vmatpush2.msra.mxu0 0.0
        %1849 = vmatprep.subr.mxu0 0.0
        %1850 = vmatpush2.msra.mxu0 0.0
        %1851 = vmatprep.subr.mxu0 0.0
        %1852 = vmatpush2.msra.mxu0 0.0
        %1853 = vmatprep.subr.mxu0 0.0
        %1854 = vmatpush2.msra.mxu0 0.0
        %1855 = vmatprep.mubr.f32.mxu0 0.0
        %1856 = vmatmul.mubr.f32.gmra.mxu0 %v1789
        %v1857 = vpop.f32.mrf.mxu0
        %v1858 = vadd.f32 %v1785, %v1857
        %v1859 = vpop.f32.mrf.mxu0
        %1860 = vdwg.mxu0
        %v1861 = vld [vmem:[#allocation12 + $0x8] sm:$0xff]
        %v1863 = vsel %vm705, %v1712, 0
        %v1866 = vsel %vm705, %v1713, 0
        %1868 = vmatprep.subr.mxu0 0.0
        %1869 = vmatpush1.msra.mxu0 0.0
        %1870 = vmatprep.subr.mxu0 0.0
        %1871 = vmatpush1.msra.mxu0 0.0
        %1872 = vmatprep.subr.mxu0 0.0
        %1873 = vmatpush1.msra.mxu0 0.0
        %1874 = vmatprep.subr.mxu0 0.0
        %1875 = vmatpush1.msra.mxu0 0.0
        %1876 = vmatprep.subr.mxu0 0.0
        %1877 = vmatpush1.msra.mxu0 0.0
        %1878 = vmatprep.subr.mxu0 0.0
        %1879 = vmatpush1.msra.mxu0 0.0
        %1880 = vmatprep.subr.mxu0 0.0
        %1881 = vmatpush1.msra.mxu0 0.0
        %1882 = vmatprep.subr.mxu0 0.0
        %1883 = vmatpush1.msra.mxu0 0.0
        %1884 = vmatprep.subr.mxu0 0.0
        %1885 = vmatpush1.msra.mxu0 0.0
        %1886 = vmatprep.subr.mxu0 0.0
        %1887 = vmatpush1.msra.mxu0 0.0
        %1888 = vmatprep.subr.mxu0 0.0
        %1889 = vmatpush1.msra.mxu0 0.0
        %1890 = vmatprep.subr.mxu0 0.0
        %1891 = vmatpush1.msra.mxu0 0.0
        %1892 = vmatprep.subr.mxu0 0.0
        %1893 = vmatpush1.msra.mxu0 0.0
        %1894 = vmatprep.subr.mxu0 0.0
        %1895 = vmatpush1.msra.mxu0 0.0
        %1896 = vmatprep.subr.mxu0 0.0
        %1897 = vmatpush1.msra.mxu0 0.0
        %1898 = vmatprep.subr.mxu0 0.0
        %1899 = vmatpush1.msra.mxu0 %v1861
        %1900 = vmatprep.subr.mxu0 0.0
        %1901 = vmatpush2.msra.mxu0 0.0
        %1902 = vmatprep.subr.mxu0 0.0
        %1903 = vmatpush2.msra.mxu0 0.0
        %1904 = vmatprep.subr.mxu0 0.0
        %1905 = vmatpush2.msra.mxu0 0.0
        %1906 = vmatprep.subr.mxu0 0.0
        %1907 = vmatpush2.msra.mxu0 0.0
        %1908 = vmatprep.subr.mxu0 0.0
        %1909 = vmatpush2.msra.mxu0 0.0
        %1910 = vmatprep.subr.mxu0 0.0
        %1911 = vmatpush2.msra.mxu0 0.0
        %1912 = vmatprep.subr.mxu0 0.0
        %1913 = vmatpush2.msra.mxu0 0.0
        %1914 = vmatprep.subr.mxu0 0.0
        %1915 = vmatpush2.msra.mxu0 0.0
        %1916 = vmatprep.subr.mxu0 0.0
        %1917 = vmatpush2.msra.mxu0 0.0
        %1918 = vmatprep.subr.mxu0 0.0
        %1919 = vmatpush2.msra.mxu0 0.0
        %1920 = vmatprep.subr.mxu0 0.0
        %1921 = vmatpush2.msra.mxu0 0.0
        %1922 = vmatprep.subr.mxu0 0.0
        %1923 = vmatpush2.msra.mxu0 0.0
        %1924 = vmatprep.subr.mxu0 0.0
        %1925 = vmatpush2.msra.mxu0 0.0
        %1926 = vmatprep.subr.mxu0 0.0
        %1927 = vmatpush2.msra.mxu0 0.0
        %1928 = vmatprep.subr.mxu0 0.0
        %1929 = vmatpush2.msra.mxu0 0.0
        %1930 = vmatprep.subr.mxu0 0.0
        %1931 = vmatpush2.msra.mxu0 0.0
        %1932 = vmatprep.mubr.f32.mxu0 0.0
        %1933 = vmatmul.mubr.f32.gmra.mxu0 %v1863
        %v1934 = vpop.f32.mrf.mxu0
        %v1935 = vadd.f32 0.0, %v1934
        %v1936 = vpop.f32.mrf.mxu0
        %1937 = vmatprep.mubr.f32.mxu0 0.0
        %1938 = vmatmul.mubr.f32.gmra.mxu0 %v1866
        %v1939 = vpop.f32.mrf.mxu0
        %v1940 = vadd.f32 0.0, %v1939
        %v1941 = vpop.f32.mrf.mxu0
        %1942 = vdwg.mxu0
        %v1944 = vsel %vm705, %v1205, 0
        %v1947 = vsel %vm705, %v1206, 0
        %1949 = vmatprep.subr.mxu0 0.0
        %1950 = vmatpush1.msra.mxu0 0.0
        %1951 = vmatprep.subr.mxu0 0.0
        %1952 = vmatpush1.msra.mxu0 0.0
        %1953 = vmatprep.subr.mxu0 0.0
        %1954 = vmatpush1.msra.mxu0 0.0
        %1955 = vmatprep.subr.mxu0 0.0
        %1956 = vmatpush1.msra.mxu0 0.0
        %1957 = vmatprep.subr.mxu0 0.0
        %1958 = vmatpush1.msra.mxu0 0.0
        %1959 = vmatprep.subr.mxu0 0.0
        %1960 = vmatpush1.msra.mxu0 0.0
        %1961 = vmatprep.subr.mxu0 0.0
        %1962 = vmatpush1.msra.mxu0 0.0
        %1963 = vmatprep.subr.mxu0 0.0
        %1964 = vmatpush1.msra.mxu0 0.0
        %1965 = vmatprep.subr.mxu0 0.0
        %1966 = vmatpush1.msra.mxu0 0.0
        %1967 = vmatprep.subr.mxu0 0.0
        %1968 = vmatpush1.msra.mxu0 0.0
        %1969 = vmatprep.subr.mxu0 0.0
        %1970 = vmatpush1.msra.mxu0 0.0
        %1971 = vmatprep.subr.mxu0 0.0
        %1972 = vmatpush1.msra.mxu0 0.0
        %1973 = vmatprep.subr.mxu0 0.0
        %1974 = vmatpush1.msra.mxu0 0.0
        %1975 = vmatprep.subr.mxu0 0.0
        %1976 = vmatpush1.msra.mxu0 0.0
        %1977 = vmatprep.subr.mxu0 0.0
        %1978 = vmatpush1.msra.mxu0 0.0
        %1979 = vmatprep.subr.mxu0 0.0
        %1980 = vmatpush1.msra.mxu0 %v1208
        %1981 = vmatprep.subr.mxu0 0.0
        %1982 = vmatpush2.msra.mxu0 0.0
        %1983 = vmatprep.subr.mxu0 0.0
        %1984 = vmatpush2.msra.mxu0 0.0
        %1985 = vmatprep.subr.mxu0 0.0
        %1986 = vmatpush2.msra.mxu0 0.0
        %1987 = vmatprep.subr.mxu0 0.0
        %1988 = vmatpush2.msra.mxu0 0.0
        %1989 = vmatprep.subr.mxu0 0.0
        %1990 = vmatpush2.msra.mxu0 0.0
        %1991 = vmatprep.subr.mxu0 0.0
        %1992 = vmatpush2.msra.mxu0 0.0
        %1993 = vmatprep.subr.mxu0 0.0
        %1994 = vmatpush2.msra.mxu0 0.0
        %1995 = vmatprep.subr.mxu0 0.0
        %1996 = vmatpush2.msra.mxu0 0.0
        %1997 = vmatprep.subr.mxu0 0.0
        %1998 = vmatpush2.msra.mxu0 0.0
        %1999 = vmatprep.subr.mxu0 0.0
        %2000 = vmatpush2.msra.mxu0 0.0
        %2001 = vmatprep.subr.mxu0 0.0
        %2002 = vmatpush2.msra.mxu0 0.0
        %2003 = vmatprep.subr.mxu0 0.0
        %2004 = vmatpush2.msra.mxu0 0.0
        %2005 = vmatprep.subr.mxu0 0.0
        %2006 = vmatpush2.msra.mxu0 0.0
        %2007 = vmatprep.subr.mxu0 0.0
        %2008 = vmatpush2.msra.mxu0 0.0
        %2009 = vmatprep.subr.mxu0 0.0
        %2010 = vmatpush2.msra.mxu0 0.0
        %2011 = vmatprep.subr.mxu0 0.0
        %2012 = vmatpush2.msra.mxu0 0.0
        %2013 = vmatprep.mubr.f32.mxu0 0.0
        %2014 = vmatmul.mubr.f32.gmra.mxu0 %v1944
        %v2015 = vpop.f32.mrf.mxu0
        %v2016 = vadd.f32 %v1935, %v2015
        %v2017 = vpop.f32.mrf.mxu0
        %2018 = vmatprep.mubr.f32.mxu0 0.0
        %2019 = vmatmul.mubr.f32.gmra.mxu0 %v1947
        %v2020 = vpop.f32.mrf.mxu0
        %v2021 = vadd.f32 %v1940, %v2020
        %v2022 = vpop.f32.mrf.mxu0
        %2023 = vdwg.mxu0
        %2024 = vrot.lane.b32.xlu0 %v700, 112
        %v2025 = vpop.permute.xlu0 %2024
        %2026 = vrot.lane.b32.xlu0 %v701, 112
        %v2027 = vpop.permute.xlu0 %2026
        %2028 = vrot.lane.b32.xlu0 %v702, 80
        %v2029 = vpop.permute.xlu0 %2028
        %v2031 = vsel %vm705, %v2025, 0
        %v2034 = vsel %vm705, %v2027, 0
        %v2037 = vsel %vm705, %v2029, 0
        %2039 = vmatprep.subr.bf16.mxu0 0
        %2040 = vmatpush1.bf16.xpose.msra.mxu0 0
        %2041 = vmatprep.subr.bf16.mxu0 0
        %2042 = vmatpush1.bf16.xpose.msra.mxu0 0
        %2043 = vmatprep.subr.bf16.mxu0 0
        %2044 = vmatpush1.bf16.xpose.msra.mxu0 0
        %2045 = vmatprep.subr.bf16.mxu0 0
        %2046 = vmatpush1.bf16.xpose.msra.mxu0 0
        %2047 = vmatprep.subr.bf16.mxu0 0
        %2048 = vmatpush1.bf16.xpose.msra.mxu0 0
        %2049 = vmatprep.subr.bf16.mxu0 0
        %2050 = vmatpush1.bf16.xpose.msra.mxu0 0
        %2051 = vmatprep.subr.bf16.mxu0 0
        %2052 = vmatpush1.bf16.xpose.msra.mxu0 0
        %2053 = vmatprep.subr.bf16.mxu0 0
        %2054 = vmatpush1.bf16.xpose.msra.mxu0 %v2037
        %2055 = vmatprep.subr.bf16.mxu0 0
        %2056 = vmatpush2.bf16.xpose.msra.mxu0 0
        %2057 = vmatprep.subr.bf16.mxu0 0
        %2058 = vmatpush2.bf16.xpose.msra.mxu0 0
        %2059 = vmatprep.subr.bf16.mxu0 0
        %2060 = vmatpush2.bf16.xpose.msra.mxu0 0
        %2061 = vmatprep.subr.bf16.mxu0 0
        %2062 = vmatpush2.bf16.xpose.msra.mxu0 0
        %2063 = vmatprep.subr.bf16.mxu0 0
        %2064 = vmatpush2.bf16.xpose.msra.mxu0 0
        %2065 = vmatprep.subr.bf16.mxu0 0
        %2066 = vmatpush2.bf16.xpose.msra.mxu0 0
        %2067 = vmatprep.subr.bf16.mxu0 0
        %2068 = vmatpush2.bf16.xpose.msra.mxu0 0
        %2069 = vmatprep.subr.bf16.mxu0 0
        %2070 = vmatpush2.bf16.xpose.msra.mxu0 0
        %2071 = vmatprep.mubr.bf16.mxu0 0
        %2072 = vmatmul.mubr.bf16.gmra.mxu0 %v2031
        %v2073 = vpop.f32.mrf.mxu0
        %v2074 = vadd.f32 0.0, %v2073
        %v2075 = vpop.f32.mrf.mxu0
        %v2076 = vpop.f32.mrf.mxu0
        %v2077 = vadd.f32 0.0, %v2076
        %v2078 = vpop.f32.mrf.mxu0
        %2079 = vmatprep.mubr.bf16.mxu0 0
        %2080 = vmatmul.mubr.bf16.gmra.mxu0 %v2034
        %v2081 = vpop.f32.mrf.mxu0
        %v2082 = vadd.f32 0.0, %v2081
        %v2083 = vpop.f32.mrf.mxu0
        %v2084 = vpop.f32.mrf.mxu0
        %v2085 = vpop.f32.mrf.mxu0
        %2086 = vdwg.mxu0
        %v2087 = vsel %vm705, %v2074, -inf
        %2088 = vmax.xlane.f32.xlu0 %v2087
        %v2089 = vpop.xlane.xlu0 %2088
        %v2090 = vsel %vm705, %v2077, -inf
        %2091 = vmax.xlane.f32.xlu0 %v2090
        %v2092 = vpop.xlane.xlu0 %2091
        %v2093 = vsel %vm705, %v2082, -inf
        %2094 = vmax.xlane.f32.xlu0 %v2093
        %v2095 = vpop.xlane.xlu0 %2094
        %v2096 = vsub.f32 -inf, %v2089
        %v2097 = vsub.f32 -inf, %v2092
        %v2098 = vsub.f32 -inf, %v2095
        %v2099 = vmul.f32 %v2096, 1.442695
        %v2100 = vpow.pop %v2099
        %v2101 = vmul.f32 %v2097, 1.442695
        %v2102 = vpow.pop %v2101
        %v2103 = vmul.f32 %v2098, 1.442695
        %v2104 = vpow.pop %v2103
        %v2105 = vsub.f32 %v2074, %v2089
        %v2106 = vsub.f32 %v2077, %v2092
        %v2107 = vsub.f32 %v2082, %v2095
        %v2108 = vmul.f32 %v2105, 1.442695
        %v2109 = vpow.pop %v2108
        %v2110 = vmul.f32 %v2106, 1.442695
        %v2111 = vpow.pop %v2110
        %v2112 = vmul.f32 %v2107, 1.442695
        %v2113 = vpow.pop %v2112
        %v2114 = vmul.f32 %v2100, 0.0
        %v2115 = vmul.f32 %v2102, 0.0
        %v2116 = vmul.f32 %v2104, 0.0
        %v2117 = vsel %vm705, %v2109, 0.0
        %2118 = vadd.xlane.f32.xlu0 %v2117
        %v2119 = vpop.xlane.xlu0 %2118
        %v2120 = vsel %vm705, %v2111, 0.0
        %2121 = vadd.xlane.f32.xlu0 %v2120
        %v2122 = vpop.xlane.xlu0 %2121
        %v2123 = vsel %vm705, %v2113, 0.0
        %2124 = vadd.xlane.f32.xlu0 %v2123
        %v2125 = vpop.xlane.xlu0 %2124
        %v2126 = vadd.f32 %v2114, %v2119
        %v2127 = vadd.f32 %v2115, %v2122
        %v2128 = vadd.f32 %v2116, %v2125
        %v2129 = vpack.c.bf16 %v2111, %v2109
        %v2130 = vpack.c.bf16 %v2113, %v2113
        %2131 = vrot.lane.b32.xlu0 %v702, 48
        %v2132 = vpop.permute.xlu0 %2131
        %v2134 = vsel %vm705, %v2129, 0
        %v2137 = vsel %vm705, %v2130, 0
        %v2140 = vsel %vm815, %v2132, 0
        %2142 = vmatprep.subr.bf16.mxu0 0
        %2143 = vmatpush1.bf16.msra.mxu0 0
        %2144 = vmatprep.subr.bf16.mxu0 0
        %2145 = vmatpush1.bf16.msra.mxu0 0
        %2146 = vmatprep.subr.bf16.mxu0 0
        %2147 = vmatpush1.bf16.msra.mxu0 0
        %2148 = vmatprep.subr.bf16.mxu0 0
        %2149 = vmatpush1.bf16.msra.mxu0 0
        %2150 = vmatprep.subr.bf16.mxu0 0
        %2151 = vmatpush1.bf16.msra.mxu0 0
        %2152 = vmatprep.subr.bf16.mxu0 0
        %2153 = vmatpush1.bf16.msra.mxu0 0
        %2154 = vmatprep.subr.bf16.mxu0 0
        %2155 = vmatpush1.bf16.msra.mxu0 0
        %2156 = vmatprep.subr.bf16.mxu0 0
        %2157 = vmatpush1.bf16.msra.mxu0 %v2140
        %2158 = vmatprep.subr.bf16.mxu0 0
        %2159 = vmatpush2.bf16.msra.mxu0 0
        %2160 = vmatprep.subr.bf16.mxu0 0
        %2161 = vmatpush2.bf16.msra.mxu0 0
        %2162 = vmatprep.subr.bf16.mxu0 0
        %2163 = vmatpush2.bf16.msra.mxu0 0
        %2164 = vmatprep.subr.bf16.mxu0 0
        %2165 = vmatpush2.bf16.msra.mxu0 0
        %2166 = vmatprep.subr.bf16.mxu0 0
        %2167 = vmatpush2.bf16.msra.mxu0 0
        %2168 = vmatprep.subr.bf16.mxu0 0
        %2169 = vmatpush2.bf16.msra.mxu0 0
        %2170 = vmatprep.subr.bf16.mxu0 0
        %2171 = vmatpush2.bf16.msra.mxu0 0
        %2172 = vmatprep.subr.bf16.mxu0 0
        %2173 = vmatpush2.bf16.msra.mxu0 0
        %2174 = vmatprep.mubr.bf16.mxu0 0
        %2175 = vmatmul.mubr.bf16.gmra.mxu0 %v2134
        %v2176 = vpop.f32.mrf.mxu0
        %v2177 = vadd.f32 0.0, %v2176
        %v2178 = vpop.f32.mrf.mxu0
        %v2179 = vpop.f32.mrf.mxu0
        %v2180 = vadd.f32 0.0, %v2179
        %v2181 = vpop.f32.mrf.mxu0
        %2182 = vmatprep.mubr.bf16.mxu0 0
        %2183 = vmatmul.mubr.bf16.gmra.mxu0 %v2137
        %v2184 = vpop.f32.mrf.mxu0
        %v2185 = vadd.f32 0.0, %v2184
        %v2186 = vpop.f32.mrf.mxu0
        %v2187 = vpop.f32.mrf.mxu0
        %v2188 = vpop.f32.mrf.mxu0
        %2189 = vdwg.mxu0
        %v2190 = vadd.f32 %v2114, %v2177
        %v2191 = vadd.f32 %v2115, %v2180
        %v2192 = vadd.f32 %v2116, %v2185
        %2193 = vrot.lane.b32.xlu0 %v870, 80
        %v2194 = vpop.permute.xlu0 %2193
        %v2196 = vsel %vm705, %v2194, 0
        %2198 = vmatprep.subr.bf16.mxu0 0
        %2199 = vmatpush1.bf16.xpose.msra.mxu0 0
        %2200 = vmatprep.subr.bf16.mxu0 0
        %2201 = vmatpush1.bf16.xpose.msra.mxu0 0
        %2202 = vmatprep.subr.bf16.mxu0 0
        %2203 = vmatpush1.bf16.xpose.msra.mxu0 0
        %2204 = vmatprep.subr.bf16.mxu0 0
        %2205 = vmatpush1.bf16.xpose.msra.mxu0 0
        %2206 = vmatprep.subr.bf16.mxu0 0
        %2207 = vmatpush1.bf16.xpose.msra.mxu0 0
        %2208 = vmatprep.subr.bf16.mxu0 0
        %2209 = vmatpush1.bf16.xpose.msra.mxu0 0
        %2210 = vmatprep.subr.bf16.mxu0 0
        %2211 = vmatpush1.bf16.xpose.msra.mxu0 0
        %2212 = vmatprep.subr.bf16.mxu0 0
        %2213 = vmatpush1.bf16.xpose.msra.mxu0 %v2196
        %2214 = vmatprep.subr.bf16.mxu0 0
        %2215 = vmatpush2.bf16.xpose.msra.mxu0 0
        %2216 = vmatprep.subr.bf16.mxu0 0
        %2217 = vmatpush2.bf16.xpose.msra.mxu0 0
        %2218 = vmatprep.subr.bf16.mxu0 0
        %2219 = vmatpush2.bf16.xpose.msra.mxu0 0
        %2220 = vmatprep.subr.bf16.mxu0 0
        %2221 = vmatpush2.bf16.xpose.msra.mxu0 0
        %2222 = vmatprep.subr.bf16.mxu0 0
        %2223 = vmatpush2.bf16.xpose.msra.mxu0 0
        %2224 = vmatprep.subr.bf16.mxu0 0
        %2225 = vmatpush2.bf16.xpose.msra.mxu0 0
        %2226 = vmatprep.subr.bf16.mxu0 0
        %2227 = vmatpush2.bf16.xpose.msra.mxu0 0
        %2228 = vmatprep.subr.bf16.mxu0 0
        %2229 = vmatpush2.bf16.xpose.msra.mxu0 0
        %2230 = vmatprep.mubr.bf16.mxu0 0
        %2231 = vmatmul.mubr.bf16.gmra.mxu0 %v2031
        %v2232 = vpop.f32.mrf.mxu0
        %v2233 = vadd.f32 0.0, %v2232
        %v2234 = vpop.f32.mrf.mxu0
        %v2235 = vpop.f32.mrf.mxu0
        %v2236 = vadd.f32 0.0, %v2235
        %v2237 = vpop.f32.mrf.mxu0
        %2238 = vmatprep.mubr.bf16.mxu0 0
        %2239 = vmatmul.mubr.bf16.gmra.mxu0 %v2034
        %v2240 = vpop.f32.mrf.mxu0
        %v2241 = vadd.f32 0.0, %v2240
        %v2242 = vpop.f32.mrf.mxu0
        %v2243 = vpop.f32.mrf.mxu0
        %v2244 = vpop.f32.mrf.mxu0
        %2245 = vdwg.mxu0
        %v2246 = vsel %vm705, %v2233, -inf
        %2247 = vmax.xlane.f32.xlu0 %v2246
        %v2248 = vpop.xlane.xlu0 %2247
        %v2249 = vsel %vm705, %v2236, -inf
        %2250 = vmax.xlane.f32.xlu0 %v2249
        %v2251 = vpop.xlane.xlu0 %2250
        %v2252 = vsel %vm705, %v2241, -inf
        %2253 = vmax.xlane.f32.xlu0 %v2252
        %v2254 = vpop.xlane.xlu0 %2253
        %v2255 = vmax.f32 %v2089, %v2248
        %v2256 = vmax.f32 %v2092, %v2251
        %v2257 = vmax.f32 %v2095, %v2254
        %v2258 = vsub.f32 %v2089, %v2255
        %v2259 = vsub.f32 %v2092, %v2256
        %v2260 = vsub.f32 %v2095, %v2257
        %v2261 = vmul.f32 %v2258, 1.442695
        %v2262 = vpow.pop %v2261
        %v2263 = vmul.f32 %v2259, 1.442695
        %v2264 = vpow.pop %v2263
        %v2265 = vmul.f32 %v2260, 1.442695
        %v2266 = vpow.pop %v2265
        %v2267 = vsub.f32 %v2233, %v2255
        %v2268 = vsub.f32 %v2236, %v2256
        %v2269 = vsub.f32 %v2241, %v2257
        %v2270 = vmul.f32 %v2267, 1.442695
        %v2271 = vpow.pop %v2270
        %v2272 = vmul.f32 %v2268, 1.442695
        %v2273 = vpow.pop %v2272
        %v2274 = vmul.f32 %v2269, 1.442695
        %v2275 = vpow.pop %v2274
        %v2276 = vmul.f32 %v2262, %v2126
        %v2277 = vmul.f32 %v2264, %v2127
        %v2278 = vmul.f32 %v2266, %v2128
        %v2279 = vsel %vm705, %v2271, 0.0
        %2280 = vadd.xlane.f32.xlu0 %v2279
        %v2281 = vpop.xlane.xlu0 %2280
        %v2282 = vsel %vm705, %v2273, 0.0
        %2283 = vadd.xlane.f32.xlu0 %v2282
        %v2284 = vpop.xlane.xlu0 %2283
        %v2285 = vsel %vm705, %v2275, 0.0
        %2286 = vadd.xlane.f32.xlu0 %v2285
        %v2287 = vpop.xlane.xlu0 %2286
        %v2288 = vadd.f32 %v2276, %v2281
        %v2289 = vadd.f32 %v2277, %v2284
        %v2290 = vadd.f32 %v2278, %v2287
        %v2291 = vmul.f32 %v2262, %v2190
        %v2292 = vmul.f32 %v2264, %v2191
        %v2293 = vmul.f32 %v2266, %v2192
        %v2294 = vpack.c.bf16 %v2273, %v2271
        %v2295 = vpack.c.bf16 %v2275, %v2275
        %2296 = vrot.lane.b32.xlu0 %v870, 48
        %v2297 = vpop.permute.xlu0 %2296
        %v2299 = vsel %vm705, %v2294, 0
        %v2302 = vsel %vm705, %v2295, 0
        %v2305 = vsel %vm815, %v2297, 0
        %2307 = vmatprep.subr.bf16.mxu0 0
        %2308 = vmatpush1.bf16.msra.mxu0 0
        %2309 = vmatprep.subr.bf16.mxu0 0
        %2310 = vmatpush1.bf16.msra.mxu0 0
        %2311 = vmatprep.subr.bf16.mxu0 0
        %2312 = vmatpush1.bf16.msra.mxu0 0
        %2313 = vmatprep.subr.bf16.mxu0 0
        %2314 = vmatpush1.bf16.msra.mxu0 0
        %2315 = vmatprep.subr.bf16.mxu0 0
        %2316 = vmatpush1.bf16.msra.mxu0 0
        %2317 = vmatprep.subr.bf16.mxu0 0
        %2318 = vmatpush1.bf16.msra.mxu0 0
        %2319 = vmatprep.subr.bf16.mxu0 0
        %2320 = vmatpush1.bf16.msra.mxu0 0
        %2321 = vmatprep.subr.bf16.mxu0 0
        %2322 = vmatpush1.bf16.msra.mxu0 %v2305
        %2323 = vmatprep.subr.bf16.mxu0 0
        %2324 = vmatpush2.bf16.msra.mxu0 0
        %2325 = vmatprep.subr.bf16.mxu0 0
        %2326 = vmatpush2.bf16.msra.mxu0 0
        %2327 = vmatprep.subr.bf16.mxu0 0
        %2328 = vmatpush2.bf16.msra.mxu0 0
        %2329 = vmatprep.subr.bf16.mxu0 0
        %2330 = vmatpush2.bf16.msra.mxu0 0
        %2331 = vmatprep.subr.bf16.mxu0 0
        %2332 = vmatpush2.bf16.msra.mxu0 0
        %2333 = vmatprep.subr.bf16.mxu0 0
        %2334 = vmatpush2.bf16.msra.mxu0 0
        %2335 = vmatprep.subr.bf16.mxu0 0
        %2336 = vmatpush2.bf16.msra.mxu0 0
        %2337 = vmatprep.subr.bf16.mxu0 0
        %2338 = vmatpush2.bf16.msra.mxu0 0
        %2339 = vmatprep.mubr.bf16.mxu0 0
        %2340 = vmatmul.mubr.bf16.gmra.mxu0 %v2299
        %v2341 = vpop.f32.mrf.mxu0
        %v2342 = vadd.f32 0.0, %v2341
        %v2343 = vpop.f32.mrf.mxu0
        %v2344 = vpop.f32.mrf.mxu0
        %v2345 = vadd.f32 0.0, %v2344
        %v2346 = vpop.f32.mrf.mxu0
        %2347 = vmatprep.mubr.bf16.mxu0 0
        %2348 = vmatmul.mubr.bf16.gmra.mxu0 %v2302
        %v2349 = vpop.f32.mrf.mxu0
        %v2350 = vadd.f32 0.0, %v2349
        %v2351 = vpop.f32.mrf.mxu0
        %v2352 = vpop.f32.mrf.mxu0
        %v2353 = vpop.f32.mrf.mxu0
        %2354 = vdwg.mxu0
        %v2355 = vadd.f32 %v2291, %v2342
        %v2356 = vadd.f32 %v2292, %v2345
        %v2357 = vadd.f32 %v2293, %v2350
        %2358 = vrot.lane.b32.xlu0 %v701, 80
        %v2359 = vpop.permute.xlu0 %2358
        %v2361 = vsel %vm705, %v2359, 0
        %2363 = vmatprep.subr.bf16.mxu0 0
        %2364 = vmatpush1.bf16.xpose.msra.mxu0 0
        %2365 = vmatprep.subr.bf16.mxu0 0
        %2366 = vmatpush1.bf16.xpose.msra.mxu0 0
        %2367 = vmatprep.subr.bf16.mxu0 0
        %2368 = vmatpush1.bf16.xpose.msra.mxu0 0
        %2369 = vmatprep.subr.bf16.mxu0 0
        %2370 = vmatpush1.bf16.xpose.msra.mxu0 0
        %2371 = vmatprep.subr.bf16.mxu0 0
        %2372 = vmatpush1.bf16.xpose.msra.mxu0 0
        %2373 = vmatprep.subr.bf16.mxu0 0
        %2374 = vmatpush1.bf16.xpose.msra.mxu0 0
        %2375 = vmatprep.subr.bf16.mxu0 0
        %2376 = vmatpush1.bf16.xpose.msra.mxu0 0
        %2377 = vmatprep.subr.bf16.mxu0 0
        %2378 = vmatpush1.bf16.xpose.msra.mxu0 %v2361
        %2379 = vmatprep.subr.bf16.mxu0 0
        %2380 = vmatpush2.bf16.xpose.msra.mxu0 0
        %2381 = vmatprep.subr.bf16.mxu0 0
        %2382 = vmatpush2.bf16.xpose.msra.mxu0 0
        %2383 = vmatprep.subr.bf16.mxu0 0
        %2384 = vmatpush2.bf16.xpose.msra.mxu0 0
        %2385 = vmatprep.subr.bf16.mxu0 0
        %2386 = vmatpush2.bf16.xpose.msra.mxu0 0
        %2387 = vmatprep.subr.bf16.mxu0 0
        %2388 = vmatpush2.bf16.xpose.msra.mxu0 0
        %2389 = vmatprep.subr.bf16.mxu0 0
        %2390 = vmatpush2.bf16.xpose.msra.mxu0 0
        %2391 = vmatprep.subr.bf16.mxu0 0
        %2392 = vmatpush2.bf16.xpose.msra.mxu0 0
        %2393 = vmatprep.subr.bf16.mxu0 0
        %2394 = vmatpush2.bf16.xpose.msra.mxu0 0
        %2395 = vmatprep.mubr.bf16.mxu0 0
        %2396 = vmatmul.mubr.bf16.gmra.mxu0 %v2031
        %v2397 = vpop.f32.mrf.mxu0
        %v2398 = vadd.f32 0.0, %v2397
        %v2399 = vpop.f32.mrf.mxu0
        %v2400 = vpop.f32.mrf.mxu0
        %v2401 = vadd.f32 0.0, %v2400
        %v2402 = vpop.f32.mrf.mxu0
        %2403 = vmatprep.mubr.bf16.mxu0 0
        %2404 = vmatmul.mubr.bf16.gmra.mxu0 %v2034
        %v2405 = vpop.f32.mrf.mxu0
        %v2406 = vadd.f32 0.0, %v2405
        %v2407 = vpop.f32.mrf.mxu0
        %v2408 = vpop.f32.mrf.mxu0
        %v2409 = vpop.f32.mrf.mxu0
        %2410 = vdwg.mxu0
        %v2411 = vsel %vm705, %v2398, -inf
        %2412 = vmax.xlane.f32.xlu0 %v2411
        %v2413 = vpop.xlane.xlu0 %2412
        %v2414 = vsel %vm705, %v2401, -inf
        %2415 = vmax.xlane.f32.xlu0 %v2414
        %v2416 = vpop.xlane.xlu0 %2415
        %v2417 = vsel %vm705, %v2406, -inf
        %2418 = vmax.xlane.f32.xlu0 %v2417
        %v2419 = vpop.xlane.xlu0 %2418
        %v2420 = vmax.f32 %v2255, %v2413
        %v2421 = vmax.f32 %v2256, %v2416
        %v2422 = vmax.f32 %v2257, %v2419
        %v2423 = vsub.f32 %v2255, %v2420
        %v2424 = vsub.f32 %v2256, %v2421
        %v2425 = vsub.f32 %v2257, %v2422
        %v2426 = vmul.f32 %v2423, 1.442695
        %v2427 = vpow.pop %v2426
        %v2428 = vmul.f32 %v2424, 1.442695
        %v2429 = vpow.pop %v2428
        %v2430 = vmul.f32 %v2425, 1.442695
        %v2431 = vpow.pop %v2430
        %v2432 = vsub.f32 %v2398, %v2420
        %v2433 = vsub.f32 %v2401, %v2421
        %v2434 = vsub.f32 %v2406, %v2422
        %v2435 = vmul.f32 %v2432, 1.442695
        %v2436 = vpow.pop %v2435
        %v2437 = vmul.f32 %v2433, 1.442695
        %v2438 = vpow.pop %v2437
        %v2439 = vmul.f32 %v2434, 1.442695
        %v2440 = vpow.pop %v2439
        %v2441 = vmul.f32 %v2427, %v2288
        %v2442 = vmul.f32 %v2429, %v2289
        %v2443 = vmul.f32 %v2431, %v2290
        %v2444 = vsel %vm705, %v2436, 0.0
        %2445 = vadd.xlane.f32.xlu0 %v2444
        %v2446 = vpop.xlane.xlu0 %2445
        %v2447 = vsel %vm705, %v2438, 0.0
        %2448 = vadd.xlane.f32.xlu0 %v2447
        %v2449 = vpop.xlane.xlu0 %2448
        %v2450 = vsel %vm705, %v2440, 0.0
        %2451 = vadd.xlane.f32.xlu0 %v2450
        %v2452 = vpop.xlane.xlu0 %2451
        %v2453 = vadd.f32 %v2441, %v2446
        %v2454 = vadd.f32 %v2442, %v2449
        %v2455 = vadd.f32 %v2443, %v2452
        %v2456 = vmul.f32 %v2427, %v2355
        %v2457 = vmul.f32 %v2429, %v2356
        %v2458 = vmul.f32 %v2431, %v2357
        %v2459 = vpack.c.bf16 %v2438, %v2436
        %v2460 = vpack.c.bf16 %v2440, %v2440
        %2461 = vrot.lane.b32.xlu0 %v701, 48
        %v2462 = vpop.permute.xlu0 %2461
        %v2464 = vsel %vm705, %v2459, 0
        %v2467 = vsel %vm705, %v2460, 0
        %v2470 = vsel %vm815, %v2462, 0
        %2472 = vmatprep.subr.bf16.mxu0 0
        %2473 = vmatpush1.bf16.msra.mxu0 0
        %2474 = vmatprep.subr.bf16.mxu0 0
        %2475 = vmatpush1.bf16.msra.mxu0 0
        %2476 = vmatprep.subr.bf16.mxu0 0
        %2477 = vmatpush1.bf16.msra.mxu0 0
        %2478 = vmatprep.subr.bf16.mxu0 0
        %2479 = vmatpush1.bf16.msra.mxu0 0
        %2480 = vmatprep.subr.bf16.mxu0 0
        %2481 = vmatpush1.bf16.msra.mxu0 0
        %2482 = vmatprep.subr.bf16.mxu0 0
        %2483 = vmatpush1.bf16.msra.mxu0 0
        %2484 = vmatprep.subr.bf16.mxu0 0
        %2485 = vmatpush1.bf16.msra.mxu0 0
        %2486 = vmatprep.subr.bf16.mxu0 0
        %2487 = vmatpush1.bf16.msra.mxu0 %v2470
        %2488 = vmatprep.subr.bf16.mxu0 0
        %2489 = vmatpush2.bf16.msra.mxu0 0
        %2490 = vmatprep.subr.bf16.mxu0 0
        %2491 = vmatpush2.bf16.msra.mxu0 0
        %2492 = vmatprep.subr.bf16.mxu0 0
        %2493 = vmatpush2.bf16.msra.mxu0 0
        %2494 = vmatprep.subr.bf16.mxu0 0
        %2495 = vmatpush2.bf16.msra.mxu0 0
        %2496 = vmatprep.subr.bf16.mxu0 0
        %2497 = vmatpush2.bf16.msra.mxu0 0
        %2498 = vmatprep.subr.bf16.mxu0 0
        %2499 = vmatpush2.bf16.msra.mxu0 0
        %2500 = vmatprep.subr.bf16.mxu0 0
        %2501 = vmatpush2.bf16.msra.mxu0 0
        %2502 = vmatprep.subr.bf16.mxu0 0
        %2503 = vmatpush2.bf16.msra.mxu0 0
        %2504 = vmatprep.mubr.bf16.mxu0 0
        %2505 = vmatmul.mubr.bf16.gmra.mxu0 %v2464
        %v2506 = vpop.f32.mrf.mxu0
        %v2507 = vadd.f32 0.0, %v2506
        %v2508 = vpop.f32.mrf.mxu0
        %v2509 = vpop.f32.mrf.mxu0
        %v2510 = vadd.f32 0.0, %v2509
        %v2511 = vpop.f32.mrf.mxu0
        %2512 = vmatprep.mubr.bf16.mxu0 0
        %2513 = vmatmul.mubr.bf16.gmra.mxu0 %v2467
        %v2514 = vpop.f32.mrf.mxu0
        %v2515 = vadd.f32 0.0, %v2514
        %v2516 = vpop.f32.mrf.mxu0
        %v2517 = vpop.f32.mrf.mxu0
        %v2518 = vpop.f32.mrf.mxu0
        %2519 = vdwg.mxu0
        %v2520 = vadd.f32 %v2456, %v2507
        %v2521 = vadd.f32 %v2457, %v2510
        %v2522 = vadd.f32 %v2458, %v2515
        %v2523 = vrcp.pop %v2453
        %v2524 = vrcp.pop %v2454
        %v2525 = vrcp.pop %v2455
        %v2526 = vmul.f32 %v2520, %v2523
        %v2527 = vmul.f32 %v2521, %v2524
        %v2528 = vmul.f32 %v2522, %v2525
        %v2529 = vld [vmem:[#allocation11 + $0x10] sm:$0xff]
        %v2531 = vsel %vm705, %v2526, 0
        %2533 = vmatprep.subr.mxu0 0.0
        %2534 = vmatpush1.msra.mxu0 0.0
        %2535 = vmatprep.subr.mxu0 0.0
        %2536 = vmatpush1.msra.mxu0 0.0
        %2537 = vmatprep.subr.mxu0 0.0
        %2538 = vmatpush1.msra.mxu0 0.0
        %2539 = vmatprep.subr.mxu0 0.0
        %2540 = vmatpush1.msra.mxu0 0.0
        %2541 = vmatprep.subr.mxu0 0.0
        %2542 = vmatpush1.msra.mxu0 0.0
        %2543 = vmatprep.subr.mxu0 0.0
        %2544 = vmatpush1.msra.mxu0 0.0
        %2545 = vmatprep.subr.mxu0 0.0
        %2546 = vmatpush1.msra.mxu0 0.0
        %2547 = vmatprep.subr.mxu0 0.0
        %2548 = vmatpush1.msra.mxu0 0.0
        %2549 = vmatprep.subr.mxu0 0.0
        %2550 = vmatpush1.msra.mxu0 0.0
        %2551 = vmatprep.subr.mxu0 0.0
        %2552 = vmatpush1.msra.mxu0 0.0
        %2553 = vmatprep.subr.mxu0 0.0
        %2554 = vmatpush1.msra.mxu0 0.0
        %2555 = vmatprep.subr.mxu0 0.0
        %2556 = vmatpush1.msra.mxu0 0.0
        %2557 = vmatprep.subr.mxu0 0.0
        %2558 = vmatpush1.msra.mxu0 0.0
        %2559 = vmatprep.subr.mxu0 0.0
        %2560 = vmatpush1.msra.mxu0 0.0
        %2561 = vmatprep.subr.mxu0 0.0
        %2562 = vmatpush1.msra.mxu0 0.0
        %2563 = vmatprep.subr.mxu0 0.0
        %2564 = vmatpush1.msra.mxu0 %v2529
        %2565 = vmatprep.subr.mxu0 0.0
        %2566 = vmatpush2.msra.mxu0 0.0
        %2567 = vmatprep.subr.mxu0 0.0
        %2568 = vmatpush2.msra.mxu0 0.0
        %2569 = vmatprep.subr.mxu0 0.0
        %2570 = vmatpush2.msra.mxu0 0.0
        %2571 = vmatprep.subr.mxu0 0.0
        %2572 = vmatpush2.msra.mxu0 0.0
        %2573 = vmatprep.subr.mxu0 0.0
        %2574 = vmatpush2.msra.mxu0 0.0
        %2575 = vmatprep.subr.mxu0 0.0
        %2576 = vmatpush2.msra.mxu0 0.0
        %2577 = vmatprep.subr.mxu0 0.0
        %2578 = vmatpush2.msra.mxu0 0.0
        %2579 = vmatprep.subr.mxu0 0.0
        %2580 = vmatpush2.msra.mxu0 0.0
        %2581 = vmatprep.subr.mxu0 0.0
        %2582 = vmatpush2.msra.mxu0 0.0
        %2583 = vmatprep.subr.mxu0 0.0
        %2584 = vmatpush2.msra.mxu0 0.0
        %2585 = vmatprep.subr.mxu0 0.0
        %2586 = vmatpush2.msra.mxu0 0.0
        %2587 = vmatprep.subr.mxu0 0.0
        %2588 = vmatpush2.msra.mxu0 0.0
        %2589 = vmatprep.subr.mxu0 0.0
        %2590 = vmatpush2.msra.mxu0 0.0
        %2591 = vmatprep.subr.mxu0 0.0
        %2592 = vmatpush2.msra.mxu0 0.0
        %2593 = vmatprep.subr.mxu0 0.0
        %2594 = vmatpush2.msra.mxu0 0.0
        %2595 = vmatprep.subr.mxu0 0.0
        %2596 = vmatpush2.msra.mxu0 0.0
        %2597 = vmatprep.mubr.f32.mxu0 0.0
        %2598 = vmatmul.mubr.f32.gmra.mxu0 %v2531
        %v2599 = vpop.f32.mrf.mxu0
        %v2600 = vadd.f32 0.0, %v2599
        %v2601 = vpop.f32.mrf.mxu0
        %2602 = vdwg.mxu0
        %v2603 = vadd.f32 %v1858, %v2600
        %v2604 = vld [vmem:[#allocation12 + $0x10] sm:$0xff]
        %v2606 = vsel %vm705, %v2527, 0
        %v2609 = vsel %vm705, %v2528, 0
        %2611 = vmatprep.subr.mxu0 0.0
        %2612 = vmatpush1.msra.mxu0 0.0
        %2613 = vmatprep.subr.mxu0 0.0
        %2614 = vmatpush1.msra.mxu0 0.0
        %2615 = vmatprep.subr.mxu0 0.0
        %2616 = vmatpush1.msra.mxu0 0.0
        %2617 = vmatprep.subr.mxu0 0.0
        %2618 = vmatpush1.msra.mxu0 0.0
        %2619 = vmatprep.subr.mxu0 0.0
        %2620 = vmatpush1.msra.mxu0 0.0
        %2621 = vmatprep.subr.mxu0 0.0
        %2622 = vmatpush1.msra.mxu0 0.0
        %2623 = vmatprep.subr.mxu0 0.0
        %2624 = vmatpush1.msra.mxu0 0.0
        %2625 = vmatprep.subr.mxu0 0.0
        %2626 = vmatpush1.msra.mxu0 0.0
        %2627 = vmatprep.subr.mxu0 0.0
        %2628 = vmatpush1.msra.mxu0 0.0
        %2629 = vmatprep.subr.mxu0 0.0
        %2630 = vmatpush1.msra.mxu0 0.0
        %2631 = vmatprep.subr.mxu0 0.0
        %2632 = vmatpush1.msra.mxu0 0.0
        %2633 = vmatprep.subr.mxu0 0.0
        %2634 = vmatpush1.msra.mxu0 0.0
        %2635 = vmatprep.subr.mxu0 0.0
        %2636 = vmatpush1.msra.mxu0 0.0
        %2637 = vmatprep.subr.mxu0 0.0
        %2638 = vmatpush1.msra.mxu0 0.0
        %2639 = vmatprep.subr.mxu0 0.0
        %2640 = vmatpush1.msra.mxu0 0.0
        %2641 = vmatprep.subr.mxu0 0.0
        %2642 = vmatpush1.msra.mxu0 %v2604
        %2643 = vmatprep.subr.mxu0 0.0
        %2644 = vmatpush2.msra.mxu0 0.0
        %2645 = vmatprep.subr.mxu0 0.0
        %2646 = vmatpush2.msra.mxu0 0.0
        %2647 = vmatprep.subr.mxu0 0.0
        %2648 = vmatpush2.msra.mxu0 0.0
        %2649 = vmatprep.subr.mxu0 0.0
        %2650 = vmatpush2.msra.mxu0 0.0
        %2651 = vmatprep.subr.mxu0 0.0
        %2652 = vmatpush2.msra.mxu0 0.0
        %2653 = vmatprep.subr.mxu0 0.0
        %2654 = vmatpush2.msra.mxu0 0.0
        %2655 = vmatprep.subr.mxu0 0.0
        %2656 = vmatpush2.msra.mxu0 0.0
        %2657 = vmatprep.subr.mxu0 0.0
        %2658 = vmatpush2.msra.mxu0 0.0
        %2659 = vmatprep.subr.mxu0 0.0
        %2660 = vmatpush2.msra.mxu0 0.0
        %2661 = vmatprep.subr.mxu0 0.0
        %2662 = vmatpush2.msra.mxu0 0.0
        %2663 = vmatprep.subr.mxu0 0.0
        %2664 = vmatpush2.msra.mxu0 0.0
        %2665 = vmatprep.subr.mxu0 0.0
        %2666 = vmatpush2.msra.mxu0 0.0
        %2667 = vmatprep.subr.mxu0 0.0
        %2668 = vmatpush2.msra.mxu0 0.0
        %2669 = vmatprep.subr.mxu0 0.0
        %2670 = vmatpush2.msra.mxu0 0.0
        %2671 = vmatprep.subr.mxu0 0.0
        %2672 = vmatpush2.msra.mxu0 0.0
        %2673 = vmatprep.subr.mxu0 0.0
        %2674 = vmatpush2.msra.mxu0 0.0
        %2675 = vmatprep.mubr.f32.mxu0 0.0
        %2676 = vmatmul.mubr.f32.gmra.mxu0 %v2606
        %v2677 = vpop.f32.mrf.mxu0
        %v2678 = vadd.f32 0.0, %v2677
        %v2679 = vpop.f32.mrf.mxu0
        %2680 = vmatprep.mubr.f32.mxu0 0.0
        %2681 = vmatmul.mubr.f32.gmra.mxu0 %v2609
        %v2682 = vpop.f32.mrf.mxu0
        %v2683 = vadd.f32 0.0, %v2682
        %v2684 = vpop.f32.mrf.mxu0
        %2685 = vdwg.mxu0
        %v2686 = vadd.f32 %v2016, %v2678
        %v2687 = vadd.f32 %v2021, %v2683
        %2688 = vrot.lane.b32.xlu0 %v700, 104
        %v2689 = vpop.permute.xlu0 %2688
        %2690 = vrot.lane.b32.xlu0 %v701, 104
        %v2691 = vpop.permute.xlu0 %2690
        %2692 = vrot.lane.b32.xlu0 %v702, 72
        %v2693 = vpop.permute.xlu0 %2692
        %v2695 = vsel %vm705, %v2689, 0
        %v2698 = vsel %vm705, %v2691, 0
        %v2701 = vsel %vm705, %v2693, 0
        %2703 = vmatprep.subr.bf16.mxu0 0
        %2704 = vmatpush1.bf16.xpose.msra.mxu0 0
        %2705 = vmatprep.subr.bf16.mxu0 0
        %2706 = vmatpush1.bf16.xpose.msra.mxu0 0
        %2707 = vmatprep.subr.bf16.mxu0 0
        %2708 = vmatpush1.bf16.xpose.msra.mxu0 0
        %2709 = vmatprep.subr.bf16.mxu0 0
        %2710 = vmatpush1.bf16.xpose.msra.mxu0 0
        %2711 = vmatprep.subr.bf16.mxu0 0
        %2712 = vmatpush1.bf16.xpose.msra.mxu0 0
        %2713 = vmatprep.subr.bf16.mxu0 0
        %2714 = vmatpush1.bf16.xpose.msra.mxu0 0
        %2715 = vmatprep.subr.bf16.mxu0 0
        %2716 = vmatpush1.bf16.xpose.msra.mxu0 0
        %2717 = vmatprep.subr.bf16.mxu0 0
        %2718 = vmatpush1.bf16.xpose.msra.mxu0 %v2701
        %2719 = vmatprep.subr.bf16.mxu0 0
        %2720 = vmatpush2.bf16.xpose.msra.mxu0 0
        %2721 = vmatprep.subr.bf16.mxu0 0
        %2722 = vmatpush2.bf16.xpose.msra.mxu0 0
        %2723 = vmatprep.subr.bf16.mxu0 0
        %2724 = vmatpush2.bf16.xpose.msra.mxu0 0
        %2725 = vmatprep.subr.bf16.mxu0 0
        %2726 = vmatpush2.bf16.xpose.msra.mxu0 0
        %2727 = vmatprep.subr.bf16.mxu0 0
        %2728 = vmatpush2.bf16.xpose.msra.mxu0 0
        %2729 = vmatprep.subr.bf16.mxu0 0
        %2730 = vmatpush2.bf16.xpose.msra.mxu0 0
        %2731 = vmatprep.subr.bf16.mxu0 0
        %2732 = vmatpush2.bf16.xpose.msra.mxu0 0
        %2733 = vmatprep.subr.bf16.mxu0 0
        %2734 = vmatpush2.bf16.xpose.msra.mxu0 0
        %2735 = vmatprep.mubr.bf16.mxu0 0
        %2736 = vmatmul.mubr.bf16.gmra.mxu0 %v2695
        %v2737 = vpop.f32.mrf.mxu0
        %v2738 = vadd.f32 0.0, %v2737
        %v2739 = vpop.f32.mrf.mxu0
        %v2740 = vpop.f32.mrf.mxu0
        %v2741 = vadd.f32 0.0, %v2740
        %v2742 = vpop.f32.mrf.mxu0
        %2743 = vmatprep.mubr.bf16.mxu0 0
        %2744 = vmatmul.mubr.bf16.gmra.mxu0 %v2698
        %v2745 = vpop.f32.mrf.mxu0
        %v2746 = vadd.f32 0.0, %v2745
        %v2747 = vpop.f32.mrf.mxu0
        %v2748 = vpop.f32.mrf.mxu0
        %v2749 = vpop.f32.mrf.mxu0
        %2750 = vdwg.mxu0
        %v2751 = vsel %vm705, %v2738, -inf
        %2752 = vmax.xlane.f32.xlu0 %v2751
        %v2753 = vpop.xlane.xlu0 %2752
        %v2754 = vsel %vm705, %v2741, -inf
        %2755 = vmax.xlane.f32.xlu0 %v2754
        %v2756 = vpop.xlane.xlu0 %2755
        %v2757 = vsel %vm705, %v2746, -inf
        %2758 = vmax.xlane.f32.xlu0 %v2757
        %v2759 = vpop.xlane.xlu0 %2758
        %v2760 = vsub.f32 -inf, %v2753
        %v2761 = vsub.f32 -inf, %v2756
        %v2762 = vsub.f32 -inf, %v2759
        %v2763 = vmul.f32 %v2760, 1.442695
        %v2764 = vpow.pop %v2763
        %v2765 = vmul.f32 %v2761, 1.442695
        %v2766 = vpow.pop %v2765
        %v2767 = vmul.f32 %v2762, 1.442695
        %v2768 = vpow.pop %v2767
        %v2769 = vsub.f32 %v2738, %v2753
        %v2770 = vsub.f32 %v2741, %v2756
        %v2771 = vsub.f32 %v2746, %v2759
        %v2772 = vmul.f32 %v2769, 1.442695
        %v2773 = vpow.pop %v2772
        %v2774 = vmul.f32 %v2770, 1.442695
        %v2775 = vpow.pop %v2774
        %v2776 = vmul.f32 %v2771, 1.442695
        %v2777 = vpow.pop %v2776
        %v2778 = vmul.f32 %v2764, 0.0
        %v2779 = vmul.f32 %v2766, 0.0
        %v2780 = vmul.f32 %v2768, 0.0
        %v2781 = vsel %vm705, %v2773, 0.0
        %2782 = vadd.xlane.f32.xlu0 %v2781
        %v2783 = vpop.xlane.xlu0 %2782
        %v2784 = vsel %vm705, %v2775, 0.0
        %2785 = vadd.xlane.f32.xlu0 %v2784
        %v2786 = vpop.xlane.xlu0 %2785
        %v2787 = vsel %vm705, %v2777, 0.0
        %2788 = vadd.xlane.f32.xlu0 %v2787
        %v2789 = vpop.xlane.xlu0 %2788
        %v2790 = vadd.f32 %v2778, %v2783
        %v2791 = vadd.f32 %v2779, %v2786
        %v2792 = vadd.f32 %v2780, %v2789
        %v2793 = vpack.c.bf16 %v2775, %v2773
        %v2794 = vpack.c.bf16 %v2777, %v2777
        %2795 = vrot.lane.b32.xlu0 %v702, 40
        %v2796 = vpop.permute.xlu0 %2795
        %v2798 = vsel %vm705, %v2793, 0
        %v2801 = vsel %vm705, %v2794, 0
        %v2804 = vsel %vm815, %v2796, 0
        %2806 = vmatprep.subr.bf16.mxu0 0
        %2807 = vmatpush1.bf16.msra.mxu0 0
        %2808 = vmatprep.subr.bf16.mxu0 0
        %2809 = vmatpush1.bf16.msra.mxu0 0
        %2810 = vmatprep.subr.bf16.mxu0 0
        %2811 = vmatpush1.bf16.msra.mxu0 0
        %2812 = vmatprep.subr.bf16.mxu0 0
        %2813 = vmatpush1.bf16.msra.mxu0 0
        %2814 = vmatprep.subr.bf16.mxu0 0
        %2815 = vmatpush1.bf16.msra.mxu0 0
        %2816 = vmatprep.subr.bf16.mxu0 0
        %2817 = vmatpush1.bf16.msra.mxu0 0
        %2818 = vmatprep.subr.bf16.mxu0 0
        %2819 = vmatpush1.bf16.msra.mxu0 0
        %2820 = vmatprep.subr.bf16.mxu0 0
        %2821 = vmatpush1.bf16.msra.mxu0 %v2804
        %2822 = vmatprep.subr.bf16.mxu0 0
        %2823 = vmatpush2.bf16.msra.mxu0 0
        %2824 = vmatprep.subr.bf16.mxu0 0
        %2825 = vmatpush2.bf16.msra.mxu0 0
        %2826 = vmatprep.subr.bf16.mxu0 0
        %2827 = vmatpush2.bf16.msra.mxu0 0
        %2828 = vmatprep.subr.bf16.mxu0 0
        %2829 = vmatpush2.bf16.msra.mxu0 0
        %2830 = vmatprep.subr.bf16.mxu0 0
        %2831 = vmatpush2.bf16.msra.mxu0 0
        %2832 = vmatprep.subr.bf16.mxu0 0
        %2833 = vmatpush2.bf16.msra.mxu0 0
        %2834 = vmatprep.subr.bf16.mxu0 0
        %2835 = vmatpush2.bf16.msra.mxu0 0
        %2836 = vmatprep.subr.bf16.mxu0 0
        %2837 = vmatpush2.bf16.msra.mxu0 0
        %2838 = vmatprep.mubr.bf16.mxu0 0
        %2839 = vmatmul.mubr.bf16.gmra.mxu0 %v2798
        %v2840 = vpop.f32.mrf.mxu0
        %v2841 = vadd.f32 0.0, %v2840
        %v2842 = vpop.f32.mrf.mxu0
        %v2843 = vpop.f32.mrf.mxu0
        %v2844 = vadd.f32 0.0, %v2843
        %v2845 = vpop.f32.mrf.mxu0
        %2846 = vmatprep.mubr.bf16.mxu0 0
        %2847 = vmatmul.mubr.bf16.gmra.mxu0 %v2801
        %v2848 = vpop.f32.mrf.mxu0
        %v2849 = vadd.f32 0.0, %v2848
        %v2850 = vpop.f32.mrf.mxu0
        %v2851 = vpop.f32.mrf.mxu0
        %v2852 = vpop.f32.mrf.mxu0
        %2853 = vdwg.mxu0
        %v2854 = vadd.f32 %v2778, %v2841
        %v2855 = vadd.f32 %v2779, %v2844
        %v2856 = vadd.f32 %v2780, %v2849
        %2857 = vrot.lane.b32.xlu0 %v870, 72
        %v2858 = vpop.permute.xlu0 %2857
        %v2860 = vsel %vm705, %v2858, 0
        %2862 = vmatprep.subr.bf16.mxu0 0
        %2863 = vmatpush1.bf16.xpose.msra.mxu0 0
        %2864 = vmatprep.subr.bf16.mxu0 0
        %2865 = vmatpush1.bf16.xpose.msra.mxu0 0
        %2866 = vmatprep.subr.bf16.mxu0 0
        %2867 = vmatpush1.bf16.xpose.msra.mxu0 0
        %2868 = vmatprep.subr.bf16.mxu0 0
        %2869 = vmatpush1.bf16.xpose.msra.mxu0 0
        %2870 = vmatprep.subr.bf16.mxu0 0
        %2871 = vmatpush1.bf16.xpose.msra.mxu0 0
        %2872 = vmatprep.subr.bf16.mxu0 0
        %2873 = vmatpush1.bf16.xpose.msra.mxu0 0
        %2874 = vmatprep.subr.bf16.mxu0 0
        %2875 = vmatpush1.bf16.xpose.msra.mxu0 0
        %2876 = vmatprep.subr.bf16.mxu0 0
        %2877 = vmatpush1.bf16.xpose.msra.mxu0 %v2860
        %2878 = vmatprep.subr.bf16.mxu0 0
        %2879 = vmatpush2.bf16.xpose.msra.mxu0 0
        %2880 = vmatprep.subr.bf16.mxu0 0
        %2881 = vmatpush2.bf16.xpose.msra.mxu0 0
        %2882 = vmatprep.subr.bf16.mxu0 0
        %2883 = vmatpush2.bf16.xpose.msra.mxu0 0
        %2884 = vmatprep.subr.bf16.mxu0 0
        %2885 = vmatpush2.bf16.xpose.msra.mxu0 0
        %2886 = vmatprep.subr.bf16.mxu0 0
        %2887 = vmatpush2.bf16.xpose.msra.mxu0 0
        %2888 = vmatprep.subr.bf16.mxu0 0
        %2889 = vmatpush2.bf16.xpose.msra.mxu0 0
        %2890 = vmatprep.subr.bf16.mxu0 0
        %2891 = vmatpush2.bf16.xpose.msra.mxu0 0
        %2892 = vmatprep.subr.bf16.mxu0 0
        %2893 = vmatpush2.bf16.xpose.msra.mxu0 0
        %2894 = vmatprep.mubr.bf16.mxu0 0
        %2895 = vmatmul.mubr.bf16.gmra.mxu0 %v2695
        %v2896 = vpop.f32.mrf.mxu0
        %v2897 = vadd.f32 0.0, %v2896
        %v2898 = vpop.f32.mrf.mxu0
        %v2899 = vpop.f32.mrf.mxu0
        %v2900 = vadd.f32 0.0, %v2899
        %v2901 = vpop.f32.mrf.mxu0
        %2902 = vmatprep.mubr.bf16.mxu0 0
        %2903 = vmatmul.mubr.bf16.gmra.mxu0 %v2698
        %v2904 = vpop.f32.mrf.mxu0
        %v2905 = vadd.f32 0.0, %v2904
        %v2906 = vpop.f32.mrf.mxu0
        %v2907 = vpop.f32.mrf.mxu0
        %v2908 = vpop.f32.mrf.mxu0
        %2909 = vdwg.mxu0
        %v2910 = vsel %vm705, %v2897, -inf
        %2911 = vmax.xlane.f32.xlu0 %v2910
        %v2912 = vpop.xlane.xlu0 %2911
        %v2913 = vsel %vm705, %v2900, -inf
        %2914 = vmax.xlane.f32.xlu0 %v2913
        %v2915 = vpop.xlane.xlu0 %2914
        %v2916 = vsel %vm705, %v2905, -inf
        %2917 = vmax.xlane.f32.xlu0 %v2916
        %v2918 = vpop.xlane.xlu0 %2917
        %v2919 = vmax.f32 %v2753, %v2912
        %v2920 = vmax.f32 %v2756, %v2915
        %v2921 = vmax.f32 %v2759, %v2918
        %v2922 = vsub.f32 %v2753, %v2919
        %v2923 = vsub.f32 %v2756, %v2920
        %v2924 = vsub.f32 %v2759, %v2921
        %v2925 = vmul.f32 %v2922, 1.442695
        %v2926 = vpow.pop %v2925
        %v2927 = vmul.f32 %v2923, 1.442695
        %v2928 = vpow.pop %v2927
        %v2929 = vmul.f32 %v2924, 1.442695
        %v2930 = vpow.pop %v2929
        %v2931 = vsub.f32 %v2897, %v2919
        %v2932 = vsub.f32 %v2900, %v2920
        %v2933 = vsub.f32 %v2905, %v2921
        %v2934 = vmul.f32 %v2931, 1.442695
        %v2935 = vpow.pop %v2934
        %v2936 = vmul.f32 %v2932, 1.442695
        %v2937 = vpow.pop %v2936
        %v2938 = vmul.f32 %v2933, 1.442695
        %v2939 = vpow.pop %v2938
        %v2940 = vmul.f32 %v2926, %v2790
        %v2941 = vmul.f32 %v2928, %v2791
        %v2942 = vmul.f32 %v2930, %v2792
        %v2943 = vsel %vm705, %v2935, 0.0
        %2944 = vadd.xlane.f32.xlu0 %v2943
        %v2945 = vpop.xlane.xlu0 %2944
        %v2946 = vsel %vm705, %v2937, 0.0
        %2947 = vadd.xlane.f32.xlu0 %v2946
        %v2948 = vpop.xlane.xlu0 %2947
        %v2949 = vsel %vm705, %v2939, 0.0
        %2950 = vadd.xlane.f32.xlu0 %v2949
        %v2951 = vpop.xlane.xlu0 %2950
        %v2952 = vadd.f32 %v2940, %v2945
        %v2953 = vadd.f32 %v2941, %v2948
        %v2954 = vadd.f32 %v2942, %v2951
        %v2955 = vmul.f32 %v2926, %v2854
        %v2956 = vmul.f32 %v2928, %v2855
        %v2957 = vmul.f32 %v2930, %v2856
        %v2958 = vpack.c.bf16 %v2937, %v2935
        %v2959 = vpack.c.bf16 %v2939, %v2939
        %2960 = vrot.lane.b32.xlu0 %v870, 40
        %v2961 = vpop.permute.xlu0 %2960
        %v2963 = vsel %vm705, %v2958, 0
        %v2966 = vsel %vm705, %v2959, 0
        %v2969 = vsel %vm815, %v2961, 0
        %2971 = vmatprep.subr.bf16.mxu0 0
        %2972 = vmatpush1.bf16.msra.mxu0 0
        %2973 = vmatprep.subr.bf16.mxu0 0
        %2974 = vmatpush1.bf16.msra.mxu0 0
        %2975 = vmatprep.subr.bf16.mxu0 0
        %2976 = vmatpush1.bf16.msra.mxu0 0
        %2977 = vmatprep.subr.bf16.mxu0 0
        %2978 = vmatpush1.bf16.msra.mxu0 0
        %2979 = vmatprep.subr.bf16.mxu0 0
        %2980 = vmatpush1.bf16.msra.mxu0 0
        %2981 = vmatprep.subr.bf16.mxu0 0
        %2982 = vmatpush1.bf16.msra.mxu0 0
        %2983 = vmatprep.subr.bf16.mxu0 0
        %2984 = vmatpush1.bf16.msra.mxu0 0
        %2985 = vmatprep.subr.bf16.mxu0 0
        %2986 = vmatpush1.bf16.msra.mxu0 %v2969
        %2987 = vmatprep.subr.bf16.mxu0 0
        %2988 = vmatpush2.bf16.msra.mxu0 0
        %2989 = vmatprep.subr.bf16.mxu0 0
        %2990 = vmatpush2.bf16.msra.mxu0 0
        %2991 = vmatprep.subr.bf16.mxu0 0
        %2992 = vmatpush2.bf16.msra.mxu0 0
        %2993 = vmatprep.subr.bf16.mxu0 0
        %2994 = vmatpush2.bf16.msra.mxu0 0
        %2995 = vmatprep.subr.bf16.mxu0 0
        %2996 = vmatpush2.bf16.msra.mxu0 0
        %2997 = vmatprep.subr.bf16.mxu0 0
        %2998 = vmatpush2.bf16.msra.mxu0 0
        %2999 = vmatprep.subr.bf16.mxu0 0
        %3000 = vmatpush2.bf16.msra.mxu0 0
        %3001 = vmatprep.subr.bf16.mxu0 0
        %3002 = vmatpush2.bf16.msra.mxu0 0
        %3003 = vmatprep.mubr.bf16.mxu0 0
        %3004 = vmatmul.mubr.bf16.gmra.mxu0 %v2963
        %v3005 = vpop.f32.mrf.mxu0
        %v3006 = vadd.f32 0.0, %v3005
        %v3007 = vpop.f32.mrf.mxu0
        %v3008 = vpop.f32.mrf.mxu0
        %v3009 = vadd.f32 0.0, %v3008
        %v3010 = vpop.f32.mrf.mxu0
        %3011 = vmatprep.mubr.bf16.mxu0 0
        %3012 = vmatmul.mubr.bf16.gmra.mxu0 %v2966
        %v3013 = vpop.f32.mrf.mxu0
        %v3014 = vadd.f32 0.0, %v3013
        %v3015 = vpop.f32.mrf.mxu0
        %v3016 = vpop.f32.mrf.mxu0
        %v3017 = vpop.f32.mrf.mxu0
        %3018 = vdwg.mxu0
        %v3019 = vadd.f32 %v2955, %v3006
        %v3020 = vadd.f32 %v2956, %v3009
        %v3021 = vadd.f32 %v2957, %v3014
        %3022 = vrot.lane.b32.xlu0 %v701, 72
        %v3023 = vpop.permute.xlu0 %3022
        %v3025 = vsel %vm705, %v3023, 0
        %3027 = vmatprep.subr.bf16.mxu0 0
        %3028 = vmatpush1.bf16.xpose.msra.mxu0 0
        %3029 = vmatprep.subr.bf16.mxu0 0
        %3030 = vmatpush1.bf16.xpose.msra.mxu0 0
        %3031 = vmatprep.subr.bf16.mxu0 0
        %3032 = vmatpush1.bf16.xpose.msra.mxu0 0
        %3033 = vmatprep.subr.bf16.mxu0 0
        %3034 = vmatpush1.bf16.xpose.msra.mxu0 0
        %3035 = vmatprep.subr.bf16.mxu0 0
        %3036 = vmatpush1.bf16.xpose.msra.mxu0 0
        %3037 = vmatprep.subr.bf16.mxu0 0
        %3038 = vmatpush1.bf16.xpose.msra.mxu0 0
        %3039 = vmatprep.subr.bf16.mxu0 0
        %3040 = vmatpush1.bf16.xpose.msra.mxu0 0
        %3041 = vmatprep.subr.bf16.mxu0 0
        %3042 = vmatpush1.bf16.xpose.msra.mxu0 %v3025
        %3043 = vmatprep.subr.bf16.mxu0 0
        %3044 = vmatpush2.bf16.xpose.msra.mxu0 0
        %3045 = vmatprep.subr.bf16.mxu0 0
        %3046 = vmatpush2.bf16.xpose.msra.mxu0 0
        %3047 = vmatprep.subr.bf16.mxu0 0
        %3048 = vmatpush2.bf16.xpose.msra.mxu0 0
        %3049 = vmatprep.subr.bf16.mxu0 0
        %3050 = vmatpush2.bf16.xpose.msra.mxu0 0
        %3051 = vmatprep.subr.bf16.mxu0 0
        %3052 = vmatpush2.bf16.xpose.msra.mxu0 0
        %3053 = vmatprep.subr.bf16.mxu0 0
        %3054 = vmatpush2.bf16.xpose.msra.mxu0 0
        %3055 = vmatprep.subr.bf16.mxu0 0
        %3056 = vmatpush2.bf16.xpose.msra.mxu0 0
        %3057 = vmatprep.subr.bf16.mxu0 0
        %3058 = vmatpush2.bf16.xpose.msra.mxu0 0
        %3059 = vmatprep.mubr.bf16.mxu0 0
        %3060 = vmatmul.mubr.bf16.gmra.mxu0 %v2695
        %v3061 = vpop.f32.mrf.mxu0
        %v3062 = vadd.f32 0.0, %v3061
        %v3063 = vpop.f32.mrf.mxu0
        %v3064 = vpop.f32.mrf.mxu0
        %v3065 = vadd.f32 0.0, %v3064
        %v3066 = vpop.f32.mrf.mxu0
        %3067 = vmatprep.mubr.bf16.mxu0 0
        %3068 = vmatmul.mubr.bf16.gmra.mxu0 %v2698
        %v3069 = vpop.f32.mrf.mxu0
        %v3070 = vadd.f32 0.0, %v3069
        %v3071 = vpop.f32.mrf.mxu0
        %v3072 = vpop.f32.mrf.mxu0
        %v3073 = vpop.f32.mrf.mxu0
        %3074 = vdwg.mxu0
        %v3075 = vsel %vm705, %v3062, -inf
        %3076 = vmax.xlane.f32.xlu0 %v3075
        %v3077 = vpop.xlane.xlu0 %3076
        %v3078 = vsel %vm705, %v3065, -inf
        %3079 = vmax.xlane.f32.xlu0 %v3078
        %v3080 = vpop.xlane.xlu0 %3079
        %v3081 = vsel %vm705, %v3070, -inf
        %3082 = vmax.xlane.f32.xlu0 %v3081
        %v3083 = vpop.xlane.xlu0 %3082
        %v3084 = vmax.f32 %v2919, %v3077
        %v3085 = vmax.f32 %v2920, %v3080
        %v3086 = vmax.f32 %v2921, %v3083
        %v3087 = vsub.f32 %v2919, %v3084
        %v3088 = vsub.f32 %v2920, %v3085
        %v3089 = vsub.f32 %v2921, %v3086
        %v3090 = vmul.f32 %v3087, 1.442695
        %v3091 = vpow.pop %v3090
        %v3092 = vmul.f32 %v3088, 1.442695
        %v3093 = vpow.pop %v3092
        %v3094 = vmul.f32 %v3089, 1.442695
        %v3095 = vpow.pop %v3094
        %v3096 = vsub.f32 %v3062, %v3084
        %v3097 = vsub.f32 %v3065, %v3085
        %v3098 = vsub.f32 %v3070, %v3086
        %v3099 = vmul.f32 %v3096, 1.442695
        %v3100 = vpow.pop %v3099
        %v3101 = vmul.f32 %v3097, 1.442695
        %v3102 = vpow.pop %v3101
        %v3103 = vmul.f32 %v3098, 1.442695
        %v3104 = vpow.pop %v3103
        %v3105 = vmul.f32 %v3091, %v2952
        %v3106 = vmul.f32 %v3093, %v2953
        %v3107 = vmul.f32 %v3095, %v2954
        %v3108 = vsel %vm705, %v3100, 0.0
        %3109 = vadd.xlane.f32.xlu0 %v3108
        %v3110 = vpop.xlane.xlu0 %3109
        %v3111 = vsel %vm705, %v3102, 0.0
        %3112 = vadd.xlane.f32.xlu0 %v3111
        %v3113 = vpop.xlane.xlu0 %3112
        %v3114 = vsel %vm705, %v3104, 0.0
        %3115 = vadd.xlane.f32.xlu0 %v3114
        %v3116 = vpop.xlane.xlu0 %3115
        %v3117 = vadd.f32 %v3105, %v3110
        %v3118 = vadd.f32 %v3106, %v3113
        %v3119 = vadd.f32 %v3107, %v3116
        %v3120 = vmul.f32 %v3091, %v3019
        %v3121 = vmul.f32 %v3093, %v3020
        %v3122 = vmul.f32 %v3095, %v3021
        %v3123 = vpack.c.bf16 %v3102, %v3100
        %v3124 = vpack.c.bf16 %v3104, %v3104
        %3125 = vrot.lane.b32.xlu0 %v701, 40
        %v3126 = vpop.permute.xlu0 %3125
        %v3128 = vsel %vm705, %v3123, 0
        %v3131 = vsel %vm705, %v3124, 0
        %v3134 = vsel %vm815, %v3126, 0
        %3136 = vmatprep.subr.bf16.mxu0 0
        %3137 = vmatpush1.bf16.msra.mxu0 0
        %3138 = vmatprep.subr.bf16.mxu0 0
        %3139 = vmatpush1.bf16.msra.mxu0 0
        %3140 = vmatprep.subr.bf16.mxu0 0
        %3141 = vmatpush1.bf16.msra.mxu0 0
        %3142 = vmatprep.subr.bf16.mxu0 0
        %3143 = vmatpush1.bf16.msra.mxu0 0
        %3144 = vmatprep.subr.bf16.mxu0 0
        %3145 = vmatpush1.bf16.msra.mxu0 0
        %3146 = vmatprep.subr.bf16.mxu0 0
        %3147 = vmatpush1.bf16.msra.mxu0 0
        %3148 = vmatprep.subr.bf16.mxu0 0
        %3149 = vmatpush1.bf16.msra.mxu0 0
        %3150 = vmatprep.subr.bf16.mxu0 0
        %3151 = vmatpush1.bf16.msra.mxu0 %v3134
        %3152 = vmatprep.subr.bf16.mxu0 0
        %3153 = vmatpush2.bf16.msra.mxu0 0
        %3154 = vmatprep.subr.bf16.mxu0 0
        %3155 = vmatpush2.bf16.msra.mxu0 0
        %3156 = vmatprep.subr.bf16.mxu0 0
        %3157 = vmatpush2.bf16.msra.mxu0 0
        %3158 = vmatprep.subr.bf16.mxu0 0
        %3159 = vmatpush2.bf16.msra.mxu0 0
        %3160 = vmatprep.subr.bf16.mxu0 0
        %3161 = vmatpush2.bf16.msra.mxu0 0
        %3162 = vmatprep.subr.bf16.mxu0 0
        %3163 = vmatpush2.bf16.msra.mxu0 0
        %3164 = vmatprep.subr.bf16.mxu0 0
        %3165 = vmatpush2.bf16.msra.mxu0 0
        %3166 = vmatprep.subr.bf16.mxu0 0
        %3167 = vmatpush2.bf16.msra.mxu0 0
        %3168 = vmatprep.mubr.bf16.mxu0 0
        %3169 = vmatmul.mubr.bf16.gmra.mxu0 %v3128
        %v3170 = vpop.f32.mrf.mxu0
        %v3171 = vadd.f32 0.0, %v3170
        %v3172 = vpop.f32.mrf.mxu0
        %v3173 = vpop.f32.mrf.mxu0
        %v3174 = vadd.f32 0.0, %v3173
        %v3175 = vpop.f32.mrf.mxu0
        %3176 = vmatprep.mubr.bf16.mxu0 0
        %3177 = vmatmul.mubr.bf16.gmra.mxu0 %v3131
        %v3178 = vpop.f32.mrf.mxu0
        %v3179 = vadd.f32 0.0, %v3178
        %v3180 = vpop.f32.mrf.mxu0
        %v3181 = vpop.f32.mrf.mxu0
        %v3182 = vpop.f32.mrf.mxu0
        %3183 = vdwg.mxu0
        %v3184 = vadd.f32 %v3120, %v3171
        %v3185 = vadd.f32 %v3121, %v3174
        %v3186 = vadd.f32 %v3122, %v3179
        %v3187 = vrcp.pop %v3117
        %v3188 = vrcp.pop %v3118
        %v3189 = vrcp.pop %v3119
        %v3190 = vmul.f32 %v3184, %v3187
        %v3191 = vmul.f32 %v3185, %v3188
        %v3192 = vmul.f32 %v3186, %v3189
        %v3193 = vld [vmem:[#allocation11 + $0x18] sm:$0xff]
        %v3195 = vsel %vm705, %v3190, 0
        %3197 = vmatprep.subr.mxu0 0.0
        %3198 = vmatpush1.msra.mxu0 0.0
        %3199 = vmatprep.subr.mxu0 0.0
        %3200 = vmatpush1.msra.mxu0 0.0
        %3201 = vmatprep.subr.mxu0 0.0
        %3202 = vmatpush1.msra.mxu0 0.0
        %3203 = vmatprep.subr.mxu0 0.0
        %3204 = vmatpush1.msra.mxu0 0.0
        %3205 = vmatprep.subr.mxu0 0.0
        %3206 = vmatpush1.msra.mxu0 0.0
        %3207 = vmatprep.subr.mxu0 0.0
        %3208 = vmatpush1.msra.mxu0 0.0
        %3209 = vmatprep.subr.mxu0 0.0
        %3210 = vmatpush1.msra.mxu0 0.0
        %3211 = vmatprep.subr.mxu0 0.0
        %3212 = vmatpush1.msra.mxu0 0.0
        %3213 = vmatprep.subr.mxu0 0.0
        %3214 = vmatpush1.msra.mxu0 0.0
        %3215 = vmatprep.subr.mxu0 0.0
        %3216 = vmatpush1.msra.mxu0 0.0
        %3217 = vmatprep.subr.mxu0 0.0
        %3218 = vmatpush1.msra.mxu0 0.0
        %3219 = vmatprep.subr.mxu0 0.0
        %3220 = vmatpush1.msra.mxu0 0.0
        %3221 = vmatprep.subr.mxu0 0.0
        %3222 = vmatpush1.msra.mxu0 0.0
        %3223 = vmatprep.subr.mxu0 0.0
        %3224 = vmatpush1.msra.mxu0 0.0
        %3225 = vmatprep.subr.mxu0 0.0
        %3226 = vmatpush1.msra.mxu0 0.0
        %3227 = vmatprep.subr.mxu0 0.0
        %3228 = vmatpush1.msra.mxu0 %v3193
        %3229 = vmatprep.subr.mxu0 0.0
        %3230 = vmatpush2.msra.mxu0 0.0
        %3231 = vmatprep.subr.mxu0 0.0
        %3232 = vmatpush2.msra.mxu0 0.0
        %3233 = vmatprep.subr.mxu0 0.0
        %3234 = vmatpush2.msra.mxu0 0.0
        %3235 = vmatprep.subr.mxu0 0.0
        %3236 = vmatpush2.msra.mxu0 0.0
        %3237 = vmatprep.subr.mxu0 0.0
        %3238 = vmatpush2.msra.mxu0 0.0
        %3239 = vmatprep.subr.mxu0 0.0
        %3240 = vmatpush2.msra.mxu0 0.0
        %3241 = vmatprep.subr.mxu0 0.0
        %3242 = vmatpush2.msra.mxu0 0.0
        %3243 = vmatprep.subr.mxu0 0.0
        %3244 = vmatpush2.msra.mxu0 0.0
        %3245 = vmatprep.subr.mxu0 0.0
        %3246 = vmatpush2.msra.mxu0 0.0
        %3247 = vmatprep.subr.mxu0 0.0
        %3248 = vmatpush2.msra.mxu0 0.0
        %3249 = vmatprep.subr.mxu0 0.0
        %3250 = vmatpush2.msra.mxu0 0.0
        %3251 = vmatprep.subr.mxu0 0.0
        %3252 = vmatpush2.msra.mxu0 0.0
        %3253 = vmatprep.subr.mxu0 0.0
        %3254 = vmatpush2.msra.mxu0 0.0
        %3255 = vmatprep.subr.mxu0 0.0
        %3256 = vmatpush2.msra.mxu0 0.0
        %3257 = vmatprep.subr.mxu0 0.0
        %3258 = vmatpush2.msra.mxu0 0.0
        %3259 = vmatprep.subr.mxu0 0.0
        %3260 = vmatpush2.msra.mxu0 0.0
        %3261 = vmatprep.mubr.f32.mxu0 0.0
        %3262 = vmatmul.mubr.f32.gmra.mxu0 %v3195
        %v3263 = vpop.f32.mrf.mxu0
        %v3264 = vadd.f32 0.0, %v3263
        %v3265 = vpop.f32.mrf.mxu0
        %3266 = vdwg.mxu0
        %v3267 = vadd.f32 %v2603, %v3264
        %v3268 = vld [vmem:[#allocation12 + $0x18] sm:$0xff]
        %v3270 = vsel %vm705, %v3191, 0
        %v3273 = vsel %vm705, %v3192, 0
        %3275 = vmatprep.subr.mxu0 0.0
        %3276 = vmatpush1.msra.mxu0 0.0
        %3277 = vmatprep.subr.mxu0 0.0
        %3278 = vmatpush1.msra.mxu0 0.0
        %3279 = vmatprep.subr.mxu0 0.0
        %3280 = vmatpush1.msra.mxu0 0.0
        %3281 = vmatprep.subr.mxu0 0.0
        %3282 = vmatpush1.msra.mxu0 0.0
        %3283 = vmatprep.subr.mxu0 0.0
        %3284 = vmatpush1.msra.mxu0 0.0
        %3285 = vmatprep.subr.mxu0 0.0
        %3286 = vmatpush1.msra.mxu0 0.0
        %3287 = vmatprep.subr.mxu0 0.0
        %3288 = vmatpush1.msra.mxu0 0.0
        %3289 = vmatprep.subr.mxu0 0.0
        %3290 = vmatpush1.msra.mxu0 0.0
        %3291 = vmatprep.subr.mxu0 0.0
        %3292 = vmatpush1.msra.mxu0 0.0
        %3293 = vmatprep.subr.mxu0 0.0
        %3294 = vmatpush1.msra.mxu0 0.0
        %3295 = vmatprep.subr.mxu0 0.0
        %3296 = vmatpush1.msra.mxu0 0.0
        %3297 = vmatprep.subr.mxu0 0.0
        %3298 = vmatpush1.msra.mxu0 0.0
        %3299 = vmatprep.subr.mxu0 0.0
        %3300 = vmatpush1.msra.mxu0 0.0
        %3301 = vmatprep.subr.mxu0 0.0
        %3302 = vmatpush1.msra.mxu0 0.0
        %3303 = vmatprep.subr.mxu0 0.0
        %3304 = vmatpush1.msra.mxu0 0.0
        %3305 = vmatprep.subr.mxu0 0.0
        %3306 = vmatpush1.msra.mxu0 %v3268
        %3307 = vmatprep.subr.mxu0 0.0
        %3308 = vmatpush2.msra.mxu0 0.0
        %3309 = vmatprep.subr.mxu0 0.0
        %3310 = vmatpush2.msra.mxu0 0.0
        %3311 = vmatprep.subr.mxu0 0.0
        %3312 = vmatpush2.msra.mxu0 0.0
        %3313 = vmatprep.subr.mxu0 0.0
        %3314 = vmatpush2.msra.mxu0 0.0
        %3315 = vmatprep.subr.mxu0 0.0
        %3316 = vmatpush2.msra.mxu0 0.0
        %3317 = vmatprep.subr.mxu0 0.0
        %3318 = vmatpush2.msra.mxu0 0.0
        %3319 = vmatprep.subr.mxu0 0.0
        %3320 = vmatpush2.msra.mxu0 0.0
        %3321 = vmatprep.subr.mxu0 0.0
        %3322 = vmatpush2.msra.mxu0 0.0
        %3323 = vmatprep.subr.mxu0 0.0
        %3324 = vmatpush2.msra.mxu0 0.0
        %3325 = vmatprep.subr.mxu0 0.0
        %3326 = vmatpush2.msra.mxu0 0.0
        %3327 = vmatprep.subr.mxu0 0.0
        %3328 = vmatpush2.msra.mxu0 0.0
        %3329 = vmatprep.subr.mxu0 0.0
        %3330 = vmatpush2.msra.mxu0 0.0
        %3331 = vmatprep.subr.mxu0 0.0
        %3332 = vmatpush2.msra.mxu0 0.0
        %3333 = vmatprep.subr.mxu0 0.0
        %3334 = vmatpush2.msra.mxu0 0.0
        %3335 = vmatprep.subr.mxu0 0.0
        %3336 = vmatpush2.msra.mxu0 0.0
        %3337 = vmatprep.subr.mxu0 0.0
        %3338 = vmatpush2.msra.mxu0 0.0
        %3339 = vmatprep.mubr.f32.mxu0 0.0
        %3340 = vmatmul.mubr.f32.gmra.mxu0 %v3270
        %v3341 = vpop.f32.mrf.mxu0
        %v3342 = vadd.f32 0.0, %v3341
        %v3343 = vpop.f32.mrf.mxu0
        %3344 = vmatprep.mubr.f32.mxu0 0.0
        %3345 = vmatmul.mubr.f32.gmra.mxu0 %v3273
        %v3346 = vpop.f32.mrf.mxu0
        %v3347 = vadd.f32 0.0, %v3346
        %v3348 = vpop.f32.mrf.mxu0
        %3349 = vdwg.mxu0
        %v3350 = vadd.f32 %v2686, %v3342
        %v3351 = vadd.f32 %v2687, %v3347
        %3352 = vst.msk [vmem:[%s503] sm:$0xff] %vm519, %v3267
        %3353 = vst.msk [vmem:[%s510] sm:$0xff] %vm519, %v3350
        %3354 = vst.msk [vmem:[%s510 + $0x8] sm:$0xff] %vm519, %v3351
        %s3355 = sand.u32 %s265, 1
        %s3356 = scalar_lea.sflag [#allocation5], %s3355
        %s3357 = sand.u32 %s265, 1
        %s3358 = smul.addr %s3357, 8
        %s3359 = scalar_lea.vmem [#allocation14], %s3358
        %s3360 = sand.u32 %s291, 1
        %s3361 = scalar_lea.sflag [#allocation16], %s3360
        %s3362 = sand.u32 %s291, 1
        %s3363 = smul.addr %s3362, 16
        %s3364 = scalar_lea.vmem [#allocation15], %s3363
        // Predicated region
        $region85: #{tpu_custom_call.1} parent=59 // pred_check
          %p3365 = pneg %p275
        $region86: #{tpu_custom_call.1} parent=59 // pred_check_branch
          %3367 = sbr.rel (%p3365) target = $region88
        $region87: #{tpu_custom_call.1} parent=59 // pred_region
          %s3369 = ssub.s32 128, 128
          %3370 = vsyncadd %s3356, %s3369
          %s3371 = smul.addr %s37, 128
          %s3372 = scalar_lea.hbm %s10, %s3371
          %s3374 = sshll.u32 %s3359, 4
          %s3375 = int_to_ptr.vmem [resolvable:$true] %s3374
          %3377 = dma.vmem_to_hbm [thread:$0]  %s3375, 128, %s3372, %s3356
        $region88: #{tpu_custom_call.1} parent=59 // pred_fallthru
          _
        // Predicated region
        $region89: #{tpu_custom_call.1} parent=59 // pred_check
          %p3378 = pneg %p301
        $region90: #{tpu_custom_call.1} parent=59 // pred_check_branch
          %3380 = sbr.rel (%p3378) target = $region92
        $region91: #{tpu_custom_call.1} parent=59 // pred_region
          %s3382 = ssub.s32 256, 256
          %3383 = vsyncadd %s3361, %s3382
          %s3384 = smul.addr %s37, 2
          %s3385 = smul.addr %s3384, 128
          %s3386 = scalar_lea.hbm %s11, %s3385
          %s3387 = sshll.u32 %s3364, 4
          %s3388 = int_to_ptr.vmem [resolvable:$true] %s3387
          %3393 = dma.vmem_to_hbm [thread:$0]  %s3388, 256, %s3386, %s3361, 128, 128, 8
        $region92: #{tpu_custom_call.1} parent=59 // pred_fallthru
          _
      $region60: #{tpu_custom_call.1} parent=5 // pred_fallthru
        _
      %p3394 = scmp.le.s32.totalorder 2, %s32
      // Predicated region
      $region93: #{tpu_custom_call.1} parent=5 // pred_check
        %p3395 = pneg %p3394
      $region94: #{tpu_custom_call.1} parent=5 // pred_check_branch
        %3397 = sbr.rel (%p3395) target = $region96
      $region95: #{tpu_custom_call.1} parent=5 // pred_region
        %s3398 = ssub.s32 %s32, 2
        // Predicated region
        $region97: #{tpu_custom_call.1} parent=95 // pred_check
          %p3399 = pneg %p281
        $region98: #{tpu_custom_call.1} parent=95 // pred_check_branch
          %3401 = sbr.rel (%p3399) target = $region100
        $region99: #{tpu_custom_call.1} parent=95 // pred_region
          %s3402 = sand.u32 %s266, 1
          %s3403 = scalar_lea.sflag [#allocation5], %s3402
          %s3404 = sand.u32 %s266, 1
          %s3405 = smul.addr %s3404, 8
          %s3406 = scalar_lea.vmem [#allocation14], %s3405
          %3407 = dma.done %s3403, 128
        $region100: #{tpu_custom_call.1} parent=95 // pred_fallthru
          _
        // Predicated region
        $region101: #{tpu_custom_call.1} parent=95 // pred_check
          %p3408 = pneg %p307
        $region102: #{tpu_custom_call.1} parent=95 // pred_check_branch
          %3410 = sbr.rel (%p3408) target = $region104
        $region103: #{tpu_custom_call.1} parent=95 // pred_region
          %s3411 = sand.u32 %s292, 1
          %s3412 = scalar_lea.sflag [#allocation16], %s3411
          %s3413 = sand.u32 %s292, 1
          %s3414 = smul.addr %s3413, 16
          %s3415 = scalar_lea.vmem [#allocation15], %s3414
          %3416 = dma.done %s3412, 256
        $region104: #{tpu_custom_call.1} parent=95 // pred_fallthru
          _
      $region96: #{tpu_custom_call.1} parent=5 // pred_fallthru
        _
    $region6: #{tpu_custom_call.1} parent=1 // loop_footer
      %s36 = sadd.s32 1, %s32
    $region7: #{tpu_custom_call.1} parent=1 // loop_footer_branch
      %31 = sbr.rel target = $region3
    $region8: #{tpu_custom_call.1} parent=1 // loop_exit
      _
    %3417 = vsyncpa [#allocation4], 1
    %s3418 = scalar_lea.sflag [#allocation4], 1
    %3419 = vsyncpa %s3418, 1
    %3420 = vsyncpa [#allocation7], 1
    %s3421 = scalar_lea.sflag [#allocation7], 1
    %3422 = vsyncpa %s3421, 1
    %3423 = vsyncpa [#allocation10], 1
    %3424 = vsyncpa [#allocation13], 1
    %3425 = vsyncpa [#allocation5], 1
    %s3426 = scalar_lea.sflag [#allocation5], 1
    %3427 = vsyncpa %s3426, 1
    %3428 = vsyncpa [#allocation16], 1
    %s3429 = scalar_lea.sflag [#allocation16], 1
    %3430 = vsyncpa %s3429, 1

</llo_original>
